<compile_context>
chip_gen: v5e
topology: v5e:2x2
jax: 0.10.0
libtpu: 0.0.40
codegen_flags: <defaults>
</compile_context>

<pallas_src>
import functools

import jax
import jax.numpy as jnp
from jax.experimental import pallas as pl
from jax.experimental.pallas import tpu as pltpu

_BN_EPS = 1e-5

CONFIG = {
    "conv": {"channels": [4, 8, 16, 32], "kernel": 3, "stride": 1,
             "padding": True, "bias": True},
    "maxpool": {"kernel": 2, "stride": 2},
    "fc": {"features": [512, 64, 32], "bias": True},
}


# ----------------------------- Pallas kernel --------------------------------

def _mm_affine_kernel(a_ref, b_ref, scale_ref, shift_ref, o_ref, *, act):
    # Single K step: bf16 operands, f32 MXU accumulation, fused affine + act.
    acc = jnp.dot(a_ref[...], b_ref[...], preferred_element_type=jnp.float32)
    out = acc * scale_ref[...] + shift_ref[...]
    if act == "relu":
        out = jnp.maximum(out, 0.0)
    elif act == "sigmoid":
        out = jax.nn.sigmoid(out)
    o_ref[...] = out.astype(o_ref.dtype)


def _round_up(x, m):
    return (x + m - 1) // m * m


def matmul_affine(a, b, scale, shift, act="none"):
    """(M,K) @ (K,N) * scale[N] + shift[N] (+ ReLU/Sigmoid) on the MXU.

    K and N stay un-padded (full-extent blocks); only M is tiled."""
    M, K = a.shape
    K2, N = b.shape
    assert K == K2
    a = a.astype(jnp.bfloat16)
    b = b.astype(jnp.bfloat16)
    tm = min(256, _round_up(M, 8))
    Mp = _round_up(M, tm)
    if Mp != M:
        a = jnp.pad(a, ((0, Mp - M), (0, 0)))
    sc = scale.astype(jnp.float32).reshape(1, N)
    sh = shift.astype(jnp.float32).reshape(1, N)

    flops = 2 * Mp * K * N
    transcendentals = Mp * N if act == "sigmoid" else 0
    bytes_accessed = 2 * (Mp * K + K * N) + 4 * (Mp * N + 2 * N)

    out = pl.pallas_call(
        functools.partial(_mm_affine_kernel, act=act),
        out_shape=jax.ShapeDtypeStruct((Mp, N), jnp.float32),
        grid_spec=pltpu.PrefetchScalarGridSpec(
            num_scalar_prefetch=0,
            grid=(Mp // tm,),
            in_specs=[
                pl.BlockSpec((tm, K), lambda i: (i, 0)),
                pl.BlockSpec((K, N), lambda i: (0, 0)),
                pl.BlockSpec((1, N), lambda i: (0, 0)),
                pl.BlockSpec((1, N), lambda i: (0, 0)),
            ],
            out_specs=pl.BlockSpec((tm, N), lambda i: (i, 0)),
        ),
        compiler_params=pltpu.CompilerParams(
            dimension_semantics=("parallel",)),
        cost_estimate=pl.CostEstimate(
            flops=flops, transcendentals=transcendentals,
            bytes_accessed=bytes_accessed),
    )(a, b, sc, sh)
    return out[:M] if Mp != M else out


# ------------------------------- Conv helpers --------------------------------

def conv2d_affine(x, w, scale, shift, pad, act):
    """NHWC conv (stride 1) via bf16 im2col + fused Pallas matmul.

    w: (Cout, Cin, KH, KW) (PyTorch Conv2d layout)."""
    N, H, W, Ci = x.shape
    Co, _, KH, KW = w.shape
    # TODO(synk): for large spatial sizes, fold the KHxKW tap loop into the
    # kernel's K grid axis (shifted index_maps on the padded activation) to
    # avoid materializing the im2col patch tensor in HBM.
    xp = jnp.pad(x.astype(jnp.bfloat16), ((0, 0), (pad, pad), (pad, pad), (0, 0)))
    Ho = H + 2 * pad - KH + 1
    Wo = W + 2 * pad - KW + 1
    cols = [xp[:, kh:kh + Ho, kw:kw + Wo, :]
            for kh in range(KH) for kw in range(KW)]
    patches = jnp.concatenate(cols, axis=-1).reshape(N * Ho * Wo, KH * KW * Ci)
    wmat = jnp.transpose(w, (2, 3, 1, 0)).reshape(KH * KW * Ci, Co)
    y = matmul_affine(patches, wmat, scale, shift, act)
    return y.reshape(N, Ho, Wo, Co)


def _fold_bn(bias, p):
    scale = p["gamma"] * jax.lax.rsqrt(p["var"] + _BN_EPS)
    shift = (bias - p["mean"]) * scale + p["beta"]
    return scale, shift


def conv_bn_relu(x, p):
    """Conv2d(k=3,s=1,p=1,bias) + BatchNorm2d(eval) + ReLU, all fused."""
    k = p["w"].shape[-1]
    scale, shift = _fold_bn(p["b"], p)
    return conv2d_affine(x, p["w"], scale, shift, pad=k // 2, act="relu")


def deconv_bn_relu(x, p):
    """ConvTranspose2d(k=3,s=1,p=1,bias) + BatchNorm2d(eval) + ReLU.

    With stride 1 this equals a regular conv with channel-transposed,
    spatially flipped weights and padding k-1-p. w: (Cin, Cout, KH, KW)."""
    k = p["w"].shape[-1]
    w_eq = jnp.transpose(p["w"], (1, 0, 2, 3))[:, :, ::-1, ::-1]
    scale, shift = _fold_bn(p["b"], p)
    return conv2d_affine(x, w_eq, scale, shift, pad=k - 1 - k // 2, act="relu")


def linear_bn_sigmoid(x, p):
    """Linear(bias) + BatchNorm1d(eval) + Sigmoid, fused in the epilogue."""
    scale, shift = _fold_bn(p["b"], p)
    return matmul_affine(x, p["w"], scale, shift, act="sigmoid")


# --------------------- MaxPool(return_indices) / MaxUnpool -------------------

def maxpool2_argmax(x):
    """2x2 stride-2 maxpool; records the window argmax (PyTorch-equivalent
    indices for non-overlapping windows; first-max tie-break)."""
    N, H, W, C = x.shape
    Hp, Wp = H // 2, W // 2
    xr = x[:, :Hp * 2, :Wp * 2, :].reshape(N, Hp, 2, Wp, 2, C)
    xw = jnp.transpose(xr, (0, 1, 3, 5, 2, 4)).reshape(N, Hp, Wp, C, 4)
    pooled = jnp.max(xw, axis=-1)
    idx = jnp.argmax(xw, axis=-1)
    return pooled, idx


def maxunpool2(x, idx, out_hw):
    """Scatter values back to the recorded argmax positions (MaxUnpool2d)."""
    N, Hp, Wp, C = x.shape
    onehot = jax.nn.one_hot(idx, 4, dtype=x.dtype)          # (N,Hp,Wp,C,4)
    scat = x[..., None] * onehot
    scat = scat.reshape(N, Hp, Wp, C, 2, 2)
    scat = jnp.transpose(scat, (0, 1, 4, 2, 5, 3)).reshape(N, Hp * 2, Wp * 2, C)
    Ho, Wo = out_hw
    return jnp.pad(scat, ((0, 0), (0, Ho - Hp * 2), (0, Wo - Wp * 2), (0, 0)))


# --------------------------------- Forward -----------------------------------

def map_branch_forward(params, x):
    """Map_Branch_Model.forward: returns (EGPH, y)."""
    B, T, C, H, W = x.shape
    xf = x.reshape(B * T, C, H, W).transpose(0, 2, 3, 1)     # NCHW -> NHWC

    # ---- Map_Encoder ----
    feats = xf
    inds, shapes = [], []
    for p in params["enc"]:
        feats = conv_bn_relu(feats, p)
        shapes.append(feats.shape)                           # pre-pool shape
        feats, idx = maxpool2_argmax(feats)
        inds.append(idx)

    # ---- fc branch (Flatten over torch NCHW order -> Linear+BN1d+Sigmoid) ----
    flat = jnp.transpose(feats, (0, 3, 1, 2)).reshape(B, -1)
    egph = flat
    for p in params["fc"]:
        egph = linear_bn_sigmoid(egph, p)
    EGPH = egph[:, None, :]                                  # unsqueeze(1)

    # ---- Map_Decoder: (maxunpool -> ConvTranspose+BN+ReLU) x3 ----
    y = feats
    for p, idx, shp in zip(params["dec"], reversed(inds), reversed(shapes)):
        y = maxunpool2(y, idx, shp[1:3])
        y = deconv_bn_relu(y, p)

    y = jnp.transpose(y, (0, 3, 1, 2)).reshape(B, T, C, H, W)
    return EGPH, y


# ----------------------------- Parameter setup --------------------------------

class _KeyGen:
    def __init__(self, seed):
        self._key = jax.random.PRNGKey(seed)

    def __call__(self):
        self._key, sub = jax.random.split(self._key)
        return sub


def _u(key, shape, fan_in):
    bound = 1.0 / (fan_in ** 0.5)
    return jax.random.uniform(key, shape, jnp.float32, -bound, bound)


def _bn(kg, c):
    return {
        "gamma": 1.0 + 0.1 * jax.random.normal(kg(), (c,), jnp.float32),
        "beta": 0.1 * jax.random.normal(kg(), (c,), jnp.float32),
        "mean": 0.1 * jax.random.normal(kg(), (c,), jnp.float32),
        "var": 1.0 + 0.1 * jnp.abs(jax.random.normal(kg(), (c,), jnp.float32)),
    }


def build_params(seed=0):
    assert CONFIG["conv"]["stride"] == 1 and CONFIG["conv"]["padding"]
    kg = _KeyGen(seed)
    k = CONFIG["conv"]["kernel"]
    ch = CONFIG["conv"]["channels"]

    enc = []
    for cin, cout in zip(ch[:-1], ch[1:]):                   # Conv2d layout
        enc.append({"w": _u(kg(), (cout, cin, k, k), cin * k * k),
                    "b": _u(kg(), (cout,), cin * k * k), **_bn(kg, cout)})

    rch = list(reversed(ch))
    dec = []
    for cin, cout in zip(rch[:-1], rch[1:]):                 # ConvTranspose2d layout
        dec.append({"w": _u(kg(), (cin, cout, k, k), cin * k * k),
                    "b": _u(kg(), (cout,), cin * k * k), **_bn(kg, cout)})

    feats = CONFIG["fc"]["features"]
    fc = []
    for fin, fout in zip(feats[:-1], feats[1:]):             # stored (in, out)
        fc.append({"w": _u(kg(), (fin, fout), fin),
                   "b": _u(kg(), (fout,), fin), **_bn(kg, fout)})

    return {"enc": enc, "dec": dec, "fc": fc}


# ----------------------------------- main -------------------------------------

if __name__ == "__main__":
    B, T, C, H, W = 2, 1, 4, 32, 32
    params = build_params(seed=0)
    x = jax.random.normal(jax.random.PRNGKey(0), (B, T, C, H, W), jnp.float32)

    fwd = jax.jit(map_branch_forward)
    EGPH, y = fwd(params, x)
    jax.block_until_ready((EGPH, y))

    assert EGPH.shape == (B, 1, CONFIG["fc"]["features"][-1]), EGPH.shape
    assert y.shape == (B, T, C, H, W), y.shape
    assert bool(jnp.all(jnp.isfinite(EGPH))) and bool(jnp.all(jnp.isfinite(y)))
    print("KERNEL_OK")
</pallas_src>

<mosaic_0001>
module attributes {stable_mosaic.version = 11 : i64} {
  func.func @_mm_affine_kernel(%arg0: i32, %arg1: memref<256x36xbf16, #tpu.memory_space<vmem>>, %arg2: memref<36x8xbf16, #tpu.memory_space<vmem>>, %arg3: memref<1x8xf32, #tpu.memory_space<vmem>>, %arg4: memref<1x8xf32, #tpu.memory_space<vmem>>, %arg5: memref<256x8xf32, #tpu.memory_space<vmem>>) attributes {dimension_semantics = [#tpu.dimension_semantics<parallel>], iteration_bounds = array<i64: 8>, scalar_prefetch = 0 : i64, scratch_operands = 0 : i64, tpu.core_type = #tpu.core_type<tc>, window_params = [{transform_indices = @transform_0, window_bounds = array<i64: 256, 36>}, {pipeline_mode = #tpu.pipeline_mode<synchronous>, transform_indices = @transform_1, window_bounds = array<i64: 36, 8>}, {pipeline_mode = #tpu.pipeline_mode<synchronous>, transform_indices = @transform_2, window_bounds = array<i64: 1, 8>}, {pipeline_mode = #tpu.pipeline_mode<synchronous>, transform_indices = @transform_3, window_bounds = array<i64: 1, 8>}, {transform_indices = @transform_4, window_bounds = array<i64: 256, 8>}]} {
    %c0 = arith.constant 0 : index
    %c0_0 = arith.constant 0 : index
    %0 = vector.load %arg1[%c0, %c0_0] : memref<256x36xbf16, #tpu.memory_space<vmem>>, vector<256x36xbf16>
    %c0_1 = arith.constant 0 : index
    %c0_2 = arith.constant 0 : index
    %1 = vector.load %arg2[%c0_1, %c0_2] : memref<36x8xbf16, #tpu.memory_space<vmem>>, vector<36x8xbf16>
    %cst = arith.constant dense<0.000000e+00> : vector<256x8xf32>
    %2 = tpu.matmul %0, %1, %cst {dimension_numbers = #tpu.dot_dimension_numbers<[1], [0], [0], [1], [0, 0, 1, 1], [], []>} : vector<256x36xbf16>, vector<36x8xbf16>, vector<256x8xf32> -> vector<256x8xf32>
    %c0_3 = arith.constant 0 : index
    %c0_4 = arith.constant 0 : index
    %3 = vector.load %arg3[%c0_3, %c0_4] : memref<1x8xf32, #tpu.memory_space<vmem>>, vector<1x8xf32>
    %4 = vector.broadcast %3 : vector<1x8xf32> to vector<256x8xf32>
    %5 = arith.mulf %2, %4 : vector<256x8xf32>
    %c0_5 = arith.constant 0 : index
    %c0_6 = arith.constant 0 : index
    %6 = vector.load %arg4[%c0_5, %c0_6] : memref<1x8xf32, #tpu.memory_space<vmem>>, vector<1x8xf32>
    %7 = vector.broadcast %6 : vector<1x8xf32> to vector<256x8xf32>
    %8 = arith.addf %5, %7 : vector<256x8xf32>
    %cst_7 = arith.constant 0.000000e+00 : f32
    %9 = vector.broadcast %cst_7 : f32 to vector<256x8xf32>
    %10 = arith.maximumf %8, %9 : vector<256x8xf32>
    %c0_8 = arith.constant 0 : index
    %c0_9 = arith.constant 0 : index
    %11 = vector.load %arg5[%c0_8, %c0_9] : memref<256x8xf32, #tpu.memory_space<vmem>>, vector<256x8xf32>
    tpu.vector_store %arg5[%c0_8, %c0_9], %10 {strides = array<i32>} : memref<256x8xf32, #tpu.memory_space<vmem>>, vector<256x8xf32>,
    return
  }
  func.func @transform_0(%arg0: i32) -> (i32, i32) {
    %c0_i32 = arith.constant 0 : i32
    %c0_i32_0 = arith.constant 0 : i32
    return %arg0, %c0_i32 : i32, i32
  }
  func.func @transform_1(%arg0: i32) -> (i32, i32) {
    %c0_i32 = arith.constant 0 : i32
    %c0_i32_0 = arith.constant 0 : i32
    %c0_i32_1 = arith.constant 0 : i32
    return %c0_i32, %c0_i32_0 : i32, i32
  }
  func.func @transform_2(%arg0: i32) -> (i32, i32) {
    %c0_i32 = arith.constant 0 : i32
    %c0_i32_0 = arith.constant 0 : i32
    %c0_i32_1 = arith.constant 0 : i32
    return %c0_i32, %c0_i32_0 : i32, i32
  }
  func.func @transform_3(%arg0: i32) -> (i32, i32) {
    %c0_i32 = arith.constant 0 : i32
    %c0_i32_0 = arith.constant 0 : i32
    %c0_i32_1 = arith.constant 0 : i32
    return %c0_i32, %c0_i32_0 : i32, i32
  }
  func.func @transform_4(%arg0: i32) -> (i32, i32) {
    %c0_i32 = arith.constant 0 : i32
    %c0_i32_0 = arith.constant 0 : i32
    return %arg0, %c0_i32 : i32, i32
  }
}

module attributes {stable_mosaic.version = 11 : i64} {
  func.func @_mm_affine_kernel(%arg0: i32, %arg1: memref<256x72xbf16, #tpu.memory_space<vmem>>, %arg2: memref<72x16xbf16, #tpu.memory_space<vmem>>, %arg3: memref<1x16xf32, #tpu.memory_space<vmem>>, %arg4: memref<1x16xf32, #tpu.memory_space<vmem>>, %arg5: memref<256x16xf32, #tpu.memory_space<vmem>>) attributes {dimension_semantics = [#tpu.dimension_semantics<parallel>], iteration_bounds = array<i64: 2>, scalar_prefetch = 0 : i64, scratch_operands = 0 : i64, tpu.core_type = #tpu.core_type<tc>, window_params = [{transform_indices = @transform_0, window_bounds = array<i64: 256, 72>}, {pipeline_mode = #tpu.pipeline_mode<synchronous>, transform_indices = @transform_1, window_bounds = array<i64: 72, 16>}, {pipeline_mode = #tpu.pipeline_mode<synchronous>, transform_indices = @transform_2, window_bounds = array<i64: 1, 16>}, {pipeline_mode = #tpu.pipeline_mode<synchronous>, transform_indices = @transform_3, window_bounds = array<i64: 1, 16>}, {transform_indices = @transform_4, window_bounds = array<i64: 256, 16>}]} {
    %c0 = arith.constant 0 : index
    %c0_0 = arith.constant 0 : index
    %0 = vector.load %arg1[%c0, %c0_0] : memref<256x72xbf16, #tpu.memory_space<vmem>>, vector<256x72xbf16>
    %c0_1 = arith.constant 0 : index
    %c0_2 = arith.constant 0 : index
    %1 = vector.load %arg2[%c0_1, %c0_2] : memref<72x16xbf16, #tpu.memory_space<vmem>>, vector<72x16xbf16>
    %cst = arith.constant dense<0.000000e+00> : vector<256x16xf32>
    %2 = tpu.matmul %0, %1, %cst {dimension_numbers = #tpu.dot_dimension_numbers<[1], [0], [0], [1], [0, 0, 1, 1], [], []>} : vector<256x72xbf16>, vector<72x16xbf16>, vector<256x16xf32> -> vector<256x16xf32>
    %c0_3 = arith.constant 0 : index
    %c0_4 = arith.constant 0 : index
    %3 = vector.load %arg3[%c0_3, %c0_4] : memref<1x16xf32, #tpu.memory_space<vmem>>, vector<1x16xf32>
    %4 = vector.broadcast %3 : vector<1x16xf32> to vector<256x16xf32>
    %5 = arith.mulf %2, %4 : vector<256x16xf32>
    %c0_5 = arith.constant 0 : index
    %c0_6 = arith.constant 0 : index
    %6 = vector.load %arg4[%c0_5, %c0_6] : memref<1x16xf32, #tpu.memory_space<vmem>>, vector<1x16xf32>
    %7 = vector.broadcast %6 : vector<1x16xf32> to vector<256x16xf32>
    %8 = arith.addf %5, %7 : vector<256x16xf32>
    %cst_7 = arith.constant 0.000000e+00 : f32
    %9 = vector.broadcast %cst_7 : f32 to vector<256x16xf32>
    %10 = arith.maximumf %8, %9 : vector<256x16xf32>
    %c0_8 = arith.constant 0 : index
    %c0_9 = arith.constant 0 : index
    %11 = vector.load %arg5[%c0_8, %c0_9] : memref<256x16xf32, #tpu.memory_space<vmem>>, vector<256x16xf32>
    tpu.vector_store %arg5[%c0_8, %c0_9], %10 {strides = array<i32>} : memref<256x16xf32, #tpu.memory_space<vmem>>, vector<256x16xf32>,
    return
  }
  func.func @transform_0(%arg0: i32) -> (i32, i32) {
    %c0_i32 = arith.constant 0 : i32
    %c0_i32_0 = arith.constant 0 : i32
    return %arg0, %c0_i32 : i32, i32
  }
  func.func @transform_1(%arg0: i32) -> (i32, i32) {
    %c0_i32 = arith.constant 0 : i32
    %c0_i32_0 = arith.constant 0 : i32
    %c0_i32_1 = arith.constant 0 : i32
    return %c0_i32, %c0_i32_0 : i32, i32
  }
  func.func @transform_2(%arg0: i32) -> (i32, i32) {
    %c0_i32 = arith.constant 0 : i32
    %c0_i32_0 = arith.constant 0 : i32
    %c0_i32_1 = arith.constant 0 : i32
    return %c0_i32, %c0_i32_0 : i32, i32
  }
  func.func @transform_3(%arg0: i32) -> (i32, i32) {
    %c0_i32 = arith.constant 0 : i32
    %c0_i32_0 = arith.constant 0 : i32
    %c0_i32_1 = arith.constant 0 : i32
    return %c0_i32, %c0_i32_0 : i32, i32
  }
  func.func @transform_4(%arg0: i32) -> (i32, i32) {
    %c0_i32 = arith.constant 0 : i32
    %c0_i32_0 = arith.constant 0 : i32
    return %arg0, %c0_i32 : i32, i32
  }
}

module attributes {stable_mosaic.version = 11 : i64} {
  func.func @_mm_affine_kernel(%arg0: i32, %arg1: memref<128x144xbf16, #tpu.memory_space<vmem>>, %arg2: memref<144x32xbf16, #tpu.memory_space<vmem>>, %arg3: memref<1x32xf32, #tpu.memory_space<vmem>>, %arg4: memref<1x32xf32, #tpu.memory_space<vmem>>, %arg5: memref<128x32xf32, #tpu.memory_space<vmem>>) attributes {dimension_semantics = [#tpu.dimension_semantics<parallel>], iteration_bounds = array<i64: 1>, scalar_prefetch = 0 : i64, scratch_operands = 0 : i64, tpu.core_type = #tpu.core_type<tc>, window_params = [{transform_indices = @transform_0, window_bounds = array<i64: 128, 144>}, {pipeline_mode = #tpu.pipeline_mode<synchronous>, transform_indices = @transform_1, window_bounds = array<i64: 144, 32>}, {pipeline_mode = #tpu.pipeline_mode<synchronous>, transform_indices = @transform_2, window_bounds = array<i64: 1, 32>}, {pipeline_mode = #tpu.pipeline_mode<synchronous>, transform_indices = @transform_3, window_bounds = array<i64: 1, 32>}, {transform_indices = @transform_4, window_bounds = array<i64: 128, 32>}]} {
    %c0 = arith.constant 0 : index
    %c0_0 = arith.constant 0 : index
    %0 = vector.load %arg1[%c0, %c0_0] : memref<128x144xbf16, #tpu.memory_space<vmem>>, vector<128x144xbf16>
    %c0_1 = arith.constant 0 : index
    %c0_2 = arith.constant 0 : index
    %1 = vector.load %arg2[%c0_1, %c0_2] : memref<144x32xbf16, #tpu.memory_space<vmem>>, vector<144x32xbf16>
    %cst = arith.constant dense<0.000000e+00> : vector<128x32xf32>
    %2 = tpu.matmul %0, %1, %cst {dimension_numbers = #tpu.dot_dimension_numbers<[1], [0], [0], [1], [0, 0, 1, 1], [], []>} : vector<128x144xbf16>, vector<144x32xbf16>, vector<128x32xf32> -> vector<128x32xf32>
    %c0_3 = arith.constant 0 : index
    %c0_4 = arith.constant 0 : index
    %3 = vector.load %arg3[%c0_3, %c0_4] : memref<1x32xf32, #tpu.memory_space<vmem>>, vector<1x32xf32>
    %4 = vector.broadcast %3 : vector<1x32xf32> to vector<128x32xf32>
    %5 = arith.mulf %2, %4 : vector<128x32xf32>
    %c0_5 = arith.constant 0 : index
    %c0_6 = arith.constant 0 : index
    %6 = vector.load %arg4[%c0_5, %c0_6] : memref<1x32xf32, #tpu.memory_space<vmem>>, vector<1x32xf32>
    %7 = vector.broadcast %6 : vector<1x32xf32> to vector<128x32xf32>
    %8 = arith.addf %5, %7 : vector<128x32xf32>
    %cst_7 = arith.constant 0.000000e+00 : f32
    %9 = vector.broadcast %cst_7 : f32 to vector<128x32xf32>
    %10 = arith.maximumf %8, %9 : vector<128x32xf32>
    %c0_8 = arith.constant 0 : index
    %c0_9 = arith.constant 0 : index
    %11 = vector.load %arg5[%c0_8, %c0_9] : memref<128x32xf32, #tpu.memory_space<vmem>>, vector<128x32xf32>
    tpu.vector_store %arg5[%c0_8, %c0_9], %10 {strides = array<i32>} : memref<128x32xf32, #tpu.memory_space<vmem>>, vector<128x32xf32>,
    return
  }
  func.func @transform_0(%arg0: i32) -> (i32, i32) {
    %c0_i32 = arith.constant 0 : i32
    %c0_i32_0 = arith.constant 0 : i32
    return %arg0, %c0_i32 : i32, i32
  }
  func.func @transform_1(%arg0: i32) -> (i32, i32) {
    %c0_i32 = arith.constant 0 : i32
    %c0_i32_0 = arith.constant 0 : i32
    %c0_i32_1 = arith.constant 0 : i32
    return %c0_i32, %c0_i32_0 : i32, i32
  }
  func.func @transform_2(%arg0: i32) -> (i32, i32) {
    %c0_i32 = arith.constant 0 : i32
    %c0_i32_0 = arith.constant 0 : i32
    %c0_i32_1 = arith.constant 0 : i32
    return %c0_i32, %c0_i32_0 : i32, i32
  }
  func.func @transform_3(%arg0: i32) -> (i32, i32) {
    %c0_i32 = arith.constant 0 : i32
    %c0_i32_0 = arith.constant 0 : i32
    %c0_i32_1 = arith.constant 0 : i32
    return %c0_i32, %c0_i32_0 : i32, i32
  }
  func.func @transform_4(%arg0: i32) -> (i32, i32) {
    %c0_i32 = arith.constant 0 : i32
    %c0_i32_0 = arith.constant 0 : i32
    return %arg0, %c0_i32 : i32, i32
  }
}

module attributes {stable_mosaic.version = 11 : i64} {
  func.func @_mm_affine_kernel(%arg0: i32, %arg1: memref<8x512xbf16, #tpu.memory_space<vmem>>, %arg2: memref<512x64xbf16, #tpu.memory_space<vmem>>, %arg3: memref<1x64xf32, #tpu.memory_space<vmem>>, %arg4: memref<1x64xf32, #tpu.memory_space<vmem>>, %arg5: memref<8x64xf32, #tpu.memory_space<vmem>>) attributes {dimension_semantics = [#tpu.dimension_semantics<parallel>], iteration_bounds = array<i64: 1>, scalar_prefetch = 0 : i64, scratch_operands = 0 : i64, tpu.core_type = #tpu.core_type<tc>, window_params = [{transform_indices = @transform_0, window_bounds = array<i64: 8, 512>}, {pipeline_mode = #tpu.pipeline_mode<synchronous>, transform_indices = @transform_1, window_bounds = array<i64: 512, 64>}, {pipeline_mode = #tpu.pipeline_mode<synchronous>, transform_indices = @transform_2, window_bounds = array<i64: 1, 64>}, {pipeline_mode = #tpu.pipeline_mode<synchronous>, transform_indices = @transform_3, window_bounds = array<i64: 1, 64>}, {transform_indices = @transform_4, window_bounds = array<i64: 8, 64>}]} {
    %c0 = arith.constant 0 : index
    %c0_0 = arith.constant 0 : index
    %0 = vector.load %arg1[%c0, %c0_0] : memref<8x512xbf16, #tpu.memory_space<vmem>>, vector<8x512xbf16>
    %c0_1 = arith.constant 0 : index
    %c0_2 = arith.constant 0 : index
    %1 = vector.load %arg2[%c0_1, %c0_2] : memref<512x64xbf16, #tpu.memory_space<vmem>>, vector<512x64xbf16>
    %cst = arith.constant dense<0.000000e+00> : vector<8x64xf32>
    %2 = tpu.matmul %0, %1, %cst {dimension_numbers = #tpu.dot_dimension_numbers<[1], [0], [0], [1], [0, 0, 1, 1], [], []>} : vector<8x512xbf16>, vector<512x64xbf16>, vector<8x64xf32> -> vector<8x64xf32>
    %c0_3 = arith.constant 0 : index
    %c0_4 = arith.constant 0 : index
    %3 = vector.load %arg3[%c0_3, %c0_4] : memref<1x64xf32, #tpu.memory_space<vmem>>, vector<1x64xf32>
    %4 = vector.broadcast %3 : vector<1x64xf32> to vector<8x64xf32>
    %5 = arith.mulf %2, %4 : vector<8x64xf32>
    %c0_5 = arith.constant 0 : index
    %c0_6 = arith.constant 0 : index
    %6 = vector.load %arg4[%c0_5, %c0_6] : memref<1x64xf32, #tpu.memory_space<vmem>>, vector<1x64xf32>
    %7 = vector.broadcast %6 : vector<1x64xf32> to vector<8x64xf32>
    %8 = arith.addf %5, %7 : vector<8x64xf32>
    %9 = arith.negf %8 : vector<8x64xf32>
    %10 = math.exp %9 : vector<8x64xf32>
    %cst_7 = arith.constant 1.000000e+00 : f32
    %11 = vector.broadcast %cst_7 : f32 to vector<8x64xf32>
    %12 = arith.addf %11, %10 : vector<8x64xf32>
    %13 = arith.divf %11, %12 : vector<8x64xf32>
    %c0_8 = arith.constant 0 : index
    %c0_9 = arith.constant 0 : index
    %14 = vector.load %arg5[%c0_8, %c0_9] : memref<8x64xf32, #tpu.memory_space<vmem>>, vector<8x64xf32>
    tpu.vector_store %arg5[%c0_8, %c0_9], %13 {strides = array<i32>} : memref<8x64xf32, #tpu.memory_space<vmem>>, vector<8x64xf32>,
    return
  }
  func.func @transform_0(%arg0: i32) -> (i32, i32) {
    %c0_i32 = arith.constant 0 : i32
    %c0_i32_0 = arith.constant 0 : i32
    return %arg0, %c0_i32 : i32, i32
  }
  func.func @transform_1(%arg0: i32) -> (i32, i32) {
    %c0_i32 = arith.constant 0 : i32
    %c0_i32_0 = arith.constant 0 : i32
    %c0_i32_1 = arith.constant 0 : i32
    return %c0_i32, %c0_i32_0 : i32, i32
  }
  func.func @transform_2(%arg0: i32) -> (i32, i32) {
    %c0_i32 = arith.constant 0 : i32
    %c0_i32_0 = arith.constant 0 : i32
    %c0_i32_1 = arith.constant 0 : i32
    return %c0_i32, %c0_i32_0 : i32, i32
  }
  func.func @transform_3(%arg0: i32) -> (i32, i32) {
    %c0_i32 = arith.constant 0 : i32
    %c0_i32_0 = arith.constant 0 : i32
    %c0_i32_1 = arith.constant 0 : i32
    return %c0_i32, %c0_i32_0 : i32, i32
  }
  func.func @transform_4(%arg0: i32) -> (i32, i32) {
    %c0_i32 = arith.constant 0 : i32
    %c0_i32_0 = arith.constant 0 : i32
    return %arg0, %c0_i32 : i32, i32
  }
}

module attributes {stable_mosaic.version = 11 : i64} {
  func.func @_mm_affine_kernel(%arg0: i32, %arg1: memref<8x64xbf16, #tpu.memory_space<vmem>>, %arg2: memref<64x32xbf16, #tpu.memory_space<vmem>>, %arg3: memref<1x32xf32, #tpu.memory_space<vmem>>, %arg4: memref<1x32xf32, #tpu.memory_space<vmem>>, %arg5: memref<8x32xf32, #tpu.memory_space<vmem>>) attributes {dimension_semantics = [#tpu.dimension_semantics<parallel>], iteration_bounds = array<i64: 1>, scalar_prefetch = 0 : i64, scratch_operands = 0 : i64, tpu.core_type = #tpu.core_type<tc>, window_params = [{transform_indices = @transform_0, window_bounds = array<i64: 8, 64>}, {pipeline_mode = #tpu.pipeline_mode<synchronous>, transform_indices = @transform_1, window_bounds = array<i64: 64, 32>}, {pipeline_mode = #tpu.pipeline_mode<synchronous>, transform_indices = @transform_2, window_bounds = array<i64: 1, 32>}, {pipeline_mode = #tpu.pipeline_mode<synchronous>, transform_indices = @transform_3, window_bounds = array<i64: 1, 32>}, {transform_indices = @transform_4, window_bounds = array<i64: 8, 32>}]} {
    %c0 = arith.constant 0 : index
    %c0_0 = arith.constant 0 : index
    %0 = vector.load %arg1[%c0, %c0_0] : memref<8x64xbf16, #tpu.memory_space<vmem>>, vector<8x64xbf16>
    %c0_1 = arith.constant 0 : index
    %c0_2 = arith.constant 0 : index
    %1 = vector.load %arg2[%c0_1, %c0_2] : memref<64x32xbf16, #tpu.memory_space<vmem>>, vector<64x32xbf16>
    %cst = arith.constant dense<0.000000e+00> : vector<8x32xf32>
    %2 = tpu.matmul %0, %1, %cst {dimension_numbers = #tpu.dot_dimension_numbers<[1], [0], [0], [1], [0, 0, 1, 1], [], []>} : vector<8x64xbf16>, vector<64x32xbf16>, vector<8x32xf32> -> vector<8x32xf32>
    %c0_3 = arith.constant 0 : index
    %c0_4 = arith.constant 0 : index
    %3 = vector.load %arg3[%c0_3, %c0_4] : memref<1x32xf32, #tpu.memory_space<vmem>>, vector<1x32xf32>
    %4 = vector.broadcast %3 : vector<1x32xf32> to vector<8x32xf32>
    %5 = arith.mulf %2, %4 : vector<8x32xf32>
    %c0_5 = arith.constant 0 : index
    %c0_6 = arith.constant 0 : index
    %6 = vector.load %arg4[%c0_5, %c0_6] : memref<1x32xf32, #tpu.memory_space<vmem>>, vector<1x32xf32>
    %7 = vector.broadcast %6 : vector<1x32xf32> to vector<8x32xf32>
    %8 = arith.addf %5, %7 : vector<8x32xf32>
    %9 = arith.negf %8 : vector<8x32xf32>
    %10 = math.exp %9 : vector<8x32xf32>
    %cst_7 = arith.constant 1.000000e+00 : f32
    %11 = vector.broadcast %cst_7 : f32 to vector<8x32xf32>
    %12 = arith.addf %11, %10 : vector<8x32xf32>
    %13 = arith.divf %11, %12 : vector<8x32xf32>
    %c0_8 = arith.constant 0 : index
    %c0_9 = arith.constant 0 : index
    %14 = vector.load %arg5[%c0_8, %c0_9] : memref<8x32xf32, #tpu.memory_space<vmem>>, vector<8x32xf32>
    tpu.vector_store %arg5[%c0_8, %c0_9], %13 {strides = array<i32>} : memref<8x32xf32, #tpu.memory_space<vmem>>, vector<8x32xf32>,
    return
  }
  func.func @transform_0(%arg0: i32) -> (i32, i32) {
    %c0_i32 = arith.constant 0 : i32
    %c0_i32_0 = arith.constant 0 : i32
    return %arg0, %c0_i32 : i32, i32
  }
  func.func @transform_1(%arg0: i32) -> (i32, i32) {
    %c0_i32 = arith.constant 0 : i32
    %c0_i32_0 = arith.constant 0 : i32
    %c0_i32_1 = arith.constant 0 : i32
    return %c0_i32, %c0_i32_0 : i32, i32
  }
  func.func @transform_2(%arg0: i32) -> (i32, i32) {
    %c0_i32 = arith.constant 0 : i32
    %c0_i32_0 = arith.constant 0 : i32
    %c0_i32_1 = arith.constant 0 : i32
    return %c0_i32, %c0_i32_0 : i32, i32
  }
  func.func @transform_3(%arg0: i32) -> (i32, i32) {
    %c0_i32 = arith.constant 0 : i32
    %c0_i32_0 = arith.constant 0 : i32
    %c0_i32_1 = arith.constant 0 : i32
    return %c0_i32, %c0_i32_0 : i32, i32
  }
  func.func @transform_4(%arg0: i32) -> (i32, i32) {
    %c0_i32 = arith.constant 0 : i32
    %c0_i32_0 = arith.constant 0 : i32
    return %arg0, %c0_i32 : i32, i32
  }
}

module attributes {stable_mosaic.version = 11 : i64} {
  func.func @_mm_affine_kernel(%arg0: i32, %arg1: memref<128x288xbf16, #tpu.memory_space<vmem>>, %arg2: memref<288x16xbf16, #tpu.memory_space<vmem>>, %arg3: memref<1x16xf32, #tpu.memory_space<vmem>>, %arg4: memref<1x16xf32, #tpu.memory_space<vmem>>, %arg5: memref<128x16xf32, #tpu.memory_space<vmem>>) attributes {dimension_semantics = [#tpu.dimension_semantics<parallel>], iteration_bounds = array<i64: 1>, scalar_prefetch = 0 : i64, scratch_operands = 0 : i64, tpu.core_type = #tpu.core_type<tc>, window_params = [{transform_indices = @transform_0, window_bounds = array<i64: 128, 288>}, {pipeline_mode = #tpu.pipeline_mode<synchronous>, transform_indices = @transform_1, window_bounds = array<i64: 288, 16>}, {pipeline_mode = #tpu.pipeline_mode<synchronous>, transform_indices = @transform_2, window_bounds = array<i64: 1, 16>}, {pipeline_mode = #tpu.pipeline_mode<synchronous>, transform_indices = @transform_3, window_bounds = array<i64: 1, 16>}, {transform_indices = @transform_4, window_bounds = array<i64: 128, 16>}]} {
    %c0 = arith.constant 0 : index
    %c0_0 = arith.constant 0 : index
    %0 = vector.load %arg1[%c0, %c0_0] : memref<128x288xbf16, #tpu.memory_space<vmem>>, vector<128x288xbf16>
    %c0_1 = arith.constant 0 : index
    %c0_2 = arith.constant 0 : index
    %1 = vector.load %arg2[%c0_1, %c0_2] : memref<288x16xbf16, #tpu.memory_space<vmem>>, vector<288x16xbf16>
    %cst = arith.constant dense<0.000000e+00> : vector<128x16xf32>
    %2 = tpu.matmul %0, %1, %cst {dimension_numbers = #tpu.dot_dimension_numbers<[1], [0], [0], [1], [0, 0, 1, 1], [], []>} : vector<128x288xbf16>, vector<288x16xbf16>, vector<128x16xf32> -> vector<128x16xf32>
    %c0_3 = arith.constant 0 : index
    %c0_4 = arith.constant 0 : index
    %3 = vector.load %arg3[%c0_3, %c0_4] : memref<1x16xf32, #tpu.memory_space<vmem>>, vector<1x16xf32>
    %4 = vector.broadcast %3 : vector<1x16xf32> to vector<128x16xf32>
    %5 = arith.mulf %2, %4 : vector<128x16xf32>
    %c0_5 = arith.constant 0 : index
    %c0_6 = arith.constant 0 : index
    %6 = vector.load %arg4[%c0_5, %c0_6] : memref<1x16xf32, #tpu.memory_space<vmem>>, vector<1x16xf32>
    %7 = vector.broadcast %6 : vector<1x16xf32> to vector<128x16xf32>
    %8 = arith.addf %5, %7 : vector<128x16xf32>
    %cst_7 = arith.constant 0.000000e+00 : f32
    %9 = vector.broadcast %cst_7 : f32 to vector<128x16xf32>
    %10 = arith.maximumf %8, %9 : vector<128x16xf32>
    %c0_8 = arith.constant 0 : index
    %c0_9 = arith.constant 0 : index
    %11 = vector.load %arg5[%c0_8, %c0_9] : memref<128x16xf32, #tpu.memory_space<vmem>>, vector<128x16xf32>
    tpu.vector_store %arg5[%c0_8, %c0_9], %10 {strides = array<i32>} : memref<128x16xf32, #tpu.memory_space<vmem>>, vector<128x16xf32>,
    return
  }
  func.func @transform_0(%arg0: i32) -> (i32, i32) {
    %c0_i32 = arith.constant 0 : i32
    %c0_i32_0 = arith.constant 0 : i32
    return %arg0, %c0_i32 : i32, i32
  }
  func.func @transform_1(%arg0: i32) -> (i32, i32) {
    %c0_i32 = arith.constant 0 : i32
    %c0_i32_0 = arith.constant 0 : i32
    %c0_i32_1 = arith.constant 0 : i32
    return %c0_i32, %c0_i32_0 : i32, i32
  }
  func.func @transform_2(%arg0: i32) -> (i32, i32) {
    %c0_i32 = arith.constant 0 : i32
    %c0_i32_0 = arith.constant 0 : i32
    %c0_i32_1 = arith.constant 0 : i32
    return %c0_i32, %c0_i32_0 : i32, i32
  }
  func.func @transform_3(%arg0: i32) -> (i32, i32) {
    %c0_i32 = arith.constant 0 : i32
    %c0_i32_0 = arith.constant 0 : i32
    %c0_i32_1 = arith.constant 0 : i32
    return %c0_i32, %c0_i32_0 : i32, i32
  }
  func.func @transform_4(%arg0: i32) -> (i32, i32) {
    %c0_i32 = arith.constant 0 : i32
    %c0_i32_0 = arith.constant 0 : i32
    return %arg0, %c0_i32 : i32, i32
  }
}

module attributes {stable_mosaic.version = 11 : i64} {
  func.func @_mm_affine_kernel(%arg0: i32, %arg1: memref<256x144xbf16, #tpu.memory_space<vmem>>, %arg2: memref<144x8xbf16, #tpu.memory_space<vmem>>, %arg3: memref<1x8xf32, #tpu.memory_space<vmem>>, %arg4: memref<1x8xf32, #tpu.memory_space<vmem>>, %arg5: memref<256x8xf32, #tpu.memory_space<vmem>>) attributes {dimension_semantics = [#tpu.dimension_semantics<parallel>], iteration_bounds = array<i64: 2>, scalar_prefetch = 0 : i64, scratch_operands = 0 : i64, tpu.core_type = #tpu.core_type<tc>, window_params = [{transform_indices = @transform_0, window_bounds = array<i64: 256, 144>}, {pipeline_mode = #tpu.pipeline_mode<synchronous>, transform_indices = @transform_1, window_bounds = array<i64: 144, 8>}, {pipeline_mode = #tpu.pipeline_mode<synchronous>, transform_indices = @transform_2, window_bounds = array<i64: 1, 8>}, {pipeline_mode = #tpu.pipeline_mode<synchronous>, transform_indices = @transform_3, window_bounds = array<i64: 1, 8>}, {transform_indices = @transform_4, window_bounds = array<i64: 256, 8>}]} {
    %c0 = arith.constant 0 : index
    %c0_0 = arith.constant 0 : index
    %0 = vector.load %arg1[%c0, %c0_0] : memref<256x144xbf16, #tpu.memory_space<vmem>>, vector<256x144xbf16>
    %c0_1 = arith.constant 0 : index
    %c0_2 = arith.constant 0 : index
    %1 = vector.load %arg2[%c0_1, %c0_2] : memref<144x8xbf16, #tpu.memory_space<vmem>>, vector<144x8xbf16>
    %cst = arith.constant dense<0.000000e+00> : vector<256x8xf32>
    %2 = tpu.matmul %0, %1, %cst {dimension_numbers = #tpu.dot_dimension_numbers<[1], [0], [0], [1], [0, 0, 1, 1], [], []>} : vector<256x144xbf16>, vector<144x8xbf16>, vector<256x8xf32> -> vector<256x8xf32>
    %c0_3 = arith.constant 0 : index
    %c0_4 = arith.constant 0 : index
    %3 = vector.load %arg3[%c0_3, %c0_4] : memref<1x8xf32, #tpu.memory_space<vmem>>, vector<1x8xf32>
    %4 = vector.broadcast %3 : vector<1x8xf32> to vector<256x8xf32>
    %5 = arith.mulf %2, %4 : vector<256x8xf32>
    %c0_5 = arith.constant 0 : index
    %c0_6 = arith.constant 0 : index
    %6 = vector.load %arg4[%c0_5, %c0_6] : memref<1x8xf32, #tpu.memory_space<vmem>>, vector<1x8xf32>
    %7 = vector.broadcast %6 : vector<1x8xf32> to vector<256x8xf32>
    %8 = arith.addf %5, %7 : vector<256x8xf32>
    %cst_7 = arith.constant 0.000000e+00 : f32
    %9 = vector.broadcast %cst_7 : f32 to vector<256x8xf32>
    %10 = arith.maximumf %8, %9 : vector<256x8xf32>
    %c0_8 = arith.constant 0 : index
    %c0_9 = arith.constant 0 : index
    %11 = vector.load %arg5[%c0_8, %c0_9] : memref<256x8xf32, #tpu.memory_space<vmem>>, vector<256x8xf32>
    tpu.vector_store %arg5[%c0_8, %c0_9], %10 {strides = array<i32>} : memref<256x8xf32, #tpu.memory_space<vmem>>, vector<256x8xf32>,
    return
  }
  func.func @transform_0(%arg0: i32) -> (i32, i32) {
    %c0_i32 = arith.constant 0 : i32
    %c0_i32_0 = arith.constant 0 : i32
    return %arg0, %c0_i32 : i32, i32
  }
  func.func @transform_1(%arg0: i32) -> (i32, i32) {
    %c0_i32 = arith.constant 0 : i32
    %c0_i32_0 = arith.constant 0 : i32
    %c0_i32_1 = arith.constant 0 : i32
    return %c0_i32, %c0_i32_0 : i32, i32
  }
  func.func @transform_2(%arg0: i32) -> (i32, i32) {
    %c0_i32 = arith.constant 0 : i32
    %c0_i32_0 = arith.constant 0 : i32
    %c0_i32_1 = arith.constant 0 : i32
    return %c0_i32, %c0_i32_0 : i32, i32
  }
  func.func @transform_3(%arg0: i32) -> (i32, i32) {
    %c0_i32 = arith.constant 0 : i32
    %c0_i32_0 = arith.constant 0 : i32
    %c0_i32_1 = arith.constant 0 : i32
    return %c0_i32, %c0_i32_0 : i32, i32
  }
  func.func @transform_4(%arg0: i32) -> (i32, i32) {
    %c0_i32 = arith.constant 0 : i32
    %c0_i32_0 = arith.constant 0 : i32
    return %arg0, %c0_i32 : i32, i32
  }
}

module attributes {stable_mosaic.version = 11 : i64} {
  func.func @_mm_affine_kernel(%arg0: i32, %arg1: memref<256x72xbf16, #tpu.memory_space<vmem>>, %arg2: memref<72x4xbf16, #tpu.memory_space<vmem>>, %arg3: memref<1x4xf32, #tpu.memory_space<vmem>>, %arg4: memref<1x4xf32, #tpu.memory_space<vmem>>, %arg5: memref<256x4xf32, #tpu.memory_space<vmem>>) attributes {dimension_semantics = [#tpu.dimension_semantics<parallel>], iteration_bounds = array<i64: 8>, scalar_prefetch = 0 : i64, scratch_operands = 0 : i64, tpu.core_type = #tpu.core_type<tc>, window_params = [{transform_indices = @transform_0, window_bounds = array<i64: 256, 72>}, {pipeline_mode = #tpu.pipeline_mode<synchronous>, transform_indices = @transform_1, window_bounds = array<i64: 72, 4>}, {pipeline_mode = #tpu.pipeline_mode<synchronous>, transform_indices = @transform_2, window_bounds = array<i64: 1, 4>}, {pipeline_mode = #tpu.pipeline_mode<synchronous>, transform_indices = @transform_3, window_bounds = array<i64: 1, 4>}, {transform_indices = @transform_4, window_bounds = array<i64: 256, 4>}]} {
    %c0 = arith.constant 0 : index
    %c0_0 = arith.constant 0 : index
    %0 = vector.load %arg1[%c0, %c0_0] : memref<256x72xbf16, #tpu.memory_space<vmem>>, vector<256x72xbf16>
    %c0_1 = arith.constant 0 : index
    %c0_2 = arith.constant 0 : index
    %1 = vector.load %arg2[%c0_1, %c0_2] : memref<72x4xbf16, #tpu.memory_space<vmem>>, vector<72x4xbf16>
    %cst = arith.constant dense<0.000000e+00> : vector<256x4xf32>
    %2 = tpu.matmul %0, %1, %cst {dimension_numbers = #tpu.dot_dimension_numbers<[1], [0], [0], [1], [0, 0, 1, 1], [], []>} : vector<256x72xbf16>, vector<72x4xbf16>, vector<256x4xf32> -> vector<256x4xf32>
    %c0_3 = arith.constant 0 : index
    %c0_4 = arith.constant 0 : index
    %3 = vector.load %arg3[%c0_3, %c0_4] : memref<1x4xf32, #tpu.memory_space<vmem>>, vector<1x4xf32>
    %4 = vector.broadcast %3 : vector<1x4xf32> to vector<256x4xf32>
    %5 = arith.mulf %2, %4 : vector<256x4xf32>
    %c0_5 = arith.constant 0 : index
    %c0_6 = arith.constant 0 : index
    %6 = vector.load %arg4[%c0_5, %c0_6] : memref<1x4xf32, #tpu.memory_space<vmem>>, vector<1x4xf32>
    %7 = vector.broadcast %6 : vector<1x4xf32> to vector<256x4xf32>
    %8 = arith.addf %5, %7 : vector<256x4xf32>
    %cst_7 = arith.constant 0.000000e+00 : f32
    %9 = vector.broadcast %cst_7 : f32 to vector<256x4xf32>
    %10 = arith.maximumf %8, %9 : vector<256x4xf32>
    %c0_8 = arith.constant 0 : index
    %c0_9 = arith.constant 0 : index
    %11 = vector.load %arg5[%c0_8, %c0_9] : memref<256x4xf32, #tpu.memory_space<vmem>>, vector<256x4xf32>
    tpu.vector_store %arg5[%c0_8, %c0_9], %10 {strides = array<i32>} : memref<256x4xf32, #tpu.memory_space<vmem>>, vector<256x4xf32>,
    return
  }
  func.func @transform_0(%arg0: i32) -> (i32, i32) {
    %c0_i32 = arith.constant 0 : i32
    %c0_i32_0 = arith.constant 0 : i32
    return %arg0, %c0_i32 : i32, i32
  }
  func.func @transform_1(%arg0: i32) -> (i32, i32) {
    %c0_i32 = arith.constant 0 : i32
    %c0_i32_0 = arith.constant 0 : i32
    %c0_i32_1 = arith.constant 0 : i32
    return %c0_i32, %c0_i32_0 : i32, i32
  }
  func.func @transform_2(%arg0: i32) -> (i32, i32) {
    %c0_i32 = arith.constant 0 : i32
    %c0_i32_0 = arith.constant 0 : i32
    %c0_i32_1 = arith.constant 0 : i32
    return %c0_i32, %c0_i32_0 : i32, i32
  }
  func.func @transform_3(%arg0: i32) -> (i32, i32) {
    %c0_i32 = arith.constant 0 : i32
    %c0_i32_0 = arith.constant 0 : i32
    %c0_i32_1 = arith.constant 0 : i32
    return %c0_i32, %c0_i32_0 : i32, i32
  }
  func.func @transform_4(%arg0: i32) -> (i32, i32) {
    %c0_i32 = arith.constant 0 : i32
    %c0_i32_0 = arith.constant 0 : i32
    return %arg0, %c0_i32 : i32, i32
  }
}

</mosaic_0001>

<llo_original>
// kernel: map_branch_forward.8
$region0: #{map_branch_forward.8}
  #allocation0 [shape = 'u32[]', space=smem, size = 0x4, offset = 0x4, fixed_abs, tag = 'smem constant byte address 0x4 - core index']
  #allocation1 [shape = 'u32[72,128]{1,0:T(1,128)}', space=vmem, size = 0x9000, scoped, tag = 'internal scratch']
  %s0 = inlined_call_operand.vmem [shape: bf16[2048,36], index: 0, kind: input, shape index: {}]
  %s1 = inlined_call_operand.vmem [shape: bf16[36,8], index: 1, kind: input, shape index: {}]
  %s2 = inlined_call_operand.vmem [shape: f32[1,8], index: 2, kind: input, shape index: {}]
  %s3 = inlined_call_operand.vmem [shape: f32[1,8], index: 3, kind: input, shape index: {}]
  %s4 = inlined_call_operand.vmem [shape: f32[2048,8], index: 4, kind: output, shape index: {}]
  %s5 = sld [smem:[#allocation0]]
  $region49: #{map_branch_forward.8} parent=0
    _
  %s7 = ssub.s32 1, %s5
  %s8 = scalar_select 0, %s7, %s5
  loop: start=0, step=1, limit=10
  $region2: #{map_branch_forward.8} parent=0 // loop_pre_header
    _
  $region3: #{map_branch_forward.8} parent=0 // loop_header
    %s10 = sphi 0, %s14
    %p11 = scmp.ge.s32.totalorder %s10, 10
    %s20 = sphi 0, %s22
    %s23 = sphi 0, %s20
    %s24 = sphi 0, %s23
    %s40 = sphi 0, %s24
    %s44 = sphi 0, %s44
    %s46 = sphi 0, %s44
    %s47 = sphi 0, %s46
    %s61 = sphi 0, %s47
    %s65 = sphi 0, %s65
    %s67 = sphi 0, %s65
    %s68 = sphi 0, %s67
    %s82 = sphi 0, %s68
    %s86 = sphi 0, %s86
    %s88 = sphi 0, %s86
    %s89 = sphi 0, %s88
    %s103 = sphi 0, %s89
    %s109 = sphi 0, %s111
    %s112 = sphi 0, %s109
    %s113 = sphi 0, %s112
    %s129 = sphi 0, %s113
  $region4: #{map_branch_forward.8} parent=0 // loop_header_branch
    %13 = sbr.rel (%p11) target = $region8
  $region5: #{map_branch_forward.8} parent=0 // loop_body
    %s15 = ssub.s32 %s10, 1
    %s16 = ssub.s32 %s10, 2
    %s17 = sadd.s32 %s10, 1
    %s18 = ssub.s32 %s10, %s17
    %p19 = scmp.eq.s32.totalorder %s18, 0
    %s21 = sadd.s32 %s20, 1
    %s22 = scalar_select %p19, %s20, %s21
    %p25 = pneg %p19
    %p26 = scmp.eq.s32.totalorder %s10, 7
    %p27 = por %p25, %p26
    %p28 = scmp.ne.s32.totalorder %s20, %s23
    %p29 = scmp.eq.s32.totalorder %s10, 0
    %p30 = por %p28, %p29
    %p31 = scmp.ne.s32.totalorder %s20, %s23
    %p32 = scmp.eq.s32.totalorder %s15, 7
    %p33 = por %p31, %p32
    %p34 = scmp.ne.s32.totalorder %s23, %s24
    %p35 = scmp.eq.s32.totalorder %s15, 0
    %p36 = por %p34, %p35
    %p37 = scmp.ne.s32.totalorder %s23, %s24
    %p38 = scmp.eq.s32.totalorder %s16, 7
    %p39 = por %p37, %p38
    %p41 = scmp.ne.s32.totalorder %s24, %s40
    %p42 = scmp.eq.s32.totalorder %s16, 0
    %p43 = por %p41, %p42
    %s45 = sadd.s32 %s44, 1
    %p48 = scmp.eq.s32.totalorder %s10, 7
    %p49 = scmp.ne.s32.totalorder %s44, %s46
    %p50 = scmp.eq.s32.totalorder %s10, 0
    %p51 = por %p49, %p50
    %p52 = scmp.ne.s32.totalorder %s44, %s46
    %p53 = scmp.eq.s32.totalorder %s15, 7
    %p54 = por %p52, %p53
    %p55 = scmp.ne.s32.totalorder %s46, %s47
    %p56 = scmp.eq.s32.totalorder %s15, 0
    %p57 = por %p55, %p56
    %p58 = scmp.ne.s32.totalorder %s46, %s47
    %p59 = scmp.eq.s32.totalorder %s16, 7
    %p60 = por %p58, %p59
    %p62 = scmp.ne.s32.totalorder %s47, %s61
    %p63 = scmp.eq.s32.totalorder %s16, 0
    %p64 = por %p62, %p63
    %s66 = sadd.s32 %s65, 1
    %p69 = scmp.eq.s32.totalorder %s10, 7
    %p70 = scmp.ne.s32.totalorder %s65, %s67
    %p71 = scmp.eq.s32.totalorder %s10, 0
    %p72 = por %p70, %p71
    %p73 = scmp.ne.s32.totalorder %s65, %s67
    %p74 = scmp.eq.s32.totalorder %s15, 7
    %p75 = por %p73, %p74
    %p76 = scmp.ne.s32.totalorder %s67, %s68
    %p77 = scmp.eq.s32.totalorder %s15, 0
    %p78 = por %p76, %p77
    %p79 = scmp.ne.s32.totalorder %s67, %s68
    %p80 = scmp.eq.s32.totalorder %s16, 7
    %p81 = por %p79, %p80
    %p83 = scmp.ne.s32.totalorder %s68, %s82
    %p84 = scmp.eq.s32.totalorder %s16, 0
    %p85 = por %p83, %p84
    %s87 = sadd.s32 %s86, 1
    %p90 = scmp.eq.s32.totalorder %s10, 7
    %p91 = scmp.ne.s32.totalorder %s86, %s88
    %p92 = scmp.eq.s32.totalorder %s10, 0
    %p93 = por %p91, %p92
    %p94 = scmp.ne.s32.totalorder %s86, %s88
    %p95 = scmp.eq.s32.totalorder %s15, 7
    %p96 = por %p94, %p95
    %p97 = scmp.ne.s32.totalorder %s88, %s89
    %p98 = scmp.eq.s32.totalorder %s15, 0
    %p99 = por %p97, %p98
    %p100 = scmp.ne.s32.totalorder %s88, %s89
    %p101 = scmp.eq.s32.totalorder %s16, 7
    %p102 = por %p100, %p101
    %p104 = scmp.ne.s32.totalorder %s89, %s103
    %p105 = scmp.eq.s32.totalorder %s16, 0
    %p106 = por %p104, %p105
    %s107 = ssub.s32 %s10, %s17
    %p108 = scmp.eq.s32.totalorder %s107, 0
    %s110 = sadd.s32 %s109, 1
    %s111 = scalar_select %p108, %s109, %s110
    %p114 = pneg %p108
    %p115 = scmp.eq.s32.totalorder %s10, 7
    %p116 = por %p114, %p115
    %p117 = scmp.ne.s32.totalorder %s109, %s112
    %p118 = scmp.eq.s32.totalorder %s10, 0
    %p119 = por %p117, %p118
    %p120 = scmp.ne.s32.totalorder %s109, %s112
    %p121 = scmp.eq.s32.totalorder %s15, 7
    %p122 = por %p120, %p121
    %p123 = scmp.ne.s32.totalorder %s112, %s113
    %p124 = scmp.eq.s32.totalorder %s15, 0
    %p125 = por %p123, %p124
    %p126 = scmp.ne.s32.totalorder %s112, %s113
    %p127 = scmp.eq.s32.totalorder %s16, 7
    %p128 = por %p126, %p127
    %p130 = scmp.ne.s32.totalorder %s113, %s129
    %p131 = scmp.eq.s32.totalorder %s16, 0
    %p132 = por %p130, %p131
    %p133 = scmp.le.s32.totalorder 1, %s10
    %p134 = scmp.lt.s32.totalorder %s10, 9
    %p135 = pnand %p133, %p134
    %p136 = pneg %p135
    // Predicated region
    $region9: #{map_branch_forward.8} parent=5 // pred_check
      _
    $region10: #{map_branch_forward.8} parent=5 // pred_check_branch
      %138 = sbr.rel (%p135) target = $region12
    $region11: #{map_branch_forward.8} parent=5 // pred_region
      %s139 = ssub.s32 %s10, 1
      // Predicated region
      $region13: #{map_branch_forward.8} parent=11 // pred_check
        %p140 = pneg %p57
      $region14: #{map_branch_forward.8} parent=11 // pred_check_branch
        %142 = sbr.rel (%p140) target = $region16
      $region15: #{map_branch_forward.8} parent=11 // pred_region
        _
      $region16: #{map_branch_forward.8} parent=11 // pred_fallthru
        _
      // Predicated region
      $region17: #{map_branch_forward.8} parent=11 // pred_check
        %p143 = pneg %p78
      $region18: #{map_branch_forward.8} parent=11 // pred_check_branch
        %145 = sbr.rel (%p143) target = $region20
      $region19: #{map_branch_forward.8} parent=11 // pred_region
        _
      $region20: #{map_branch_forward.8} parent=11 // pred_fallthru
        _
      // Predicated region
      $region21: #{map_branch_forward.8} parent=11 // pred_check
        %p146 = pneg %p99
      $region22: #{map_branch_forward.8} parent=11 // pred_check_branch
        %148 = sbr.rel (%p146) target = $region24
      $region23: #{map_branch_forward.8} parent=11 // pred_region
        _
      $region24: #{map_branch_forward.8} parent=11 // pred_fallthru
        _
    $region12: #{map_branch_forward.8} parent=5 // pred_fallthru
      _
    %p149 = scmp.lt.s32.totalorder %s10, 8
    // Predicated region
    $region25: #{map_branch_forward.8} parent=5 // pred_check
      %p150 = pneg %p149
    $region26: #{map_branch_forward.8} parent=5 // pred_check_branch
      %152 = sbr.rel (%p150) target = $region28
    $region27: #{map_branch_forward.8} parent=5 // pred_region
      // Predicated region
      $region29: #{map_branch_forward.8} parent=27 // pred_check
        %p153 = pneg %p30
      $region30: #{map_branch_forward.8} parent=27 // pred_check_branch
        %155 = sbr.rel (%p153) target = $region32
      $region31: #{map_branch_forward.8} parent=27 // pred_region
        %s156 = smul.u32 32, %s10
        %p157 = scmp.lt.s32.totalorder %s156, 255
        %s158 = scalar_select %p157, %s156, 255
        %s159 = smul.addr %s158, 4
        %s160 = scalar_lea.vmem %s0, %s159
        %s161 = smul.u32 32, %s10
      $region32: #{map_branch_forward.8} parent=27 // pred_fallthru
        _
    $region28: #{map_branch_forward.8} parent=5 // pred_fallthru
      _
    %p162 = scmp.le.s32.totalorder 1, %s10
    %p163 = scmp.lt.s32.totalorder %s10, 9
    %p164 = pnand %p162, %p163
    %p165 = pneg %p164
    // Predicated region
    $region33: #{map_branch_forward.8} parent=5 // pred_check
      _
    $region34: #{map_branch_forward.8} parent=5 // pred_check_branch
      %167 = sbr.rel (%p164) target = $region36
    $region35: #{map_branch_forward.8} parent=5 // pred_region
      %s168 = ssub.s32 %s10, 1
      %s169 = smul.u32 32, %s15
      %p170 = scmp.lt.s32.totalorder %s169, 255
      %s171 = scalar_select %p170, %s169, 255
      %s172 = smul.addr %s171, 4
      %s173 = scalar_lea.vmem %s0, %s172
      %p174 = pneg %p36
      %p175 = pneg %p33
      %p176 = pneg %p57
      %p177 = pneg %p54
      %p178 = pneg %p78
      %p179 = pneg %p75
      %p180 = pneg %p99
      %p181 = pneg %p96
      %p182 = pneg %p125
      %p183 = pneg %p122
      %s184 = smul.u32 32, %s15
      %p185 = scmp.lt.s32.totalorder %s184, 255
      %s186 = scalar_select %p185, %s184, 255
      %s187 = smul.addr %s186, 8
      %s188 = scalar_lea.vmem %s4, %s187
      %s189 = smul.u32 32, %s15
      %p190 = scmp.lt.s32.totalorder %s189, 255
      %s191 = scalar_select %p190, %s189, 255
      %s192 = smul.addr %s191, 4
      %s193 = scalar_lea.vmem %s0, %s192
      %s194 = smul.u32 32, %s15
      %s195 = smul.u32 32, %s15
      %p196 = scmp.lt.s32.totalorder %s195, 255
      %s197 = scalar_select %p196, %s195, 255
      %s198 = smul.addr %s197, 8
      %s199 = scalar_lea.vmem %s4, %s198
      %s200 = smul.u32 32, %s15
      %v202 = vld [vmem:[%s193] sm:$0xf]
      %v203 = vld [vmem:[%s193 + $0x4] sm:$0xf]
      %v204 = vld [vmem:[%s193 + $0x8] sm:$0xf]
      %v205 = vld [vmem:[%s193 + $0xc] sm:$0xf]
      %v206 = vld [vmem:[%s193 + $0x10] sm:$0xf]
      %v207 = vld [vmem:[%s193 + $0x14] sm:$0xf]
      %v208 = vld [vmem:[%s193 + $0x18] sm:$0xf]
      %v209 = vld [vmem:[%s193 + $0x1c] sm:$0xf]
      %v210 = vld [vmem:[%s193 + $0x20] sm:$0xf]
      %v211 = vld [vmem:[%s193 + $0x24] sm:$0xf]
      %v212 = vld [vmem:[%s193 + $0x28] sm:$0xf]
      %v213 = vld [vmem:[%s193 + $0x2c] sm:$0xf]
      %v214 = vld [vmem:[%s193 + $0x30] sm:$0xf]
      %v215 = vld [vmem:[%s193 + $0x34] sm:$0xf]
      %v216 = vld [vmem:[%s193 + $0x38] sm:$0xf]
      %v217 = vld [vmem:[%s193 + $0x3c] sm:$0xf]
      %v218 = vld [vmem:[%s193 + $0x40] sm:$0xf]
      %v219 = vld [vmem:[%s193 + $0x44] sm:$0xf]
      %v220 = vld [vmem:[%s193 + $0x48] sm:$0xf]
      %v221 = vld [vmem:[%s193 + $0x4c] sm:$0xf]
      %v222 = vld [vmem:[%s193 + $0x50] sm:$0xf]
      %v223 = vld [vmem:[%s193 + $0x54] sm:$0xf]
      %v224 = vld [vmem:[%s193 + $0x58] sm:$0xf]
      %v225 = vld [vmem:[%s193 + $0x5c] sm:$0xf]
      %v226 = vld [vmem:[%s193 + $0x60] sm:$0xf]
      %v227 = vld [vmem:[%s193 + $0x64] sm:$0xf]
      %v228 = vld [vmem:[%s193 + $0x68] sm:$0xf]
      %v229 = vld [vmem:[%s193 + $0x6c] sm:$0xf]
      %v230 = vld [vmem:[%s193 + $0x70] sm:$0xf]
      %v231 = vld [vmem:[%s193 + $0x74] sm:$0xf]
      %v232 = vld [vmem:[%s193 + $0x78] sm:$0xf]
      %v233 = vld [vmem:[%s193 + $0x7c] sm:$0xf]
      %v234 = vld [vmem:[%s1] sm:$0xf]
      %v235 = vld [vmem:[%s1 + $0x4] sm:$0xf]
      %v236 = vld [vmem:[%s1 + $0x8] sm:$0xf]
      %v237 = vld [vmem:[%s1 + $0xc] sm:$0xf]
      %v238 = vld [vmem:[%s1 + $0x10] sm:$0x3]
      %v271 = vunpack.c.l.b16 %v202
      %v272 = vunpack.c.l.b16 %v203
      %v273 = vunpack.c.l.b16 %v204
      %v274 = vunpack.c.l.b16 %v205
      %v275 = vunpack.c.l.b16 %v206
      %v276 = vunpack.c.l.b16 %v207
      %v277 = vunpack.c.l.b16 %v208
      %v278 = vunpack.c.l.b16 %v209
      %v279 = vunpack.c.l.b16 %v210
      %v280 = vunpack.c.l.b16 %v211
      %v281 = vunpack.c.l.b16 %v212
      %v282 = vunpack.c.l.b16 %v213
      %v283 = vunpack.c.l.b16 %v214
      %v284 = vunpack.c.l.b16 %v215
      %v285 = vunpack.c.l.b16 %v216
      %v286 = vunpack.c.l.b16 %v217
      %v287 = vunpack.c.l.b16 %v218
      %v288 = vunpack.c.l.b16 %v219
      %v289 = vunpack.c.l.b16 %v220
      %v290 = vunpack.c.l.b16 %v221
      %v291 = vunpack.c.l.b16 %v222
      %v292 = vunpack.c.l.b16 %v223
      %v293 = vunpack.c.l.b16 %v224
      %v294 = vunpack.c.l.b16 %v225
      %v295 = vunpack.c.l.b16 %v226
      %v296 = vunpack.c.l.b16 %v227
      %v297 = vunpack.c.l.b16 %v228
      %v298 = vunpack.c.l.b16 %v229
      %v299 = vunpack.c.l.b16 %v230
      %v300 = vunpack.c.l.b16 %v231
      %v301 = vunpack.c.l.b16 %v232
      %v302 = vunpack.c.l.b16 %v233
      %v303 = vpack.c.b16 %v272, %v271
      %v304 = vpack.c.b16 %v274, %v273
      %v305 = vpack.c.b16 %v276, %v275
      %v306 = vpack.c.b16 %v278, %v277
      %v307 = vpack.c.b16 %v280, %v279
      %v308 = vpack.c.b16 %v282, %v281
      %v309 = vpack.c.b16 %v284, %v283
      %v310 = vpack.c.b16 %v286, %v285
      %v311 = vpack.c.b16 %v288, %v287
      %v312 = vpack.c.b16 %v290, %v289
      %v313 = vpack.c.b16 %v292, %v291
      %v314 = vpack.c.b16 %v294, %v293
      %v315 = vpack.c.b16 %v296, %v295
      %v316 = vpack.c.b16 %v298, %v297
      %v317 = vpack.c.b16 %v300, %v299
      %v318 = vpack.c.b16 %v302, %v301
      %v324 = vunpack.c.l.b16 %v234
      %v325 = vunpack.c.l.b16 %v235
      %v326 = vunpack.c.l.b16 %v236
      %v327 = vunpack.c.l.b16 %v237
      %v328 = vunpack.c.l.b16 %v238
      %v329 = vpack.c.b16 %v325, %v324
      %v330 = vpack.c.b16 %v327, %v326
      %v331 = vpack.c.b16 %v328, %v328
      %vm334 = vcmask 293888
      %v336 = vsel %vm334, %v303, 0
      %v339 = vsel %vm334, %v304, 0
      %v342 = vsel %vm334, %v305, 0
      %v345 = vsel %vm334, %v306, 0
      %v348 = vsel %vm334, %v307, 0
      %v351 = vsel %vm334, %v308, 0
      %v354 = vsel %vm334, %v309, 0
      %v357 = vsel %vm334, %v310, 0
      %v360 = vsel %vm334, %v311, 0
      %v363 = vsel %vm334, %v312, 0
      %v366 = vsel %vm334, %v313, 0
      %v369 = vsel %vm334, %v314, 0
      %v372 = vsel %vm334, %v315, 0
      %v375 = vsel %vm334, %v316, 0
      %v378 = vsel %vm334, %v317, 0
      %v381 = vsel %vm334, %v318, 0
      %vm383 = vcmask 1041408
      %v385 = vsel %vm383, %v331, 0
      %387 = vmatpush.bf16.msra.mxu0 0
      %388 = vmatpush.bf16.msra.mxu0 0
      %389 = vmatpush.bf16.msra.mxu0 0
      %390 = vmatpush.bf16.msra.mxu0 0
      %391 = vmatpush.bf16.msra.mxu0 0
      %392 = vmatpush.bf16.msra.mxu0 %v385
      %393 = vmatpush.bf16.msra.mxu0 %v330
      %394 = vmatpush.bf16.msra.mxu0 %v329
      %395 = vmatmul.bf16.gmra.mxu0 %v336
      %v396 = vpop.f32.mrf.mxu0
      %v397 = vadd.f32 0.0, %v396
      %v398 = vpop.f32.mrf.mxu0
      %v399 = vadd.f32 0.0, %v398
      %400 = vmatmul.bf16.gmra.mxu0 %v339
      %v401 = vpop.f32.mrf.mxu0
      %v402 = vadd.f32 0.0, %v401
      %v403 = vpop.f32.mrf.mxu0
      %v404 = vadd.f32 0.0, %v403
      %405 = vmatmul.bf16.gmra.mxu0 %v342
      %v406 = vpop.f32.mrf.mxu0
      %v407 = vadd.f32 0.0, %v406
      %v408 = vpop.f32.mrf.mxu0
      %v409 = vadd.f32 0.0, %v408
      %410 = vmatmul.bf16.gmra.mxu0 %v345
      %v411 = vpop.f32.mrf.mxu0
      %v412 = vadd.f32 0.0, %v411
      %v413 = vpop.f32.mrf.mxu0
      %v414 = vadd.f32 0.0, %v413
      %415 = vmatmul.bf16.gmra.mxu0 %v348
      %v416 = vpop.f32.mrf.mxu0
      %v417 = vadd.f32 0.0, %v416
      %v418 = vpop.f32.mrf.mxu0
      %v419 = vadd.f32 0.0, %v418
      %420 = vmatmul.bf16.gmra.mxu0 %v351
      %v421 = vpop.f32.mrf.mxu0
      %v422 = vadd.f32 0.0, %v421
      %v423 = vpop.f32.mrf.mxu0
      %v424 = vadd.f32 0.0, %v423
      %425 = vmatmul.bf16.gmra.mxu0 %v354
      %v426 = vpop.f32.mrf.mxu0
      %v427 = vadd.f32 0.0, %v426
      %v428 = vpop.f32.mrf.mxu0
      %v429 = vadd.f32 0.0, %v428
      %430 = vmatmul.bf16.gmra.mxu0 %v357
      %v431 = vpop.f32.mrf.mxu0
      %v432 = vadd.f32 0.0, %v431
      %v433 = vpop.f32.mrf.mxu0
      %v434 = vadd.f32 0.0, %v433
      %435 = vmatmul.bf16.gmra.mxu0 %v360
      %v436 = vpop.f32.mrf.mxu0
      %v437 = vadd.f32 0.0, %v436
      %v438 = vpop.f32.mrf.mxu0
      %v439 = vadd.f32 0.0, %v438
      %440 = vmatmul.bf16.gmra.mxu0 %v363
      %v441 = vpop.f32.mrf.mxu0
      %v442 = vadd.f32 0.0, %v441
      %v443 = vpop.f32.mrf.mxu0
      %v444 = vadd.f32 0.0, %v443
      %445 = vmatmul.bf16.gmra.mxu0 %v366
      %v446 = vpop.f32.mrf.mxu0
      %v447 = vadd.f32 0.0, %v446
      %v448 = vpop.f32.mrf.mxu0
      %v449 = vadd.f32 0.0, %v448
      %450 = vmatmul.bf16.gmra.mxu0 %v369
      %v451 = vpop.f32.mrf.mxu0
      %v452 = vadd.f32 0.0, %v451
      %v453 = vpop.f32.mrf.mxu0
      %v454 = vadd.f32 0.0, %v453
      %455 = vmatmul.bf16.gmra.mxu0 %v372
      %v456 = vpop.f32.mrf.mxu0
      %v457 = vadd.f32 0.0, %v456
      %v458 = vpop.f32.mrf.mxu0
      %v459 = vadd.f32 0.0, %v458
      %460 = vmatmul.bf16.gmra.mxu0 %v375
      %v461 = vpop.f32.mrf.mxu0
      %v462 = vadd.f32 0.0, %v461
      %v463 = vpop.f32.mrf.mxu0
      %v464 = vadd.f32 0.0, %v463
      %465 = vmatmul.bf16.gmra.mxu0 %v378
      %v466 = vpop.f32.mrf.mxu0
      %v467 = vadd.f32 0.0, %v466
      %v468 = vpop.f32.mrf.mxu0
      %v469 = vadd.f32 0.0, %v468
      %470 = vmatmul.bf16.gmra.mxu0 %v381
      %v471 = vpop.f32.mrf.mxu0
      %v472 = vadd.f32 0.0, %v471
      %v473 = vpop.f32.mrf.mxu0
      %v474 = vadd.f32 0.0, %v473
      %475 = vdwg.mxu0
      %v476 = vld [vmem:[%s2] sm:$0x1]
      %v478 = vperm.slane %v476, 0
      %v480 = vmul.f32 %v397, %v478
      %v481 = vmul.f32 %v399, %v478
      %v482 = vmul.f32 %v402, %v478
      %v483 = vmul.f32 %v404, %v478
      %v484 = vmul.f32 %v407, %v478
      %v485 = vmul.f32 %v409, %v478
      %v486 = vmul.f32 %v412, %v478
      %v487 = vmul.f32 %v414, %v478
      %v488 = vmul.f32 %v417, %v478
      %v489 = vmul.f32 %v419, %v478
      %v490 = vmul.f32 %v422, %v478
      %v491 = vmul.f32 %v424, %v478
      %v492 = vmul.f32 %v427, %v478
      %v493 = vmul.f32 %v429, %v478
      %v494 = vmul.f32 %v432, %v478
      %v495 = vmul.f32 %v434, %v478
      %v496 = vmul.f32 %v437, %v478
      %v497 = vmul.f32 %v439, %v478
      %v498 = vmul.f32 %v442, %v478
      %v499 = vmul.f32 %v444, %v478
      %v500 = vmul.f32 %v447, %v478
      %v501 = vmul.f32 %v449, %v478
      %v502 = vmul.f32 %v452, %v478
      %v503 = vmul.f32 %v454, %v478
      %v504 = vmul.f32 %v457, %v478
      %v505 = vmul.f32 %v459, %v478
      %v506 = vmul.f32 %v462, %v478
      %v507 = vmul.f32 %v464, %v478
      %v508 = vmul.f32 %v467, %v478
      %v509 = vmul.f32 %v469, %v478
      %v510 = vmul.f32 %v472, %v478
      %v511 = vmul.f32 %v474, %v478
      %v512 = vld [vmem:[%s3] sm:$0x1]
      %v514 = vperm.slane %v512, 0
      %v516 = vadd.f32 %v480, %v514
      %v517 = vadd.f32 %v481, %v514
      %v518 = vadd.f32 %v482, %v514
      %v519 = vadd.f32 %v483, %v514
      %v520 = vadd.f32 %v484, %v514
      %v521 = vadd.f32 %v485, %v514
      %v522 = vadd.f32 %v486, %v514
      %v523 = vadd.f32 %v487, %v514
      %v524 = vadd.f32 %v488, %v514
      %v525 = vadd.f32 %v489, %v514
      %v526 = vadd.f32 %v490, %v514
      %v527 = vadd.f32 %v491, %v514
      %v528 = vadd.f32 %v492, %v514
      %v529 = vadd.f32 %v493, %v514
      %v530 = vadd.f32 %v494, %v514
      %v531 = vadd.f32 %v495, %v514
      %v532 = vadd.f32 %v496, %v514
      %v533 = vadd.f32 %v497, %v514
      %v534 = vadd.f32 %v498, %v514
      %v535 = vadd.f32 %v499, %v514
      %v536 = vadd.f32 %v500, %v514
      %v537 = vadd.f32 %v501, %v514
      %v538 = vadd.f32 %v502, %v514
      %v539 = vadd.f32 %v503, %v514
      %v540 = vadd.f32 %v504, %v514
      %v541 = vadd.f32 %v505, %v514
      %v542 = vadd.f32 %v506, %v514
      %v543 = vadd.f32 %v507, %v514
      %v544 = vadd.f32 %v508, %v514
      %v545 = vadd.f32 %v509, %v514
      %v546 = vadd.f32 %v510, %v514
      %v547 = vadd.f32 %v511, %v514
      %v548 = vmax.f32 %v516, 0.0
      %v549 = vmax.f32 %v517, 0.0
      %v550 = vmax.f32 %v518, 0.0
      %v551 = vmax.f32 %v519, 0.0
      %v552 = vmax.f32 %v520, 0.0
      %v553 = vmax.f32 %v521, 0.0
      %v554 = vmax.f32 %v522, 0.0
      %v555 = vmax.f32 %v523, 0.0
      %v556 = vmax.f32 %v524, 0.0
      %v557 = vmax.f32 %v525, 0.0
      %v558 = vmax.f32 %v526, 0.0
      %v559 = vmax.f32 %v527, 0.0
      %v560 = vmax.f32 %v528, 0.0
      %v561 = vmax.f32 %v529, 0.0
      %v562 = vmax.f32 %v530, 0.0
      %v563 = vmax.f32 %v531, 0.0
      %v564 = vmax.f32 %v532, 0.0
      %v565 = vmax.f32 %v533, 0.0
      %v566 = vmax.f32 %v534, 0.0
      %v567 = vmax.f32 %v535, 0.0
      %v568 = vmax.f32 %v536, 0.0
      %v569 = vmax.f32 %v537, 0.0
      %v570 = vmax.f32 %v538, 0.0
      %v571 = vmax.f32 %v539, 0.0
      %v572 = vmax.f32 %v540, 0.0
      %v573 = vmax.f32 %v541, 0.0
      %v574 = vmax.f32 %v542, 0.0
      %v575 = vmax.f32 %v543, 0.0
      %v576 = vmax.f32 %v544, 0.0
      %v577 = vmax.f32 %v545, 0.0
      %v578 = vmax.f32 %v546, 0.0
      %v579 = vmax.f32 %v547, 0.0
      %vm580 = vcmask 64512
      %581 = vst.msk [vmem:[%s199] sm:$0xff] %vm580, %v548
      %582 = vst.msk [vmem:[%s199 + $0x8] sm:$0xff] %vm580, %v549
      %583 = vst.msk [vmem:[%s199 + $0x10] sm:$0xff] %vm580, %v550
      %584 = vst.msk [vmem:[%s199 + $0x18] sm:$0xff] %vm580, %v551
      %585 = vst.msk [vmem:[%s199 + $0x20] sm:$0xff] %vm580, %v552
      %586 = vst.msk [vmem:[%s199 + $0x28] sm:$0xff] %vm580, %v553
      %587 = vst.msk [vmem:[%s199 + $0x30] sm:$0xff] %vm580, %v554
      %588 = vst.msk [vmem:[%s199 + $0x38] sm:$0xff] %vm580, %v555
      %589 = vst.msk [vmem:[%s199 + $0x40] sm:$0xff] %vm580, %v556
      %590 = vst.msk [vmem:[%s199 + $0x48] sm:$0xff] %vm580, %v557
      %591 = vst.msk [vmem:[%s199 + $0x50] sm:$0xff] %vm580, %v558
      %592 = vst.msk [vmem:[%s199 + $0x58] sm:$0xff] %vm580, %v559
      %593 = vst.msk [vmem:[%s199 + $0x60] sm:$0xff] %vm580, %v560
      %594 = vst.msk [vmem:[%s199 + $0x68] sm:$0xff] %vm580, %v561
      %595 = vst.msk [vmem:[%s199 + $0x70] sm:$0xff] %vm580, %v562
      %596 = vst.msk [vmem:[%s199 + $0x78] sm:$0xff] %vm580, %v563
      %597 = vst.msk [vmem:[%s199 + $0x80] sm:$0xff] %vm580, %v564
      %598 = vst.msk [vmem:[%s199 + $0x88] sm:$0xff] %vm580, %v565
      %599 = vst.msk [vmem:[%s199 + $0x90] sm:$0xff] %vm580, %v566
      %600 = vst.msk [vmem:[%s199 + $0x98] sm:$0xff] %vm580, %v567
      %601 = vst.msk [vmem:[%s199 + $0xa0] sm:$0xff] %vm580, %v568
      %602 = vst.msk [vmem:[%s199 + $0xa8] sm:$0xff] %vm580, %v569
      %603 = vst.msk [vmem:[%s199 + $0xb0] sm:$0xff] %vm580, %v570
      %604 = vst.msk [vmem:[%s199 + $0xb8] sm:$0xff] %vm580, %v571
      %605 = vst.msk [vmem:[%s199 + $0xc0] sm:$0xff] %vm580, %v572
      %606 = vst.msk [vmem:[%s199 + $0xc8] sm:$0xff] %vm580, %v573
      %607 = vst.msk [vmem:[%s199 + $0xd0] sm:$0xff] %vm580, %v574
      %608 = vst.msk [vmem:[%s199 + $0xd8] sm:$0xff] %vm580, %v575
      %609 = vst.msk [vmem:[%s199 + $0xe0] sm:$0xff] %vm580, %v576
      %610 = vst.msk [vmem:[%s199 + $0xe8] sm:$0xff] %vm580, %v577
      %611 = vst.msk [vmem:[%s199 + $0xf0] sm:$0xff] %vm580, %v578
      %612 = vst.msk [vmem:[%s199 + $0xf8] sm:$0xff] %vm580, %v579
      %s613 = smul.u32 32, %s15
      %p614 = scmp.lt.s32.totalorder %s613, 255
      %s615 = scalar_select %p614, %s613, 255
      %s616 = smul.addr %s615, 8
      %s617 = scalar_lea.vmem %s4, %s616
      // Predicated region
      $region37: #{map_branch_forward.8} parent=35 // pred_check
        %p618 = pneg %p122
      $region38: #{map_branch_forward.8} parent=35 // pred_check_branch
        %620 = sbr.rel (%p618) target = $region40
      $region39: #{map_branch_forward.8} parent=35 // pred_region
        %s621 = smul.u32 32, %s15
      $region40: #{map_branch_forward.8} parent=35 // pred_fallthru
        _
    $region36: #{map_branch_forward.8} parent=5 // pred_fallthru
      _
    %p622 = scmp.le.s32.totalorder 2, %s10
    // Predicated region
    $region41: #{map_branch_forward.8} parent=5 // pred_check
      %p623 = pneg %p622
    $region42: #{map_branch_forward.8} parent=5 // pred_check_branch
      %625 = sbr.rel (%p623) target = $region44
    $region43: #{map_branch_forward.8} parent=5 // pred_region
      %s626 = ssub.s32 %s10, 2
      // Predicated region
      $region45: #{map_branch_forward.8} parent=43 // pred_check
        %p627 = pneg %p128
      $region46: #{map_branch_forward.8} parent=43 // pred_check_branch
        %629 = sbr.rel (%p627) target = $region48
      $region47: #{map_branch_forward.8} parent=43 // pred_region
        %s630 = smul.u32 32, %s16
        %p631 = scmp.lt.s32.totalorder %s630, 255
        %s632 = scalar_select %p631, %s630, 255
        %s633 = smul.addr %s632, 8
        %s634 = scalar_lea.vmem %s4, %s633
      $region48: #{map_branch_forward.8} parent=43 // pred_fallthru
        _
    $region44: #{map_branch_forward.8} parent=5 // pred_fallthru
      _
  $region6: #{map_branch_forward.8} parent=0 // loop_footer
    %s14 = sadd.s32 1, %s10
  $region7: #{map_branch_forward.8} parent=0 // loop_footer_branch
    %9 = sbr.rel target = $region3
  $region8: #{map_branch_forward.8} parent=0 // loop_exit
    _

// kernel: map_branch_forward.9
$region0: #{map_branch_forward.9}
  #allocation0 [shape = 'u32[]', space=smem, size = 0x4, offset = 0x4, fixed_abs, tag = 'smem constant byte address 0x4 - core index']
  #allocation1 [shape = 'u32[72,128]{1,0:T(1,128)}', space=vmem, size = 0x9000, scoped, tag = 'internal scratch']
  %s0 = inlined_call_operand.vmem [shape: bf16[512,72], index: 0, kind: input, shape index: {}]
  %s1 = inlined_call_operand.vmem [shape: bf16[72,16], index: 1, kind: input, shape index: {}]
  %s2 = inlined_call_operand.vmem [shape: f32[1,16], index: 2, kind: input, shape index: {}]
  %s3 = inlined_call_operand.vmem [shape: f32[1,16], index: 3, kind: input, shape index: {}]
  %s4 = inlined_call_operand.vmem [shape: f32[512,16], index: 4, kind: output, shape index: {}]
  %s5 = sld [smem:[#allocation0]]
  $region49: #{map_branch_forward.9} parent=0
    _
  %s7 = ssub.s32 1, %s5
  %s8 = scalar_select 0, %s7, %s5
  loop: start=0, step=1, limit=4
  $region2: #{map_branch_forward.9} parent=0 // loop_pre_header
    _
  $region3: #{map_branch_forward.9} parent=0 // loop_header
    %s10 = sphi 0, %s14
    %p11 = scmp.ge.s32.totalorder %s10, 4
    %s20 = sphi 0, %s22
    %s23 = sphi 0, %s20
    %s24 = sphi 0, %s23
    %s40 = sphi 0, %s24
    %s44 = sphi 0, %s44
    %s46 = sphi 0, %s44
    %s47 = sphi 0, %s46
    %s61 = sphi 0, %s47
    %s65 = sphi 0, %s65
    %s67 = sphi 0, %s65
    %s68 = sphi 0, %s67
    %s82 = sphi 0, %s68
    %s86 = sphi 0, %s86
    %s88 = sphi 0, %s86
    %s89 = sphi 0, %s88
    %s103 = sphi 0, %s89
    %s109 = sphi 0, %s111
    %s112 = sphi 0, %s109
    %s113 = sphi 0, %s112
    %s129 = sphi 0, %s113
  $region4: #{map_branch_forward.9} parent=0 // loop_header_branch
    %13 = sbr.rel (%p11) target = $region8
  $region5: #{map_branch_forward.9} parent=0 // loop_body
    %s15 = ssub.s32 %s10, 1
    %s16 = ssub.s32 %s10, 2
    %s17 = sadd.s32 %s10, 1
    %s18 = ssub.s32 %s10, %s17
    %p19 = scmp.eq.s32.totalorder %s18, 0
    %s21 = sadd.s32 %s20, 1
    %s22 = scalar_select %p19, %s20, %s21
    %p25 = pneg %p19
    %p26 = scmp.eq.s32.totalorder %s10, 1
    %p27 = por %p25, %p26
    %p28 = scmp.ne.s32.totalorder %s20, %s23
    %p29 = scmp.eq.s32.totalorder %s10, 0
    %p30 = por %p28, %p29
    %p31 = scmp.ne.s32.totalorder %s20, %s23
    %p32 = scmp.eq.s32.totalorder %s15, 1
    %p33 = por %p31, %p32
    %p34 = scmp.ne.s32.totalorder %s23, %s24
    %p35 = scmp.eq.s32.totalorder %s15, 0
    %p36 = por %p34, %p35
    %p37 = scmp.ne.s32.totalorder %s23, %s24
    %p38 = scmp.eq.s32.totalorder %s16, 1
    %p39 = por %p37, %p38
    %p41 = scmp.ne.s32.totalorder %s24, %s40
    %p42 = scmp.eq.s32.totalorder %s16, 0
    %p43 = por %p41, %p42
    %s45 = sadd.s32 %s44, 1
    %p48 = scmp.eq.s32.totalorder %s10, 1
    %p49 = scmp.ne.s32.totalorder %s44, %s46
    %p50 = scmp.eq.s32.totalorder %s10, 0
    %p51 = por %p49, %p50
    %p52 = scmp.ne.s32.totalorder %s44, %s46
    %p53 = scmp.eq.s32.totalorder %s15, 1
    %p54 = por %p52, %p53
    %p55 = scmp.ne.s32.totalorder %s46, %s47
    %p56 = scmp.eq.s32.totalorder %s15, 0
    %p57 = por %p55, %p56
    %p58 = scmp.ne.s32.totalorder %s46, %s47
    %p59 = scmp.eq.s32.totalorder %s16, 1
    %p60 = por %p58, %p59
    %p62 = scmp.ne.s32.totalorder %s47, %s61
    %p63 = scmp.eq.s32.totalorder %s16, 0
    %p64 = por %p62, %p63
    %s66 = sadd.s32 %s65, 1
    %p69 = scmp.eq.s32.totalorder %s10, 1
    %p70 = scmp.ne.s32.totalorder %s65, %s67
    %p71 = scmp.eq.s32.totalorder %s10, 0
    %p72 = por %p70, %p71
    %p73 = scmp.ne.s32.totalorder %s65, %s67
    %p74 = scmp.eq.s32.totalorder %s15, 1
    %p75 = por %p73, %p74
    %p76 = scmp.ne.s32.totalorder %s67, %s68
    %p77 = scmp.eq.s32.totalorder %s15, 0
    %p78 = por %p76, %p77
    %p79 = scmp.ne.s32.totalorder %s67, %s68
    %p80 = scmp.eq.s32.totalorder %s16, 1
    %p81 = por %p79, %p80
    %p83 = scmp.ne.s32.totalorder %s68, %s82
    %p84 = scmp.eq.s32.totalorder %s16, 0
    %p85 = por %p83, %p84
    %s87 = sadd.s32 %s86, 1
    %p90 = scmp.eq.s32.totalorder %s10, 1
    %p91 = scmp.ne.s32.totalorder %s86, %s88
    %p92 = scmp.eq.s32.totalorder %s10, 0
    %p93 = por %p91, %p92
    %p94 = scmp.ne.s32.totalorder %s86, %s88
    %p95 = scmp.eq.s32.totalorder %s15, 1
    %p96 = por %p94, %p95
    %p97 = scmp.ne.s32.totalorder %s88, %s89
    %p98 = scmp.eq.s32.totalorder %s15, 0
    %p99 = por %p97, %p98
    %p100 = scmp.ne.s32.totalorder %s88, %s89
    %p101 = scmp.eq.s32.totalorder %s16, 1
    %p102 = por %p100, %p101
    %p104 = scmp.ne.s32.totalorder %s89, %s103
    %p105 = scmp.eq.s32.totalorder %s16, 0
    %p106 = por %p104, %p105
    %s107 = ssub.s32 %s10, %s17
    %p108 = scmp.eq.s32.totalorder %s107, 0
    %s110 = sadd.s32 %s109, 1
    %s111 = scalar_select %p108, %s109, %s110
    %p114 = pneg %p108
    %p115 = scmp.eq.s32.totalorder %s10, 1
    %p116 = por %p114, %p115
    %p117 = scmp.ne.s32.totalorder %s109, %s112
    %p118 = scmp.eq.s32.totalorder %s10, 0
    %p119 = por %p117, %p118
    %p120 = scmp.ne.s32.totalorder %s109, %s112
    %p121 = scmp.eq.s32.totalorder %s15, 1
    %p122 = por %p120, %p121
    %p123 = scmp.ne.s32.totalorder %s112, %s113
    %p124 = scmp.eq.s32.totalorder %s15, 0
    %p125 = por %p123, %p124
    %p126 = scmp.ne.s32.totalorder %s112, %s113
    %p127 = scmp.eq.s32.totalorder %s16, 1
    %p128 = por %p126, %p127
    %p130 = scmp.ne.s32.totalorder %s113, %s129
    %p131 = scmp.eq.s32.totalorder %s16, 0
    %p132 = por %p130, %p131
    %p133 = scmp.le.s32.totalorder 1, %s10
    %p134 = scmp.lt.s32.totalorder %s10, 3
    %p135 = pnand %p133, %p134
    %p136 = pneg %p135
    // Predicated region
    $region9: #{map_branch_forward.9} parent=5 // pred_check
      _
    $region10: #{map_branch_forward.9} parent=5 // pred_check_branch
      %138 = sbr.rel (%p135) target = $region12
    $region11: #{map_branch_forward.9} parent=5 // pred_region
      %s139 = ssub.s32 %s10, 1
      // Predicated region
      $region13: #{map_branch_forward.9} parent=11 // pred_check
        %p140 = pneg %p57
      $region14: #{map_branch_forward.9} parent=11 // pred_check_branch
        %142 = sbr.rel (%p140) target = $region16
      $region15: #{map_branch_forward.9} parent=11 // pred_region
        _
      $region16: #{map_branch_forward.9} parent=11 // pred_fallthru
        _
      // Predicated region
      $region17: #{map_branch_forward.9} parent=11 // pred_check
        %p143 = pneg %p78
      $region18: #{map_branch_forward.9} parent=11 // pred_check_branch
        %145 = sbr.rel (%p143) target = $region20
      $region19: #{map_branch_forward.9} parent=11 // pred_region
        _
      $region20: #{map_branch_forward.9} parent=11 // pred_fallthru
        _
      // Predicated region
      $region21: #{map_branch_forward.9} parent=11 // pred_check
        %p146 = pneg %p99
      $region22: #{map_branch_forward.9} parent=11 // pred_check_branch
        %148 = sbr.rel (%p146) target = $region24
      $region23: #{map_branch_forward.9} parent=11 // pred_region
        _
      $region24: #{map_branch_forward.9} parent=11 // pred_fallthru
        _
    $region12: #{map_branch_forward.9} parent=5 // pred_fallthru
      _
    %p149 = scmp.lt.s32.totalorder %s10, 2
    // Predicated region
    $region25: #{map_branch_forward.9} parent=5 // pred_check
      %p150 = pneg %p149
    $region26: #{map_branch_forward.9} parent=5 // pred_check_branch
      %152 = sbr.rel (%p150) target = $region28
    $region27: #{map_branch_forward.9} parent=5 // pred_region
      // Predicated region
      $region29: #{map_branch_forward.9} parent=27 // pred_check
        %p153 = pneg %p30
      $region30: #{map_branch_forward.9} parent=27 // pred_check_branch
        %155 = sbr.rel (%p153) target = $region32
      $region31: #{map_branch_forward.9} parent=27 // pred_region
        %s156 = smul.u32 32, %s10
        %p157 = scmp.lt.s32.totalorder %s156, 63
        %s158 = scalar_select %p157, %s156, 63
        %s159 = smul.addr %s158, 4
        %s160 = scalar_lea.vmem %s0, %s159
        %s161 = smul.u32 32, %s10
      $region32: #{map_branch_forward.9} parent=27 // pred_fallthru
        _
    $region28: #{map_branch_forward.9} parent=5 // pred_fallthru
      _
    %p162 = scmp.le.s32.totalorder 1, %s10
    %p163 = scmp.lt.s32.totalorder %s10, 3
    %p164 = pnand %p162, %p163
    %p165 = pneg %p164
    // Predicated region
    $region33: #{map_branch_forward.9} parent=5 // pred_check
      _
    $region34: #{map_branch_forward.9} parent=5 // pred_check_branch
      %167 = sbr.rel (%p164) target = $region36
    $region35: #{map_branch_forward.9} parent=5 // pred_region
      %s168 = ssub.s32 %s10, 1
      %s169 = smul.u32 32, %s15
      %p170 = scmp.lt.s32.totalorder %s169, 63
      %s171 = scalar_select %p170, %s169, 63
      %s172 = smul.addr %s171, 4
      %s173 = scalar_lea.vmem %s0, %s172
      %p174 = pneg %p36
      %p175 = pneg %p33
      %p176 = pneg %p57
      %p177 = pneg %p54
      %p178 = pneg %p78
      %p179 = pneg %p75
      %p180 = pneg %p99
      %p181 = pneg %p96
      %p182 = pneg %p125
      %p183 = pneg %p122
      %s184 = smul.u32 32, %s15
      %p185 = scmp.lt.s32.totalorder %s184, 63
      %s186 = scalar_select %p185, %s184, 63
      %s187 = smul.addr %s186, 8
      %s188 = scalar_lea.vmem %s4, %s187
      %s189 = smul.u32 32, %s15
      %p190 = scmp.lt.s32.totalorder %s189, 63
      %s191 = scalar_select %p190, %s189, 63
      %s192 = smul.addr %s191, 4
      %s193 = scalar_lea.vmem %s0, %s192
      %s194 = smul.u32 32, %s15
      %s195 = smul.u32 32, %s15
      %p196 = scmp.lt.s32.totalorder %s195, 63
      %s197 = scalar_select %p196, %s195, 63
      %s198 = smul.addr %s197, 8
      %s199 = scalar_lea.vmem %s4, %s198
      %s200 = smul.u32 32, %s15
      %v202 = vld [vmem:[%s193] sm:$0xf]
      %v203 = vld [vmem:[%s193 + $0x4] sm:$0xf]
      %v204 = vld [vmem:[%s193 + $0x8] sm:$0xf]
      %v205 = vld [vmem:[%s193 + $0xc] sm:$0xf]
      %v206 = vld [vmem:[%s193 + $0x10] sm:$0xf]
      %v207 = vld [vmem:[%s193 + $0x14] sm:$0xf]
      %v208 = vld [vmem:[%s193 + $0x18] sm:$0xf]
      %v209 = vld [vmem:[%s193 + $0x1c] sm:$0xf]
      %v210 = vld [vmem:[%s193 + $0x20] sm:$0xf]
      %v211 = vld [vmem:[%s193 + $0x24] sm:$0xf]
      %v212 = vld [vmem:[%s193 + $0x28] sm:$0xf]
      %v213 = vld [vmem:[%s193 + $0x2c] sm:$0xf]
      %v214 = vld [vmem:[%s193 + $0x30] sm:$0xf]
      %v215 = vld [vmem:[%s193 + $0x34] sm:$0xf]
      %v216 = vld [vmem:[%s193 + $0x38] sm:$0xf]
      %v217 = vld [vmem:[%s193 + $0x3c] sm:$0xf]
      %v218 = vld [vmem:[%s193 + $0x40] sm:$0xf]
      %v219 = vld [vmem:[%s193 + $0x44] sm:$0xf]
      %v220 = vld [vmem:[%s193 + $0x48] sm:$0xf]
      %v221 = vld [vmem:[%s193 + $0x4c] sm:$0xf]
      %v222 = vld [vmem:[%s193 + $0x50] sm:$0xf]
      %v223 = vld [vmem:[%s193 + $0x54] sm:$0xf]
      %v224 = vld [vmem:[%s193 + $0x58] sm:$0xf]
      %v225 = vld [vmem:[%s193 + $0x5c] sm:$0xf]
      %v226 = vld [vmem:[%s193 + $0x60] sm:$0xf]
      %v227 = vld [vmem:[%s193 + $0x64] sm:$0xf]
      %v228 = vld [vmem:[%s193 + $0x68] sm:$0xf]
      %v229 = vld [vmem:[%s193 + $0x6c] sm:$0xf]
      %v230 = vld [vmem:[%s193 + $0x70] sm:$0xf]
      %v231 = vld [vmem:[%s193 + $0x74] sm:$0xf]
      %v232 = vld [vmem:[%s193 + $0x78] sm:$0xf]
      %v233 = vld [vmem:[%s193 + $0x7c] sm:$0xf]
      %v234 = vld [vmem:[%s1] sm:$0xf]
      %v235 = vld [vmem:[%s1 + $0x4] sm:$0xf]
      %v236 = vld [vmem:[%s1 + $0x8] sm:$0xf]
      %v237 = vld [vmem:[%s1 + $0xc] sm:$0xf]
      %v238 = vld [vmem:[%s1 + $0x10] sm:$0xf]
      %v239 = vld [vmem:[%s1 + $0x14] sm:$0xf]
      %v240 = vld [vmem:[%s1 + $0x18] sm:$0xf]
      %v241 = vld [vmem:[%s1 + $0x1c] sm:$0xf]
      %v242 = vld [vmem:[%s1 + $0x20] sm:$0xf]
      %v275 = vunpack.c.l.b16 %v202
      %v276 = vunpack.c.l.b16 %v203
      %v277 = vunpack.c.l.b16 %v204
      %v278 = vunpack.c.l.b16 %v205
      %v279 = vunpack.c.l.b16 %v206
      %v280 = vunpack.c.l.b16 %v207
      %v281 = vunpack.c.l.b16 %v208
      %v282 = vunpack.c.l.b16 %v209
      %v283 = vunpack.c.l.b16 %v210
      %v284 = vunpack.c.l.b16 %v211
      %v285 = vunpack.c.l.b16 %v212
      %v286 = vunpack.c.l.b16 %v213
      %v287 = vunpack.c.l.b16 %v214
      %v288 = vunpack.c.l.b16 %v215
      %v289 = vunpack.c.l.b16 %v216
      %v290 = vunpack.c.l.b16 %v217
      %v291 = vunpack.c.l.b16 %v218
      %v292 = vunpack.c.l.b16 %v219
      %v293 = vunpack.c.l.b16 %v220
      %v294 = vunpack.c.l.b16 %v221
      %v295 = vunpack.c.l.b16 %v222
      %v296 = vunpack.c.l.b16 %v223
      %v297 = vunpack.c.l.b16 %v224
      %v298 = vunpack.c.l.b16 %v225
      %v299 = vunpack.c.l.b16 %v226
      %v300 = vunpack.c.l.b16 %v227
      %v301 = vunpack.c.l.b16 %v228
      %v302 = vunpack.c.l.b16 %v229
      %v303 = vunpack.c.l.b16 %v230
      %v304 = vunpack.c.l.b16 %v231
      %v305 = vunpack.c.l.b16 %v232
      %v306 = vunpack.c.l.b16 %v233
      %v307 = vpack.c.b16 %v276, %v275
      %v308 = vpack.c.b16 %v278, %v277
      %v309 = vpack.c.b16 %v280, %v279
      %v310 = vpack.c.b16 %v282, %v281
      %v311 = vpack.c.b16 %v284, %v283
      %v312 = vpack.c.b16 %v286, %v285
      %v313 = vpack.c.b16 %v288, %v287
      %v314 = vpack.c.b16 %v290, %v289
      %v315 = vpack.c.b16 %v292, %v291
      %v316 = vpack.c.b16 %v294, %v293
      %v317 = vpack.c.b16 %v296, %v295
      %v318 = vpack.c.b16 %v298, %v297
      %v319 = vpack.c.b16 %v300, %v299
      %v320 = vpack.c.b16 %v302, %v301
      %v321 = vpack.c.b16 %v304, %v303
      %v322 = vpack.c.b16 %v306, %v305
      %v332 = vunpack.c.l.b16 %v234
      %v333 = vunpack.c.l.b16 %v235
      %v334 = vunpack.c.l.b16 %v236
      %v335 = vunpack.c.l.b16 %v237
      %v336 = vunpack.c.l.b16 %v238
      %v337 = vunpack.c.l.b16 %v239
      %v338 = vunpack.c.l.b16 %v240
      %v339 = vunpack.c.l.b16 %v241
      %v340 = vunpack.c.l.b16 %v242
      %v341 = vpack.c.b16 %v333, %v332
      %v342 = vpack.c.b16 %v335, %v334
      %v343 = vpack.c.b16 %v337, %v336
      %v344 = vpack.c.b16 %v339, %v338
      %v345 = vpack.c.b16 %v340, %v340
      %vm350 = vcmask 588800
      %v352 = vsel %vm350, %v307, 0
      %v355 = vsel %vm350, %v308, 0
      %v358 = vsel %vm350, %v309, 0
      %v361 = vsel %vm350, %v310, 0
      %v364 = vsel %vm350, %v311, 0
      %v367 = vsel %vm350, %v312, 0
      %v370 = vsel %vm350, %v313, 0
      %v373 = vsel %vm350, %v314, 0
      %v376 = vsel %vm350, %v315, 0
      %v379 = vsel %vm350, %v316, 0
      %v382 = vsel %vm350, %v317, 0
      %v385 = vsel %vm350, %v318, 0
      %v388 = vsel %vm350, %v319, 0
      %v391 = vsel %vm350, %v320, 0
      %v394 = vsel %vm350, %v321, 0
      %v397 = vsel %vm350, %v322, 0
      %vm399 = vcmask 1043456
      %v401 = vsel %vm399, %v345, 0
      %403 = vmatpush.bf16.msra.mxu0 0
      %404 = vmatpush.bf16.msra.mxu0 0
      %405 = vmatpush.bf16.msra.mxu0 0
      %406 = vmatpush.bf16.msra.mxu0 %v401
      %407 = vmatpush.bf16.msra.mxu0 %v344
      %408 = vmatpush.bf16.msra.mxu0 %v343
      %409 = vmatpush.bf16.msra.mxu0 %v342
      %410 = vmatpush.bf16.msra.mxu0 %v341
      %411 = vmatmul.bf16.gmra.mxu0 %v352
      %v412 = vpop.f32.mrf.mxu0
      %v413 = vadd.f32 0.0, %v412
      %v414 = vpop.f32.mrf.mxu0
      %v415 = vadd.f32 0.0, %v414
      %416 = vmatmul.bf16.gmra.mxu0 %v355
      %v417 = vpop.f32.mrf.mxu0
      %v418 = vadd.f32 0.0, %v417
      %v419 = vpop.f32.mrf.mxu0
      %v420 = vadd.f32 0.0, %v419
      %421 = vmatmul.bf16.gmra.mxu0 %v358
      %v422 = vpop.f32.mrf.mxu0
      %v423 = vadd.f32 0.0, %v422
      %v424 = vpop.f32.mrf.mxu0
      %v425 = vadd.f32 0.0, %v424
      %426 = vmatmul.bf16.gmra.mxu0 %v361
      %v427 = vpop.f32.mrf.mxu0
      %v428 = vadd.f32 0.0, %v427
      %v429 = vpop.f32.mrf.mxu0
      %v430 = vadd.f32 0.0, %v429
      %431 = vmatmul.bf16.gmra.mxu0 %v364
      %v432 = vpop.f32.mrf.mxu0
      %v433 = vadd.f32 0.0, %v432
      %v434 = vpop.f32.mrf.mxu0
      %v435 = vadd.f32 0.0, %v434
      %436 = vmatmul.bf16.gmra.mxu0 %v367
      %v437 = vpop.f32.mrf.mxu0
      %v438 = vadd.f32 0.0, %v437
      %v439 = vpop.f32.mrf.mxu0
      %v440 = vadd.f32 0.0, %v439
      %441 = vmatmul.bf16.gmra.mxu0 %v370
      %v442 = vpop.f32.mrf.mxu0
      %v443 = vadd.f32 0.0, %v442
      %v444 = vpop.f32.mrf.mxu0
      %v445 = vadd.f32 0.0, %v444
      %446 = vmatmul.bf16.gmra.mxu0 %v373
      %v447 = vpop.f32.mrf.mxu0
      %v448 = vadd.f32 0.0, %v447
      %v449 = vpop.f32.mrf.mxu0
      %v450 = vadd.f32 0.0, %v449
      %451 = vmatmul.bf16.gmra.mxu0 %v376
      %v452 = vpop.f32.mrf.mxu0
      %v453 = vadd.f32 0.0, %v452
      %v454 = vpop.f32.mrf.mxu0
      %v455 = vadd.f32 0.0, %v454
      %456 = vmatmul.bf16.gmra.mxu0 %v379
      %v457 = vpop.f32.mrf.mxu0
      %v458 = vadd.f32 0.0, %v457
      %v459 = vpop.f32.mrf.mxu0
      %v460 = vadd.f32 0.0, %v459
      %461 = vmatmul.bf16.gmra.mxu0 %v382
      %v462 = vpop.f32.mrf.mxu0
      %v463 = vadd.f32 0.0, %v462
      %v464 = vpop.f32.mrf.mxu0
      %v465 = vadd.f32 0.0, %v464
      %466 = vmatmul.bf16.gmra.mxu0 %v385
      %v467 = vpop.f32.mrf.mxu0
      %v468 = vadd.f32 0.0, %v467
      %v469 = vpop.f32.mrf.mxu0
      %v470 = vadd.f32 0.0, %v469
      %471 = vmatmul.bf16.gmra.mxu0 %v388
      %v472 = vpop.f32.mrf.mxu0
      %v473 = vadd.f32 0.0, %v472
      %v474 = vpop.f32.mrf.mxu0
      %v475 = vadd.f32 0.0, %v474
      %476 = vmatmul.bf16.gmra.mxu0 %v391
      %v477 = vpop.f32.mrf.mxu0
      %v478 = vadd.f32 0.0, %v477
      %v479 = vpop.f32.mrf.mxu0
      %v480 = vadd.f32 0.0, %v479
      %481 = vmatmul.bf16.gmra.mxu0 %v394
      %v482 = vpop.f32.mrf.mxu0
      %v483 = vadd.f32 0.0, %v482
      %v484 = vpop.f32.mrf.mxu0
      %v485 = vadd.f32 0.0, %v484
      %486 = vmatmul.bf16.gmra.mxu0 %v397
      %v487 = vpop.f32.mrf.mxu0
      %v488 = vadd.f32 0.0, %v487
      %v489 = vpop.f32.mrf.mxu0
      %v490 = vadd.f32 0.0, %v489
      %491 = vdwg.mxu0
      %v492 = vld [vmem:[%s2] sm:$0x1]
      %v494 = vperm.slane %v492, 0
      %v496 = vmul.f32 %v413, %v494
      %v497 = vmul.f32 %v415, %v494
      %v498 = vmul.f32 %v418, %v494
      %v499 = vmul.f32 %v420, %v494
      %v500 = vmul.f32 %v423, %v494
      %v501 = vmul.f32 %v425, %v494
      %v502 = vmul.f32 %v428, %v494
      %v503 = vmul.f32 %v430, %v494
      %v504 = vmul.f32 %v433, %v494
      %v505 = vmul.f32 %v435, %v494
      %v506 = vmul.f32 %v438, %v494
      %v507 = vmul.f32 %v440, %v494
      %v508 = vmul.f32 %v443, %v494
      %v509 = vmul.f32 %v445, %v494
      %v510 = vmul.f32 %v448, %v494
      %v511 = vmul.f32 %v450, %v494
      %v512 = vmul.f32 %v453, %v494
      %v513 = vmul.f32 %v455, %v494
      %v514 = vmul.f32 %v458, %v494
      %v515 = vmul.f32 %v460, %v494
      %v516 = vmul.f32 %v463, %v494
      %v517 = vmul.f32 %v465, %v494
      %v518 = vmul.f32 %v468, %v494
      %v519 = vmul.f32 %v470, %v494
      %v520 = vmul.f32 %v473, %v494
      %v521 = vmul.f32 %v475, %v494
      %v522 = vmul.f32 %v478, %v494
      %v523 = vmul.f32 %v480, %v494
      %v524 = vmul.f32 %v483, %v494
      %v525 = vmul.f32 %v485, %v494
      %v526 = vmul.f32 %v488, %v494
      %v527 = vmul.f32 %v490, %v494
      %v528 = vld [vmem:[%s3] sm:$0x1]
      %v530 = vperm.slane %v528, 0
      %v532 = vadd.f32 %v496, %v530
      %v533 = vadd.f32 %v497, %v530
      %v534 = vadd.f32 %v498, %v530
      %v535 = vadd.f32 %v499, %v530
      %v536 = vadd.f32 %v500, %v530
      %v537 = vadd.f32 %v501, %v530
      %v538 = vadd.f32 %v502, %v530
      %v539 = vadd.f32 %v503, %v530
      %v540 = vadd.f32 %v504, %v530
      %v541 = vadd.f32 %v505, %v530
      %v542 = vadd.f32 %v506, %v530
      %v543 = vadd.f32 %v507, %v530
      %v544 = vadd.f32 %v508, %v530
      %v545 = vadd.f32 %v509, %v530
      %v546 = vadd.f32 %v510, %v530
      %v547 = vadd.f32 %v511, %v530
      %v548 = vadd.f32 %v512, %v530
      %v549 = vadd.f32 %v513, %v530
      %v550 = vadd.f32 %v514, %v530
      %v551 = vadd.f32 %v515, %v530
      %v552 = vadd.f32 %v516, %v530
      %v553 = vadd.f32 %v517, %v530
      %v554 = vadd.f32 %v518, %v530
      %v555 = vadd.f32 %v519, %v530
      %v556 = vadd.f32 %v520, %v530
      %v557 = vadd.f32 %v521, %v530
      %v558 = vadd.f32 %v522, %v530
      %v559 = vadd.f32 %v523, %v530
      %v560 = vadd.f32 %v524, %v530
      %v561 = vadd.f32 %v525, %v530
      %v562 = vadd.f32 %v526, %v530
      %v563 = vadd.f32 %v527, %v530
      %v564 = vmax.f32 %v532, 0.0
      %v565 = vmax.f32 %v533, 0.0
      %v566 = vmax.f32 %v534, 0.0
      %v567 = vmax.f32 %v535, 0.0
      %v568 = vmax.f32 %v536, 0.0
      %v569 = vmax.f32 %v537, 0.0
      %v570 = vmax.f32 %v538, 0.0
      %v571 = vmax.f32 %v539, 0.0
      %v572 = vmax.f32 %v540, 0.0
      %v573 = vmax.f32 %v541, 0.0
      %v574 = vmax.f32 %v542, 0.0
      %v575 = vmax.f32 %v543, 0.0
      %v576 = vmax.f32 %v544, 0.0
      %v577 = vmax.f32 %v545, 0.0
      %v578 = vmax.f32 %v546, 0.0
      %v579 = vmax.f32 %v547, 0.0
      %v580 = vmax.f32 %v548, 0.0
      %v581 = vmax.f32 %v549, 0.0
      %v582 = vmax.f32 %v550, 0.0
      %v583 = vmax.f32 %v551, 0.0
      %v584 = vmax.f32 %v552, 0.0
      %v585 = vmax.f32 %v553, 0.0
      %v586 = vmax.f32 %v554, 0.0
      %v587 = vmax.f32 %v555, 0.0
      %v588 = vmax.f32 %v556, 0.0
      %v589 = vmax.f32 %v557, 0.0
      %v590 = vmax.f32 %v558, 0.0
      %v591 = vmax.f32 %v559, 0.0
      %v592 = vmax.f32 %v560, 0.0
      %v593 = vmax.f32 %v561, 0.0
      %v594 = vmax.f32 %v562, 0.0
      %v595 = vmax.f32 %v563, 0.0
      %vm596 = vcmask 130048
      %597 = vst.msk [vmem:[%s199] sm:$0xff] %vm596, %v564
      %598 = vst.msk [vmem:[%s199 + $0x8] sm:$0xff] %vm596, %v565
      %599 = vst.msk [vmem:[%s199 + $0x10] sm:$0xff] %vm596, %v566
      %600 = vst.msk [vmem:[%s199 + $0x18] sm:$0xff] %vm596, %v567
      %601 = vst.msk [vmem:[%s199 + $0x20] sm:$0xff] %vm596, %v568
      %602 = vst.msk [vmem:[%s199 + $0x28] sm:$0xff] %vm596, %v569
      %603 = vst.msk [vmem:[%s199 + $0x30] sm:$0xff] %vm596, %v570
      %604 = vst.msk [vmem:[%s199 + $0x38] sm:$0xff] %vm596, %v571
      %605 = vst.msk [vmem:[%s199 + $0x40] sm:$0xff] %vm596, %v572
      %606 = vst.msk [vmem:[%s199 + $0x48] sm:$0xff] %vm596, %v573
      %607 = vst.msk [vmem:[%s199 + $0x50] sm:$0xff] %vm596, %v574
      %608 = vst.msk [vmem:[%s199 + $0x58] sm:$0xff] %vm596, %v575
      %609 = vst.msk [vmem:[%s199 + $0x60] sm:$0xff] %vm596, %v576
      %610 = vst.msk [vmem:[%s199 + $0x68] sm:$0xff] %vm596, %v577
      %611 = vst.msk [vmem:[%s199 + $0x70] sm:$0xff] %vm596, %v578
      %612 = vst.msk [vmem:[%s199 + $0x78] sm:$0xff] %vm596, %v579
      %613 = vst.msk [vmem:[%s199 + $0x80] sm:$0xff] %vm596, %v580
      %614 = vst.msk [vmem:[%s199 + $0x88] sm:$0xff] %vm596, %v581
      %615 = vst.msk [vmem:[%s199 + $0x90] sm:$0xff] %vm596, %v582
      %616 = vst.msk [vmem:[%s199 + $0x98] sm:$0xff] %vm596, %v583
      %617 = vst.msk [vmem:[%s199 + $0xa0] sm:$0xff] %vm596, %v584
      %618 = vst.msk [vmem:[%s199 + $0xa8] sm:$0xff] %vm596, %v585
      %619 = vst.msk [vmem:[%s199 + $0xb0] sm:$0xff] %vm596, %v586
      %620 = vst.msk [vmem:[%s199 + $0xb8] sm:$0xff] %vm596, %v587
      %621 = vst.msk [vmem:[%s199 + $0xc0] sm:$0xff] %vm596, %v588
      %622 = vst.msk [vmem:[%s199 + $0xc8] sm:$0xff] %vm596, %v589
      %623 = vst.msk [vmem:[%s199 + $0xd0] sm:$0xff] %vm596, %v590
      %624 = vst.msk [vmem:[%s199 + $0xd8] sm:$0xff] %vm596, %v591
      %625 = vst.msk [vmem:[%s199 + $0xe0] sm:$0xff] %vm596, %v592
      %626 = vst.msk [vmem:[%s199 + $0xe8] sm:$0xff] %vm596, %v593
      %627 = vst.msk [vmem:[%s199 + $0xf0] sm:$0xff] %vm596, %v594
      %628 = vst.msk [vmem:[%s199 + $0xf8] sm:$0xff] %vm596, %v595
      %s629 = smul.u32 32, %s15
      %p630 = scmp.lt.s32.totalorder %s629, 63
      %s631 = scalar_select %p630, %s629, 63
      %s632 = smul.addr %s631, 8
      %s633 = scalar_lea.vmem %s4, %s632
      // Predicated region
      $region37: #{map_branch_forward.9} parent=35 // pred_check
        %p634 = pneg %p122
      $region38: #{map_branch_forward.9} parent=35 // pred_check_branch
        %636 = sbr.rel (%p634) target = $region40
      $region39: #{map_branch_forward.9} parent=35 // pred_region
        %s637 = smul.u32 32, %s15
      $region40: #{map_branch_forward.9} parent=35 // pred_fallthru
        _
    $region36: #{map_branch_forward.9} parent=5 // pred_fallthru
      _
    %p638 = scmp.le.s32.totalorder 2, %s10
    // Predicated region
    $region41: #{map_branch_forward.9} parent=5 // pred_check
      %p639 = pneg %p638
    $region42: #{map_branch_forward.9} parent=5 // pred_check_branch
      %641 = sbr.rel (%p639) target = $region44
    $region43: #{map_branch_forward.9} parent=5 // pred_region
      %s642 = ssub.s32 %s10, 2
      // Predicated region
      $region45: #{map_branch_forward.9} parent=43 // pred_check
        %p643 = pneg %p128
      $region46: #{map_branch_forward.9} parent=43 // pred_check_branch
        %645 = sbr.rel (%p643) target = $region48
      $region47: #{map_branch_forward.9} parent=43 // pred_region
        %s646 = smul.u32 32, %s16
        %p647 = scmp.lt.s32.totalorder %s646, 63
        %s648 = scalar_select %p647, %s646, 63
        %s649 = smul.addr %s648, 8
        %s650 = scalar_lea.vmem %s4, %s649
      $region48: #{map_branch_forward.9} parent=43 // pred_fallthru
        _
    $region44: #{map_branch_forward.9} parent=5 // pred_fallthru
      _
  $region6: #{map_branch_forward.9} parent=0 // loop_footer
    %s14 = sadd.s32 1, %s10
  $region7: #{map_branch_forward.9} parent=0 // loop_footer_branch
    %9 = sbr.rel target = $region3
  $region8: #{map_branch_forward.9} parent=0 // loop_exit
    _

// kernel: map_branch_forward.10
$region0: #{map_branch_forward.10}
  #allocation0 [shape = 'u32[]', space=smem, size = 0x4, offset = 0x4, fixed_abs, tag = 'smem constant byte address 0x4 - core index']
  #allocation1 [shape = 'u32[72,128]{1,0:T(1,128)}', space=vmem, size = 0x9000, scoped, tag = 'internal scratch']
  %s0 = inlined_call_operand.vmem [shape: bf16[128,144], index: 0, kind: input, shape index: {}]
  %s1 = inlined_call_operand.vmem [shape: bf16[144,32], index: 1, kind: input, shape index: {}]
  %s2 = inlined_call_operand.vmem [shape: f32[1,32], index: 2, kind: input, shape index: {}]
  %s3 = inlined_call_operand.vmem [shape: f32[1,32], index: 3, kind: input, shape index: {}]
  %s4 = inlined_call_operand.vmem [shape: f32[128,32], index: 4, kind: output, shape index: {}]
  %s5 = sld [smem:[#allocation0]]
  $region26: #{map_branch_forward.10} parent=0
    _
  %s7 = ssub.s32 1, %s5
  %s8 = scalar_select 0, %s7, %s5
  // Predicated region
  $region2: #{map_branch_forward.10} parent=0 // pred_check
    _
  $region3: #{map_branch_forward.10} parent=0 // pred_check_branch
    %10 = sbr.rel (0) target = $region5
  $region4: #{map_branch_forward.10} parent=0 // pred_region
    _
  $region5: #{map_branch_forward.10} parent=0 // pred_fallthru
    _
  // Predicated region
  $region6: #{map_branch_forward.10} parent=0 // pred_check
    _
  $region7: #{map_branch_forward.10} parent=0 // pred_check_branch
    %12 = sbr.rel (0) target = $region9
  $region8: #{map_branch_forward.10} parent=0 // pred_region
    _
  $region9: #{map_branch_forward.10} parent=0 // pred_fallthru
    _
  // Predicated region
  $region10: #{map_branch_forward.10} parent=0 // pred_check
    _
  $region11: #{map_branch_forward.10} parent=0 // pred_check_branch
    %14 = sbr.rel (0) target = $region13
  $region12: #{map_branch_forward.10} parent=0 // pred_region
    _
  $region13: #{map_branch_forward.10} parent=0 // pred_fallthru
    _
  // Predicated region
  $region14: #{map_branch_forward.10} parent=0 // pred_check
    _
  $region15: #{map_branch_forward.10} parent=0 // pred_check_branch
    %16 = sbr.rel (0) target = $region17
  $region16: #{map_branch_forward.10} parent=0 // pred_region
    _
  $region17: #{map_branch_forward.10} parent=0 // pred_fallthru
    _
  %v18 = vld [vmem:[%s0] sm:$0xff]
  %v19 = vld [vmem:[%s0 + $0x8] sm:$0xff]
  %v20 = vld [vmem:[%s0 + $0x10] sm:$0xff]
  %v21 = vld [vmem:[%s0 + $0x18] sm:$0xff]
  %v22 = vld [vmem:[%s0 + $0x20] sm:$0xff]
  %v23 = vld [vmem:[%s0 + $0x28] sm:$0xff]
  %v24 = vld [vmem:[%s0 + $0x30] sm:$0xff]
  %v25 = vld [vmem:[%s0 + $0x38] sm:$0xff]
  %v26 = vld [vmem:[%s0 + $0x40] sm:$0xff]
  %v27 = vld [vmem:[%s0 + $0x48] sm:$0xff]
  %v28 = vld [vmem:[%s0 + $0x50] sm:$0xff]
  %v29 = vld [vmem:[%s0 + $0x58] sm:$0xff]
  %v30 = vld [vmem:[%s0 + $0x60] sm:$0xff]
  %v31 = vld [vmem:[%s0 + $0x68] sm:$0xff]
  %v32 = vld [vmem:[%s0 + $0x70] sm:$0xff]
  %v33 = vld [vmem:[%s0 + $0x78] sm:$0xff]
  %v34 = vld [vmem:[%s1] sm:$0xf]
  %v35 = vld [vmem:[%s1 + $0x4] sm:$0xf]
  %v36 = vld [vmem:[%s1 + $0x8] sm:$0xf]
  %v37 = vld [vmem:[%s1 + $0xc] sm:$0xf]
  %v38 = vld [vmem:[%s1 + $0x10] sm:$0xf]
  %v39 = vld [vmem:[%s1 + $0x14] sm:$0xf]
  %v40 = vld [vmem:[%s1 + $0x18] sm:$0xf]
  %v41 = vld [vmem:[%s1 + $0x1c] sm:$0xf]
  %v42 = vld [vmem:[%s1 + $0x20] sm:$0xf]
  %v43 = vld [vmem:[%s1 + $0x24] sm:$0xf]
  %v44 = vld [vmem:[%s1 + $0x28] sm:$0xf]
  %v45 = vld [vmem:[%s1 + $0x2c] sm:$0xf]
  %v46 = vld [vmem:[%s1 + $0x30] sm:$0xf]
  %v47 = vld [vmem:[%s1 + $0x34] sm:$0xf]
  %v48 = vld [vmem:[%s1 + $0x38] sm:$0xf]
  %v49 = vld [vmem:[%s1 + $0x3c] sm:$0xf]
  %v50 = vld [vmem:[%s1 + $0x40] sm:$0xf]
  %v51 = vld [vmem:[%s1 + $0x44] sm:$0xf]
  %v68 = vunpack.c.l.b16 %v18
  %v69 = vunpack.c.h.b16 %v18
  %v70 = vunpack.c.l.b16 %v19
  %v71 = vunpack.c.h.b16 %v19
  %v72 = vunpack.c.l.b16 %v20
  %v73 = vunpack.c.h.b16 %v20
  %v74 = vunpack.c.l.b16 %v21
  %v75 = vunpack.c.h.b16 %v21
  %v76 = vunpack.c.l.b16 %v22
  %v77 = vunpack.c.h.b16 %v22
  %v78 = vunpack.c.l.b16 %v23
  %v79 = vunpack.c.h.b16 %v23
  %v80 = vunpack.c.l.b16 %v24
  %v81 = vunpack.c.h.b16 %v24
  %v82 = vunpack.c.l.b16 %v25
  %v83 = vunpack.c.h.b16 %v25
  %v84 = vunpack.c.l.b16 %v26
  %v85 = vunpack.c.h.b16 %v26
  %v86 = vunpack.c.l.b16 %v27
  %v87 = vunpack.c.h.b16 %v27
  %v88 = vunpack.c.l.b16 %v28
  %v89 = vunpack.c.h.b16 %v28
  %v90 = vunpack.c.l.b16 %v29
  %v91 = vunpack.c.h.b16 %v29
  %v92 = vunpack.c.l.b16 %v30
  %v93 = vunpack.c.h.b16 %v30
  %v94 = vunpack.c.l.b16 %v31
  %v95 = vunpack.c.h.b16 %v31
  %v96 = vunpack.c.l.b16 %v32
  %v97 = vunpack.c.h.b16 %v32
  %v98 = vunpack.c.l.b16 %v33
  %v99 = vunpack.c.h.b16 %v33
  %v100 = vpack.c.b16 %v70, %v68
  %v101 = vpack.c.b16 %v71, %v69
  %v102 = vpack.c.b16 %v74, %v72
  %v103 = vpack.c.b16 %v75, %v73
  %v104 = vpack.c.b16 %v78, %v76
  %v105 = vpack.c.b16 %v79, %v77
  %v106 = vpack.c.b16 %v82, %v80
  %v107 = vpack.c.b16 %v83, %v81
  %v108 = vpack.c.b16 %v86, %v84
  %v109 = vpack.c.b16 %v87, %v85
  %v110 = vpack.c.b16 %v90, %v88
  %v111 = vpack.c.b16 %v91, %v89
  %v112 = vpack.c.b16 %v94, %v92
  %v113 = vpack.c.b16 %v95, %v93
  %v114 = vpack.c.b16 %v98, %v96
  %v115 = vpack.c.b16 %v99, %v97
  %v142 = vunpack.c.l.b16 %v34
  %v143 = vunpack.c.l.b16 %v35
  %v144 = vunpack.c.l.b16 %v36
  %v145 = vunpack.c.l.b16 %v37
  %v146 = vunpack.c.l.b16 %v38
  %v147 = vunpack.c.l.b16 %v39
  %v148 = vunpack.c.l.b16 %v40
  %v149 = vunpack.c.l.b16 %v41
  %v150 = vunpack.c.l.b16 %v42
  %v151 = vunpack.c.l.b16 %v43
  %v152 = vunpack.c.l.b16 %v44
  %v153 = vunpack.c.l.b16 %v45
  %v154 = vunpack.c.l.b16 %v46
  %v155 = vunpack.c.l.b16 %v47
  %v156 = vunpack.c.l.b16 %v48
  %v157 = vunpack.c.l.b16 %v49
  %v158 = vunpack.c.l.b16 %v50
  %v159 = vunpack.c.l.b16 %v51
  %v160 = vpack.c.b16 %v143, %v142
  %v161 = vpack.c.b16 %v145, %v144
  %v162 = vpack.c.b16 %v147, %v146
  %v163 = vpack.c.b16 %v149, %v148
  %v164 = vpack.c.b16 %v151, %v150
  %v165 = vpack.c.b16 %v153, %v152
  %v166 = vpack.c.b16 %v155, %v154
  %v167 = vpack.c.b16 %v157, %v156
  %v168 = vpack.c.b16 %v159, %v158
  %vm178 = vcmask 130048
  %v180 = vsel %vm178, %v101, 0
  %v183 = vsel %vm178, %v103, 0
  %v186 = vsel %vm178, %v105, 0
  %v189 = vsel %vm178, %v107, 0
  %v192 = vsel %vm178, %v109, 0
  %v195 = vsel %vm178, %v111, 0
  %v198 = vsel %vm178, %v113, 0
  %v201 = vsel %vm178, %v115, 0
  %203 = vmatpush.bf16.msra.mxu0 %v167
  %204 = vmatpush.bf16.msra.mxu0 %v166
  %205 = vmatpush.bf16.msra.mxu0 %v165
  %206 = vmatpush.bf16.msra.mxu0 %v164
  %207 = vmatpush.bf16.msra.mxu0 %v163
  %208 = vmatpush.bf16.msra.mxu0 %v162
  %209 = vmatpush.bf16.msra.mxu0 %v161
  %210 = vmatpush.bf16.msra.mxu0 %v160
  %211 = vmatmul.bf16.gmra.mxu0 %v100
  %v212 = vpop.f32.mrf.mxu0
  %v213 = vadd.f32 0.0, %v212
  %v214 = vpop.f32.mrf.mxu0
  %v215 = vadd.f32 0.0, %v214
  %216 = vmatmul.bf16.gmra.mxu0 %v102
  %v217 = vpop.f32.mrf.mxu0
  %v218 = vadd.f32 0.0, %v217
  %v219 = vpop.f32.mrf.mxu0
  %v220 = vadd.f32 0.0, %v219
  %221 = vmatmul.bf16.gmra.mxu0 %v104
  %v222 = vpop.f32.mrf.mxu0
  %v223 = vadd.f32 0.0, %v222
  %v224 = vpop.f32.mrf.mxu0
  %v225 = vadd.f32 0.0, %v224
  %226 = vmatmul.bf16.gmra.mxu0 %v106
  %v227 = vpop.f32.mrf.mxu0
  %v228 = vadd.f32 0.0, %v227
  %v229 = vpop.f32.mrf.mxu0
  %v230 = vadd.f32 0.0, %v229
  %231 = vmatmul.bf16.gmra.mxu0 %v108
  %v232 = vpop.f32.mrf.mxu0
  %v233 = vadd.f32 0.0, %v232
  %v234 = vpop.f32.mrf.mxu0
  %v235 = vadd.f32 0.0, %v234
  %236 = vmatmul.bf16.gmra.mxu0 %v110
  %v237 = vpop.f32.mrf.mxu0
  %v238 = vadd.f32 0.0, %v237
  %v239 = vpop.f32.mrf.mxu0
  %v240 = vadd.f32 0.0, %v239
  %241 = vmatmul.bf16.gmra.mxu0 %v112
  %v242 = vpop.f32.mrf.mxu0
  %v243 = vadd.f32 0.0, %v242
  %v244 = vpop.f32.mrf.mxu0
  %v245 = vadd.f32 0.0, %v244
  %246 = vmatmul.bf16.gmra.mxu0 %v114
  %v247 = vpop.f32.mrf.mxu0
  %v248 = vadd.f32 0.0, %v247
  %v249 = vpop.f32.mrf.mxu0
  %v250 = vadd.f32 0.0, %v249
  %251 = vdwg.mxu0
  %252 = vmatpush.bf16.msra.mxu0 0
  %253 = vmatpush.bf16.msra.mxu0 0
  %254 = vmatpush.bf16.msra.mxu0 0
  %255 = vmatpush.bf16.msra.mxu0 0
  %256 = vmatpush.bf16.msra.mxu0 0
  %257 = vmatpush.bf16.msra.mxu0 0
  %258 = vmatpush.bf16.msra.mxu0 0
  %259 = vmatpush.bf16.msra.mxu0 %v168
  %260 = vmatmul.bf16.gmra.mxu0 %v180
  %v261 = vpop.f32.mrf.mxu0
  %v262 = vadd.f32 %v213, %v261
  %v263 = vpop.f32.mrf.mxu0
  %v264 = vadd.f32 %v215, %v263
  %265 = vmatmul.bf16.gmra.mxu0 %v183
  %v266 = vpop.f32.mrf.mxu0
  %v267 = vadd.f32 %v218, %v266
  %v268 = vpop.f32.mrf.mxu0
  %v269 = vadd.f32 %v220, %v268
  %270 = vmatmul.bf16.gmra.mxu0 %v186
  %v271 = vpop.f32.mrf.mxu0
  %v272 = vadd.f32 %v223, %v271
  %v273 = vpop.f32.mrf.mxu0
  %v274 = vadd.f32 %v225, %v273
  %275 = vmatmul.bf16.gmra.mxu0 %v189
  %v276 = vpop.f32.mrf.mxu0
  %v277 = vadd.f32 %v228, %v276
  %v278 = vpop.f32.mrf.mxu0
  %v279 = vadd.f32 %v230, %v278
  %280 = vmatmul.bf16.gmra.mxu0 %v192
  %v281 = vpop.f32.mrf.mxu0
  %v282 = vadd.f32 %v233, %v281
  %v283 = vpop.f32.mrf.mxu0
  %v284 = vadd.f32 %v235, %v283
  %285 = vmatmul.bf16.gmra.mxu0 %v195
  %v286 = vpop.f32.mrf.mxu0
  %v287 = vadd.f32 %v238, %v286
  %v288 = vpop.f32.mrf.mxu0
  %v289 = vadd.f32 %v240, %v288
  %290 = vmatmul.bf16.gmra.mxu0 %v198
  %v291 = vpop.f32.mrf.mxu0
  %v292 = vadd.f32 %v243, %v291
  %v293 = vpop.f32.mrf.mxu0
  %v294 = vadd.f32 %v245, %v293
  %295 = vmatmul.bf16.gmra.mxu0 %v201
  %v296 = vpop.f32.mrf.mxu0
  %v297 = vadd.f32 %v248, %v296
  %v298 = vpop.f32.mrf.mxu0
  %v299 = vadd.f32 %v250, %v298
  %300 = vdwg.mxu0
  %v301 = vld [vmem:[%s2] sm:$0x1]
  %v303 = vperm.slane %v301, 0
  %v305 = vmul.f32 %v262, %v303
  %v306 = vmul.f32 %v264, %v303
  %v307 = vmul.f32 %v267, %v303
  %v308 = vmul.f32 %v269, %v303
  %v309 = vmul.f32 %v272, %v303
  %v310 = vmul.f32 %v274, %v303
  %v311 = vmul.f32 %v277, %v303
  %v312 = vmul.f32 %v279, %v303
  %v313 = vmul.f32 %v282, %v303
  %v314 = vmul.f32 %v284, %v303
  %v315 = vmul.f32 %v287, %v303
  %v316 = vmul.f32 %v289, %v303
  %v317 = vmul.f32 %v292, %v303
  %v318 = vmul.f32 %v294, %v303
  %v319 = vmul.f32 %v297, %v303
  %v320 = vmul.f32 %v299, %v303
  %v321 = vld [vmem:[%s3] sm:$0x1]
  %v323 = vperm.slane %v321, 0
  %v325 = vadd.f32 %v305, %v323
  %v326 = vadd.f32 %v306, %v323
  %v327 = vadd.f32 %v307, %v323
  %v328 = vadd.f32 %v308, %v323
  %v329 = vadd.f32 %v309, %v323
  %v330 = vadd.f32 %v310, %v323
  %v331 = vadd.f32 %v311, %v323
  %v332 = vadd.f32 %v312, %v323
  %v333 = vadd.f32 %v313, %v323
  %v334 = vadd.f32 %v314, %v323
  %v335 = vadd.f32 %v315, %v323
  %v336 = vadd.f32 %v316, %v323
  %v337 = vadd.f32 %v317, %v323
  %v338 = vadd.f32 %v318, %v323
  %v339 = vadd.f32 %v319, %v323
  %v340 = vadd.f32 %v320, %v323
  %v341 = vmax.f32 %v325, 0.0
  %v342 = vmax.f32 %v326, 0.0
  %v343 = vmax.f32 %v327, 0.0
  %v344 = vmax.f32 %v328, 0.0
  %v345 = vmax.f32 %v329, 0.0
  %v346 = vmax.f32 %v330, 0.0
  %v347 = vmax.f32 %v331, 0.0
  %v348 = vmax.f32 %v332, 0.0
  %v349 = vmax.f32 %v333, 0.0
  %v350 = vmax.f32 %v334, 0.0
  %v351 = vmax.f32 %v335, 0.0
  %v352 = vmax.f32 %v336, 0.0
  %v353 = vmax.f32 %v337, 0.0
  %v354 = vmax.f32 %v338, 0.0
  %v355 = vmax.f32 %v339, 0.0
  %v356 = vmax.f32 %v340, 0.0
  %vm357 = vcmask 261120
  %358 = vst.msk [vmem:[%s4] sm:$0xff] %vm357, %v341
  %359 = vst.msk [vmem:[%s4 + $0x8] sm:$0xff] %vm357, %v342
  %360 = vst.msk [vmem:[%s4 + $0x10] sm:$0xff] %vm357, %v343
  %361 = vst.msk [vmem:[%s4 + $0x18] sm:$0xff] %vm357, %v344
  %362 = vst.msk [vmem:[%s4 + $0x20] sm:$0xff] %vm357, %v345
  %363 = vst.msk [vmem:[%s4 + $0x28] sm:$0xff] %vm357, %v346
  %364 = vst.msk [vmem:[%s4 + $0x30] sm:$0xff] %vm357, %v347
  %365 = vst.msk [vmem:[%s4 + $0x38] sm:$0xff] %vm357, %v348
  %366 = vst.msk [vmem:[%s4 + $0x40] sm:$0xff] %vm357, %v349
  %367 = vst.msk [vmem:[%s4 + $0x48] sm:$0xff] %vm357, %v350
  %368 = vst.msk [vmem:[%s4 + $0x50] sm:$0xff] %vm357, %v351
  %369 = vst.msk [vmem:[%s4 + $0x58] sm:$0xff] %vm357, %v352
  %370 = vst.msk [vmem:[%s4 + $0x60] sm:$0xff] %vm357, %v353
  %371 = vst.msk [vmem:[%s4 + $0x68] sm:$0xff] %vm357, %v354
  %372 = vst.msk [vmem:[%s4 + $0x70] sm:$0xff] %vm357, %v355
  %373 = vst.msk [vmem:[%s4 + $0x78] sm:$0xff] %vm357, %v356
  // Predicated region
  $region18: #{map_branch_forward.10} parent=0 // pred_check
    _
  $region19: #{map_branch_forward.10} parent=0 // pred_check_branch
    %375 = sbr.rel (0) target = $region21
  $region20: #{map_branch_forward.10} parent=0 // pred_region
    _
  $region21: #{map_branch_forward.10} parent=0 // pred_fallthru
    _
  // Predicated region
  $region22: #{map_branch_forward.10} parent=0 // pred_check
    _
  $region23: #{map_branch_forward.10} parent=0 // pred_check_branch
    %377 = sbr.rel (0) target = $region25
  $region24: #{map_branch_forward.10} parent=0 // pred_region
    _
  $region25: #{map_branch_forward.10} parent=0 // pred_fallthru
    _

// kernel: map_branch_forward.12
$region0: #{map_branch_forward.12}
  #allocation0 [shape = 'u32[]', space=smem, size = 0x4, offset = 0x4, fixed_abs, tag = 'smem constant byte address 0x4 - core index']
  #allocation1 [shape = 'u32[72,128]{1,0:T(1,128)}', space=vmem, size = 0x9000, scoped, tag = 'internal scratch']
  %s0 = inlined_call_operand.vmem [shape: bf16[8,64], index: 0, kind: input, shape index: {}]
  %s1 = inlined_call_operand.vmem [shape: bf16[64,32], index: 1, kind: input, shape index: {}]
  %s2 = inlined_call_operand.vmem [shape: f32[1,32], index: 2, kind: input, shape index: {}]
  %s3 = inlined_call_operand.vmem [shape: f32[1,32], index: 3, kind: input, shape index: {}]
  %s4 = inlined_call_operand.vmem [shape: f32[8,32], index: 4, kind: output, shape index: {}]
  %s5 = sld [smem:[#allocation0]]
  $region26: #{map_branch_forward.12} parent=0
    _
  %s7 = ssub.s32 1, %s5
  %s8 = scalar_select 0, %s7, %s5
  // Predicated region
  $region2: #{map_branch_forward.12} parent=0 // pred_check
    _
  $region3: #{map_branch_forward.12} parent=0 // pred_check_branch
    %10 = sbr.rel (0) target = $region5
  $region4: #{map_branch_forward.12} parent=0 // pred_region
    _
  $region5: #{map_branch_forward.12} parent=0 // pred_fallthru
    _
  // Predicated region
  $region6: #{map_branch_forward.12} parent=0 // pred_check
    _
  $region7: #{map_branch_forward.12} parent=0 // pred_check_branch
    %12 = sbr.rel (0) target = $region9
  $region8: #{map_branch_forward.12} parent=0 // pred_region
    _
  $region9: #{map_branch_forward.12} parent=0 // pred_fallthru
    _
  // Predicated region
  $region10: #{map_branch_forward.12} parent=0 // pred_check
    _
  $region11: #{map_branch_forward.12} parent=0 // pred_check_branch
    %14 = sbr.rel (0) target = $region13
  $region12: #{map_branch_forward.12} parent=0 // pred_region
    _
  $region13: #{map_branch_forward.12} parent=0 // pred_fallthru
    _
  // Predicated region
  $region14: #{map_branch_forward.12} parent=0 // pred_check
    _
  $region15: #{map_branch_forward.12} parent=0 // pred_check_branch
    %16 = sbr.rel (0) target = $region17
  $region16: #{map_branch_forward.12} parent=0 // pred_region
    _
  $region17: #{map_branch_forward.12} parent=0 // pred_fallthru
    _
  %v18 = vld [vmem:[%s0] sm:$0xf]
  %v19 = vld [vmem:[%s1] sm:$0xf]
  %v20 = vld [vmem:[%s1 + $0x4] sm:$0xf]
  %v21 = vld [vmem:[%s1 + $0x8] sm:$0xf]
  %v22 = vld [vmem:[%s1 + $0xc] sm:$0xf]
  %v23 = vld [vmem:[%s1 + $0x10] sm:$0xf]
  %v24 = vld [vmem:[%s1 + $0x14] sm:$0xf]
  %v25 = vld [vmem:[%s1 + $0x18] sm:$0xf]
  %v26 = vld [vmem:[%s1 + $0x1c] sm:$0xf]
  %v35 = vunpack.c.l.b16 %v19
  %v36 = vunpack.c.l.b16 %v20
  %v37 = vunpack.c.l.b16 %v21
  %v38 = vunpack.c.l.b16 %v22
  %v39 = vunpack.c.l.b16 %v23
  %v40 = vunpack.c.l.b16 %v24
  %v41 = vunpack.c.l.b16 %v25
  %v42 = vunpack.c.l.b16 %v26
  %v43 = vpack.c.b16 %v36, %v35
  %v44 = vpack.c.b16 %v38, %v37
  %v45 = vpack.c.b16 %v40, %v39
  %v46 = vpack.c.b16 %v42, %v41
  %vm51 = vcmask 523264
  %v53 = vsel %vm51, %v18, 0
  %55 = vmatpush.bf16.msra.mxu0 0
  %56 = vmatpush.bf16.msra.mxu0 0
  %57 = vmatpush.bf16.msra.mxu0 0
  %58 = vmatpush.bf16.msra.mxu0 0
  %59 = vmatpush.bf16.msra.mxu0 %v46
  %60 = vmatpush.bf16.msra.mxu0 %v45
  %61 = vmatpush.bf16.msra.mxu0 %v44
  %62 = vmatpush.bf16.msra.mxu0 %v43
  %63 = vmatmul.bf16.gmra.mxu0 %v53
  %v64 = vpop.f32.mrf.mxu0
  %v65 = vadd.f32 0.0, %v64
  %v66 = vpop.f32.mrf.mxu0
  %67 = vdwg.mxu0
  %v68 = vld [vmem:[%s2] sm:$0x1]
  %v70 = vperm.slane %v68, 0
  %v72 = vmul.f32 %v65, %v70
  %v73 = vld [vmem:[%s3] sm:$0x1]
  %v75 = vperm.slane %v73, 0
  %v77 = vadd.f32 %v72, %v75
  %v78 = vxor.u32 %v77, 2147483648
  %v79 = vmul.f32 %v78, 1.442695
  %v80 = vpow.pop %v79
  %v81 = vadd.f32 %v80, 1.0
  %v82 = vrcp.pop %v81
  %v83 = vmul.f32 %v81, %v82
  %v84 = vsub.f32 1.0, %v83
  %v85 = vmul.f32 %v82, %v84
  %v86 = vadd.f32 %v82, %v85
  %vm87 = vweird.f32 %v81
  %vm88 = vweird.f32 %v82
  %vm89 = vmor %vm87, %vm88
  %v90 = vsel %vm89, %v82, %v86
  %v91 = vand.u32 2147483647, %v81
  %vm92 = vcmp.eq.f32.partialorder %v91, 8.507059e+37
  %v93 = vand.u32 %v81, 2147483648
  %v94 = vor.u32 1.1754944e-38, %v93
  %v95 = vsel %vm92, %v94, %v90
  %v96 = vmul.f32 1.0, %v95
  %vm97 = vcmask 261120
  %98 = vst.msk [vmem:[%s4] sm:$0xff] %vm97, %v96
  // Predicated region
  $region18: #{map_branch_forward.12} parent=0 // pred_check
    _
  $region19: #{map_branch_forward.12} parent=0 // pred_check_branch
    %100 = sbr.rel (0) target = $region21
  $region20: #{map_branch_forward.12} parent=0 // pred_region
    _
  $region21: #{map_branch_forward.12} parent=0 // pred_fallthru
    _
  // Predicated region
  $region22: #{map_branch_forward.12} parent=0 // pred_check
    _
  $region23: #{map_branch_forward.12} parent=0 // pred_check_branch
    %102 = sbr.rel (0) target = $region25
  $region24: #{map_branch_forward.12} parent=0 // pred_region
    _
  $region25: #{map_branch_forward.12} parent=0 // pred_fallthru
    _

// kernel: map_branch_forward.11
$region0: #{map_branch_forward.11}
  #allocation0 [shape = 'u32[]', space=smem, size = 0x4, offset = 0x4, fixed_abs, tag = 'smem constant byte address 0x4 - core index']
  #allocation1 [shape = 'u32[72,128]{1,0:T(1,128)}', space=vmem, size = 0x9000, scoped, tag = 'internal scratch']
  %s0 = inlined_call_operand.vmem [shape: bf16[8,512], index: 0, kind: input, shape index: {}]
  %s1 = inlined_call_operand.vmem [shape: bf16[512,64], index: 1, kind: input, shape index: {}]
  %s2 = inlined_call_operand.vmem [shape: f32[1,64], index: 2, kind: input, shape index: {}]
  %s3 = inlined_call_operand.vmem [shape: f32[1,64], index: 3, kind: input, shape index: {}]
  %s4 = inlined_call_operand.vmem [shape: f32[8,64], index: 4, kind: output, shape index: {}]
  %s5 = sld [smem:[#allocation0]]
  $region26: #{map_branch_forward.11} parent=0
    _
  %s7 = ssub.s32 1, %s5
  %s8 = scalar_select 0, %s7, %s5
  // Predicated region
  $region2: #{map_branch_forward.11} parent=0 // pred_check
    _
  $region3: #{map_branch_forward.11} parent=0 // pred_check_branch
    %10 = sbr.rel (0) target = $region5
  $region4: #{map_branch_forward.11} parent=0 // pred_region
    _
  $region5: #{map_branch_forward.11} parent=0 // pred_fallthru
    _
  // Predicated region
  $region6: #{map_branch_forward.11} parent=0 // pred_check
    _
  $region7: #{map_branch_forward.11} parent=0 // pred_check_branch
    %12 = sbr.rel (0) target = $region9
  $region8: #{map_branch_forward.11} parent=0 // pred_region
    _
  $region9: #{map_branch_forward.11} parent=0 // pred_fallthru
    _
  // Predicated region
  $region10: #{map_branch_forward.11} parent=0 // pred_check
    _
  $region11: #{map_branch_forward.11} parent=0 // pred_check_branch
    %14 = sbr.rel (0) target = $region13
  $region12: #{map_branch_forward.11} parent=0 // pred_region
    _
  $region13: #{map_branch_forward.11} parent=0 // pred_fallthru
    _
  // Predicated region
  $region14: #{map_branch_forward.11} parent=0 // pred_check
    _
  $region15: #{map_branch_forward.11} parent=0 // pred_check_branch
    %16 = sbr.rel (0) target = $region17
  $region16: #{map_branch_forward.11} parent=0 // pred_region
    _
  $region17: #{map_branch_forward.11} parent=0 // pred_fallthru
    _
  %v17 = vld [vmem:[%s0] sm:$0xff]
  %v18 = vld [vmem:[%s0 + $0x8] sm:$0xff]
  %v19 = vld [vmem:[%s1] sm:$0xf]
  %v20 = vld [vmem:[%s1 + $0x4] sm:$0xf]
  %v21 = vld [vmem:[%s1 + $0x8] sm:$0xf]
  %v22 = vld [vmem:[%s1 + $0xc] sm:$0xf]
  %v23 = vld [vmem:[%s1 + $0x10] sm:$0xf]
  %v24 = vld [vmem:[%s1 + $0x14] sm:$0xf]
  %v25 = vld [vmem:[%s1 + $0x18] sm:$0xf]
  %v26 = vld [vmem:[%s1 + $0x1c] sm:$0xf]
  %v27 = vld [vmem:[%s1 + $0x20] sm:$0xf]
  %v28 = vld [vmem:[%s1 + $0x24] sm:$0xf]
  %v29 = vld [vmem:[%s1 + $0x28] sm:$0xf]
  %v30 = vld [vmem:[%s1 + $0x2c] sm:$0xf]
  %v31 = vld [vmem:[%s1 + $0x30] sm:$0xf]
  %v32 = vld [vmem:[%s1 + $0x34] sm:$0xf]
  %v33 = vld [vmem:[%s1 + $0x38] sm:$0xf]
  %v34 = vld [vmem:[%s1 + $0x3c] sm:$0xf]
  %v35 = vld [vmem:[%s1 + $0x40] sm:$0xf]
  %v36 = vld [vmem:[%s1 + $0x44] sm:$0xf]
  %v37 = vld [vmem:[%s1 + $0x48] sm:$0xf]
  %v38 = vld [vmem:[%s1 + $0x4c] sm:$0xf]
  %v39 = vld [vmem:[%s1 + $0x50] sm:$0xf]
  %v40 = vld [vmem:[%s1 + $0x54] sm:$0xf]
  %v41 = vld [vmem:[%s1 + $0x58] sm:$0xf]
  %v42 = vld [vmem:[%s1 + $0x5c] sm:$0xf]
  %v43 = vld [vmem:[%s1 + $0x60] sm:$0xf]
  %v44 = vld [vmem:[%s1 + $0x64] sm:$0xf]
  %v45 = vld [vmem:[%s1 + $0x68] sm:$0xf]
  %v46 = vld [vmem:[%s1 + $0x6c] sm:$0xf]
  %v47 = vld [vmem:[%s1 + $0x70] sm:$0xf]
  %v48 = vld [vmem:[%s1 + $0x74] sm:$0xf]
  %v49 = vld [vmem:[%s1 + $0x78] sm:$0xf]
  %v50 = vld [vmem:[%s1 + $0x7c] sm:$0xf]
  %v51 = vld [vmem:[%s1 + $0x80] sm:$0xf]
  %v52 = vld [vmem:[%s1 + $0x84] sm:$0xf]
  %v53 = vld [vmem:[%s1 + $0x88] sm:$0xf]
  %v54 = vld [vmem:[%s1 + $0x8c] sm:$0xf]
  %v55 = vld [vmem:[%s1 + $0x90] sm:$0xf]
  %v56 = vld [vmem:[%s1 + $0x94] sm:$0xf]
  %v57 = vld [vmem:[%s1 + $0x98] sm:$0xf]
  %v58 = vld [vmem:[%s1 + $0x9c] sm:$0xf]
  %v59 = vld [vmem:[%s1 + $0xa0] sm:$0xf]
  %v60 = vld [vmem:[%s1 + $0xa4] sm:$0xf]
  %v61 = vld [vmem:[%s1 + $0xa8] sm:$0xf]
  %v62 = vld [vmem:[%s1 + $0xac] sm:$0xf]
  %v63 = vld [vmem:[%s1 + $0xb0] sm:$0xf]
  %v64 = vld [vmem:[%s1 + $0xb4] sm:$0xf]
  %v65 = vld [vmem:[%s1 + $0xb8] sm:$0xf]
  %v66 = vld [vmem:[%s1 + $0xbc] sm:$0xf]
  %v67 = vld [vmem:[%s1 + $0xc0] sm:$0xf]
  %v68 = vld [vmem:[%s1 + $0xc4] sm:$0xf]
  %v69 = vld [vmem:[%s1 + $0xc8] sm:$0xf]
  %v70 = vld [vmem:[%s1 + $0xcc] sm:$0xf]
  %v71 = vld [vmem:[%s1 + $0xd0] sm:$0xf]
  %v72 = vld [vmem:[%s1 + $0xd4] sm:$0xf]
  %v73 = vld [vmem:[%s1 + $0xd8] sm:$0xf]
  %v74 = vld [vmem:[%s1 + $0xdc] sm:$0xf]
  %v75 = vld [vmem:[%s1 + $0xe0] sm:$0xf]
  %v76 = vld [vmem:[%s1 + $0xe4] sm:$0xf]
  %v77 = vld [vmem:[%s1 + $0xe8] sm:$0xf]
  %v78 = vld [vmem:[%s1 + $0xec] sm:$0xf]
  %v79 = vld [vmem:[%s1 + $0xf0] sm:$0xf]
  %v80 = vld [vmem:[%s1 + $0xf4] sm:$0xf]
  %v81 = vld [vmem:[%s1 + $0xf8] sm:$0xf]
  %v82 = vld [vmem:[%s1 + $0xfc] sm:$0xf]
  %v85 = vunpack.c.l.b16 %v17
  %v86 = vunpack.c.h.b16 %v17
  %v87 = vunpack.c.l.b16 %v18
  %v88 = vunpack.c.h.b16 %v18
  %v89 = vpack.c.b16 %v85, %v85
  %v90 = vpack.c.b16 %v86, %v86
  %v91 = vpack.c.b16 %v87, %v87
  %v92 = vpack.c.b16 %v88, %v88
  %v161 = vunpack.c.l.b16 %v19
  %v162 = vunpack.c.l.b16 %v20
  %v163 = vunpack.c.l.b16 %v21
  %v164 = vunpack.c.l.b16 %v22
  %v165 = vunpack.c.l.b16 %v23
  %v166 = vunpack.c.l.b16 %v24
  %v167 = vunpack.c.l.b16 %v25
  %v168 = vunpack.c.l.b16 %v26
  %v169 = vunpack.c.l.b16 %v27
  %v170 = vunpack.c.l.b16 %v28
  %v171 = vunpack.c.l.b16 %v29
  %v172 = vunpack.c.l.b16 %v30
  %v173 = vunpack.c.l.b16 %v31
  %v174 = vunpack.c.l.b16 %v32
  %v175 = vunpack.c.l.b16 %v33
  %v176 = vunpack.c.l.b16 %v34
  %v177 = vunpack.c.l.b16 %v35
  %v178 = vunpack.c.l.b16 %v36
  %v179 = vunpack.c.l.b16 %v37
  %v180 = vunpack.c.l.b16 %v38
  %v181 = vunpack.c.l.b16 %v39
  %v182 = vunpack.c.l.b16 %v40
  %v183 = vunpack.c.l.b16 %v41
  %v184 = vunpack.c.l.b16 %v42
  %v185 = vunpack.c.l.b16 %v43
  %v186 = vunpack.c.l.b16 %v44
  %v187 = vunpack.c.l.b16 %v45
  %v188 = vunpack.c.l.b16 %v46
  %v189 = vunpack.c.l.b16 %v47
  %v190 = vunpack.c.l.b16 %v48
  %v191 = vunpack.c.l.b16 %v49
  %v192 = vunpack.c.l.b16 %v50
  %v193 = vunpack.c.l.b16 %v51
  %v194 = vunpack.c.l.b16 %v52
  %v195 = vunpack.c.l.b16 %v53
  %v196 = vunpack.c.l.b16 %v54
  %v197 = vunpack.c.l.b16 %v55
  %v198 = vunpack.c.l.b16 %v56
  %v199 = vunpack.c.l.b16 %v57
  %v200 = vunpack.c.l.b16 %v58
  %v201 = vunpack.c.l.b16 %v59
  %v202 = vunpack.c.l.b16 %v60
  %v203 = vunpack.c.l.b16 %v61
  %v204 = vunpack.c.l.b16 %v62
  %v205 = vunpack.c.l.b16 %v63
  %v206 = vunpack.c.l.b16 %v64
  %v207 = vunpack.c.l.b16 %v65
  %v208 = vunpack.c.l.b16 %v66
  %v209 = vunpack.c.l.b16 %v67
  %v210 = vunpack.c.l.b16 %v68
  %v211 = vunpack.c.l.b16 %v69
  %v212 = vunpack.c.l.b16 %v70
  %v213 = vunpack.c.l.b16 %v71
  %v214 = vunpack.c.l.b16 %v72
  %v215 = vunpack.c.l.b16 %v73
  %v216 = vunpack.c.l.b16 %v74
  %v217 = vunpack.c.l.b16 %v75
  %v218 = vunpack.c.l.b16 %v76
  %v219 = vunpack.c.l.b16 %v77
  %v220 = vunpack.c.l.b16 %v78
  %v221 = vunpack.c.l.b16 %v79
  %v222 = vunpack.c.l.b16 %v80
  %v223 = vunpack.c.l.b16 %v81
  %v224 = vunpack.c.l.b16 %v82
  %v225 = vpack.c.b16 %v162, %v161
  %v226 = vpack.c.b16 %v164, %v163
  %v227 = vpack.c.b16 %v166, %v165
  %v228 = vpack.c.b16 %v168, %v167
  %v229 = vpack.c.b16 %v170, %v169
  %v230 = vpack.c.b16 %v172, %v171
  %v231 = vpack.c.b16 %v174, %v173
  %v232 = vpack.c.b16 %v176, %v175
  %v233 = vpack.c.b16 %v178, %v177
  %v234 = vpack.c.b16 %v180, %v179
  %v235 = vpack.c.b16 %v182, %v181
  %v236 = vpack.c.b16 %v184, %v183
  %v237 = vpack.c.b16 %v186, %v185
  %v238 = vpack.c.b16 %v188, %v187
  %v239 = vpack.c.b16 %v190, %v189
  %v240 = vpack.c.b16 %v192, %v191
  %v241 = vpack.c.b16 %v194, %v193
  %v242 = vpack.c.b16 %v196, %v195
  %v243 = vpack.c.b16 %v198, %v197
  %v244 = vpack.c.b16 %v200, %v199
  %v245 = vpack.c.b16 %v202, %v201
  %v246 = vpack.c.b16 %v204, %v203
  %v247 = vpack.c.b16 %v206, %v205
  %v248 = vpack.c.b16 %v208, %v207
  %v249 = vpack.c.b16 %v210, %v209
  %v250 = vpack.c.b16 %v212, %v211
  %v251 = vpack.c.b16 %v214, %v213
  %v252 = vpack.c.b16 %v216, %v215
  %v253 = vpack.c.b16 %v218, %v217
  %v254 = vpack.c.b16 %v220, %v219
  %v255 = vpack.c.b16 %v222, %v221
  %v256 = vpack.c.b16 %v224, %v223
  %289 = vmatpush.bf16.msra.mxu0 %v232
  %290 = vmatpush.bf16.msra.mxu0 %v231
  %291 = vmatpush.bf16.msra.mxu0 %v230
  %292 = vmatpush.bf16.msra.mxu0 %v229
  %293 = vmatpush.bf16.msra.mxu0 %v228
  %294 = vmatpush.bf16.msra.mxu0 %v227
  %295 = vmatpush.bf16.msra.mxu0 %v226
  %296 = vmatpush.bf16.msra.mxu0 %v225
  %297 = vmatmul.bf16.gmra.mxu0 %v89
  %v298 = vpop.f32.mrf.mxu0
  %v299 = vadd.f32 0.0, %v298
  %v300 = vpop.f32.mrf.mxu0
  %301 = vdwg.mxu0
  %302 = vmatpush.bf16.msra.mxu0 %v240
  %303 = vmatpush.bf16.msra.mxu0 %v239
  %304 = vmatpush.bf16.msra.mxu0 %v238
  %305 = vmatpush.bf16.msra.mxu0 %v237
  %306 = vmatpush.bf16.msra.mxu0 %v236
  %307 = vmatpush.bf16.msra.mxu0 %v235
  %308 = vmatpush.bf16.msra.mxu0 %v234
  %309 = vmatpush.bf16.msra.mxu0 %v233
  %310 = vmatmul.bf16.gmra.mxu0 %v90
  %v311 = vpop.f32.mrf.mxu0
  %v312 = vadd.f32 %v299, %v311
  %v313 = vpop.f32.mrf.mxu0
  %314 = vdwg.mxu0
  %315 = vmatpush.bf16.msra.mxu0 %v248
  %316 = vmatpush.bf16.msra.mxu0 %v247
  %317 = vmatpush.bf16.msra.mxu0 %v246
  %318 = vmatpush.bf16.msra.mxu0 %v245
  %319 = vmatpush.bf16.msra.mxu0 %v244
  %320 = vmatpush.bf16.msra.mxu0 %v243
  %321 = vmatpush.bf16.msra.mxu0 %v242
  %322 = vmatpush.bf16.msra.mxu0 %v241
  %323 = vmatmul.bf16.gmra.mxu0 %v91
  %v324 = vpop.f32.mrf.mxu0
  %v325 = vadd.f32 %v312, %v324
  %v326 = vpop.f32.mrf.mxu0
  %327 = vdwg.mxu0
  %328 = vmatpush.bf16.msra.mxu0 %v256
  %329 = vmatpush.bf16.msra.mxu0 %v255
  %330 = vmatpush.bf16.msra.mxu0 %v254
  %331 = vmatpush.bf16.msra.mxu0 %v253
  %332 = vmatpush.bf16.msra.mxu0 %v252
  %333 = vmatpush.bf16.msra.mxu0 %v251
  %334 = vmatpush.bf16.msra.mxu0 %v250
  %335 = vmatpush.bf16.msra.mxu0 %v249
  %336 = vmatmul.bf16.gmra.mxu0 %v92
  %v337 = vpop.f32.mrf.mxu0
  %v338 = vadd.f32 %v325, %v337
  %v339 = vpop.f32.mrf.mxu0
  %340 = vdwg.mxu0
  %v341 = vld [vmem:[%s2] sm:$0x1]
  %v343 = vperm.slane %v341, 0
  %v345 = vmul.f32 %v338, %v343
  %v346 = vld [vmem:[%s3] sm:$0x1]
  %v348 = vperm.slane %v346, 0
  %v350 = vadd.f32 %v345, %v348
  %v351 = vxor.u32 %v350, 2147483648
  %v352 = vmul.f32 %v351, 1.442695
  %v353 = vpow.pop %v352
  %v354 = vadd.f32 %v353, 1.0
  %v355 = vrcp.pop %v354
  %v356 = vmul.f32 %v354, %v355
  %v357 = vsub.f32 1.0, %v356
  %v358 = vmul.f32 %v355, %v357
  %v359 = vadd.f32 %v355, %v358
  %vm360 = vweird.f32 %v354
  %vm361 = vweird.f32 %v355
  %vm362 = vmor %vm360, %vm361
  %v363 = vsel %vm362, %v355, %v359
  %v364 = vand.u32 2147483647, %v354
  %vm365 = vcmp.eq.f32.partialorder %v364, 8.507059e+37
  %v366 = vand.u32 %v354, 2147483648
  %v367 = vor.u32 1.1754944e-38, %v366
  %v368 = vsel %vm365, %v367, %v363
  %v369 = vmul.f32 1.0, %v368
  %vm370 = vcmask 523264
  %371 = vst.msk [vmem:[%s4] sm:$0xff] %vm370, %v369
  // Predicated region
  $region18: #{map_branch_forward.11} parent=0 // pred_check
    _
  $region19: #{map_branch_forward.11} parent=0 // pred_check_branch
    %373 = sbr.rel (0) target = $region21
  $region20: #{map_branch_forward.11} parent=0 // pred_region
    _
  $region21: #{map_branch_forward.11} parent=0 // pred_fallthru
    _
  // Predicated region
  $region22: #{map_branch_forward.11} parent=0 // pred_check
    _
  $region23: #{map_branch_forward.11} parent=0 // pred_check_branch
    %375 = sbr.rel (0) target = $region25
  $region24: #{map_branch_forward.11} parent=0 // pred_region
    _
  $region25: #{map_branch_forward.11} parent=0 // pred_fallthru
    _

// kernel: map_branch_forward.13
$region0: #{map_branch_forward.13}
  #allocation0 [shape = 'u32[]', space=smem, size = 0x4, offset = 0x4, fixed_abs, tag = 'smem constant byte address 0x4 - core index']
  #allocation1 [shape = 'u32[72,128]{1,0:T(1,128)}', space=vmem, size = 0x9000, scoped, tag = 'internal scratch']
  %s0 = inlined_call_operand.vmem [shape: bf16[128,288], index: 0, kind: input, shape index: {}]
  %s1 = inlined_call_operand.vmem [shape: bf16[288,16], index: 1, kind: input, shape index: {}]
  %s2 = inlined_call_operand.vmem [shape: f32[1,16], index: 2, kind: input, shape index: {}]
  %s3 = inlined_call_operand.vmem [shape: f32[1,16], index: 3, kind: input, shape index: {}]
  %s4 = inlined_call_operand.vmem [shape: f32[128,16], index: 4, kind: output, shape index: {}]
  %s5 = sld [smem:[#allocation0]]
  $region26: #{map_branch_forward.13} parent=0
    _
  %s7 = ssub.s32 1, %s5
  %s8 = scalar_select 0, %s7, %s5
  // Predicated region
  $region2: #{map_branch_forward.13} parent=0 // pred_check
    _
  $region3: #{map_branch_forward.13} parent=0 // pred_check_branch
    %10 = sbr.rel (0) target = $region5
  $region4: #{map_branch_forward.13} parent=0 // pred_region
    _
  $region5: #{map_branch_forward.13} parent=0 // pred_fallthru
    _
  // Predicated region
  $region6: #{map_branch_forward.13} parent=0 // pred_check
    _
  $region7: #{map_branch_forward.13} parent=0 // pred_check_branch
    %12 = sbr.rel (0) target = $region9
  $region8: #{map_branch_forward.13} parent=0 // pred_region
    _
  $region9: #{map_branch_forward.13} parent=0 // pred_fallthru
    _
  // Predicated region
  $region10: #{map_branch_forward.13} parent=0 // pred_check
    _
  $region11: #{map_branch_forward.13} parent=0 // pred_check_branch
    %14 = sbr.rel (0) target = $region13
  $region12: #{map_branch_forward.13} parent=0 // pred_region
    _
  $region13: #{map_branch_forward.13} parent=0 // pred_fallthru
    _
  // Predicated region
  $region14: #{map_branch_forward.13} parent=0 // pred_check
    _
  $region15: #{map_branch_forward.13} parent=0 // pred_check_branch
    %16 = sbr.rel (0) target = $region17
  $region16: #{map_branch_forward.13} parent=0 // pred_region
    _
  $region17: #{map_branch_forward.13} parent=0 // pred_fallthru
    _
  %v18 = vld [vmem:[%s0] sm:$0xff]
  %v19 = vld [vmem:[%s0 + $0x8] sm:$0xf]
  %v20 = vld [vmem:[%s0 + $0xc] sm:$0xff]
  %v21 = vld [vmem:[%s0 + $0x14] sm:$0xf]
  %v22 = vld [vmem:[%s0 + $0x18] sm:$0xff]
  %v23 = vld [vmem:[%s0 + $0x20] sm:$0xf]
  %v24 = vld [vmem:[%s0 + $0x24] sm:$0xff]
  %v25 = vld [vmem:[%s0 + $0x2c] sm:$0xf]
  %v26 = vld [vmem:[%s0 + $0x30] sm:$0xff]
  %v27 = vld [vmem:[%s0 + $0x38] sm:$0xf]
  %v28 = vld [vmem:[%s0 + $0x3c] sm:$0xff]
  %v29 = vld [vmem:[%s0 + $0x44] sm:$0xf]
  %v30 = vld [vmem:[%s0 + $0x48] sm:$0xff]
  %v31 = vld [vmem:[%s0 + $0x50] sm:$0xf]
  %v32 = vld [vmem:[%s0 + $0x54] sm:$0xff]
  %v33 = vld [vmem:[%s0 + $0x5c] sm:$0xf]
  %v34 = vld [vmem:[%s0 + $0x60] sm:$0xff]
  %v35 = vld [vmem:[%s0 + $0x68] sm:$0xf]
  %v36 = vld [vmem:[%s0 + $0x6c] sm:$0xff]
  %v37 = vld [vmem:[%s0 + $0x74] sm:$0xf]
  %v38 = vld [vmem:[%s0 + $0x78] sm:$0xff]
  %v39 = vld [vmem:[%s0 + $0x80] sm:$0xf]
  %v40 = vld [vmem:[%s0 + $0x84] sm:$0xff]
  %v41 = vld [vmem:[%s0 + $0x8c] sm:$0xf]
  %v42 = vld [vmem:[%s0 + $0x90] sm:$0xff]
  %v43 = vld [vmem:[%s0 + $0x98] sm:$0xf]
  %v44 = vld [vmem:[%s0 + $0x9c] sm:$0xff]
  %v45 = vld [vmem:[%s0 + $0xa4] sm:$0xf]
  %v46 = vld [vmem:[%s0 + $0xa8] sm:$0xff]
  %v47 = vld [vmem:[%s0 + $0xb0] sm:$0xf]
  %v48 = vld [vmem:[%s0 + $0xb4] sm:$0xff]
  %v49 = vld [vmem:[%s0 + $0xbc] sm:$0xf]
  %v50 = vld [vmem:[%s1] sm:$0xf]
  %v51 = vld [vmem:[%s1 + $0x4] sm:$0xf]
  %v52 = vld [vmem:[%s1 + $0x8] sm:$0xf]
  %v53 = vld [vmem:[%s1 + $0xc] sm:$0xf]
  %v54 = vld [vmem:[%s1 + $0x10] sm:$0xf]
  %v55 = vld [vmem:[%s1 + $0x14] sm:$0xf]
  %v56 = vld [vmem:[%s1 + $0x18] sm:$0xf]
  %v57 = vld [vmem:[%s1 + $0x1c] sm:$0xf]
  %v58 = vld [vmem:[%s1 + $0x20] sm:$0xf]
  %v59 = vld [vmem:[%s1 + $0x24] sm:$0xf]
  %v60 = vld [vmem:[%s1 + $0x28] sm:$0xf]
  %v61 = vld [vmem:[%s1 + $0x2c] sm:$0xf]
  %v62 = vld [vmem:[%s1 + $0x30] sm:$0xf]
  %v63 = vld [vmem:[%s1 + $0x34] sm:$0xf]
  %v64 = vld [vmem:[%s1 + $0x38] sm:$0xf]
  %v65 = vld [vmem:[%s1 + $0x3c] sm:$0xf]
  %v66 = vld [vmem:[%s1 + $0x40] sm:$0xf]
  %v67 = vld [vmem:[%s1 + $0x44] sm:$0xf]
  %v68 = vld [vmem:[%s1 + $0x48] sm:$0xf]
  %v69 = vld [vmem:[%s1 + $0x4c] sm:$0xf]
  %v70 = vld [vmem:[%s1 + $0x50] sm:$0xf]
  %v71 = vld [vmem:[%s1 + $0x54] sm:$0xf]
  %v72 = vld [vmem:[%s1 + $0x58] sm:$0xf]
  %v73 = vld [vmem:[%s1 + $0x5c] sm:$0xf]
  %v74 = vld [vmem:[%s1 + $0x60] sm:$0xf]
  %v75 = vld [vmem:[%s1 + $0x64] sm:$0xf]
  %v76 = vld [vmem:[%s1 + $0x68] sm:$0xf]
  %v77 = vld [vmem:[%s1 + $0x6c] sm:$0xf]
  %v78 = vld [vmem:[%s1 + $0x70] sm:$0xf]
  %v79 = vld [vmem:[%s1 + $0x74] sm:$0xf]
  %v80 = vld [vmem:[%s1 + $0x78] sm:$0xf]
  %v81 = vld [vmem:[%s1 + $0x7c] sm:$0xf]
  %v82 = vld [vmem:[%s1 + $0x80] sm:$0xf]
  %v83 = vld [vmem:[%s1 + $0x84] sm:$0xf]
  %v84 = vld [vmem:[%s1 + $0x88] sm:$0xf]
  %v85 = vld [vmem:[%s1 + $0x8c] sm:$0xf]
  %v118 = vunpack.c.l.b16 %v18
  %v119 = vunpack.c.h.b16 %v18
  %v120 = vunpack.c.l.b16 %v19
  %v121 = vunpack.c.l.b16 %v20
  %v122 = vunpack.c.h.b16 %v20
  %v123 = vunpack.c.l.b16 %v21
  %v124 = vunpack.c.l.b16 %v22
  %v125 = vunpack.c.h.b16 %v22
  %v126 = vunpack.c.l.b16 %v23
  %v127 = vunpack.c.l.b16 %v24
  %v128 = vunpack.c.h.b16 %v24
  %v129 = vunpack.c.l.b16 %v25
  %v130 = vunpack.c.l.b16 %v26
  %v131 = vunpack.c.h.b16 %v26
  %v132 = vunpack.c.l.b16 %v27
  %v133 = vunpack.c.l.b16 %v28
  %v134 = vunpack.c.h.b16 %v28
  %v135 = vunpack.c.l.b16 %v29
  %v136 = vunpack.c.l.b16 %v30
  %v137 = vunpack.c.h.b16 %v30
  %v138 = vunpack.c.l.b16 %v31
  %v139 = vunpack.c.l.b16 %v32
  %v140 = vunpack.c.h.b16 %v32
  %v141 = vunpack.c.l.b16 %v33
  %v142 = vunpack.c.l.b16 %v34
  %v143 = vunpack.c.h.b16 %v34
  %v144 = vunpack.c.l.b16 %v35
  %v145 = vunpack.c.l.b16 %v36
  %v146 = vunpack.c.h.b16 %v36
  %v147 = vunpack.c.l.b16 %v37
  %v148 = vunpack.c.l.b16 %v38
  %v149 = vunpack.c.h.b16 %v38
  %v150 = vunpack.c.l.b16 %v39
  %v151 = vunpack.c.l.b16 %v40
  %v152 = vunpack.c.h.b16 %v40
  %v153 = vunpack.c.l.b16 %v41
  %v154 = vunpack.c.l.b16 %v42
  %v155 = vunpack.c.h.b16 %v42
  %v156 = vunpack.c.l.b16 %v43
  %v157 = vunpack.c.l.b16 %v44
  %v158 = vunpack.c.h.b16 %v44
  %v159 = vunpack.c.l.b16 %v45
  %v160 = vunpack.c.l.b16 %v46
  %v161 = vunpack.c.h.b16 %v46
  %v162 = vunpack.c.l.b16 %v47
  %v163 = vunpack.c.l.b16 %v48
  %v164 = vunpack.c.h.b16 %v48
  %v165 = vunpack.c.l.b16 %v49
  %v166 = vpack.c.b16 %v121, %v118
  %v167 = vpack.c.b16 %v122, %v119
  %v168 = vpack.c.b16 %v123, %v120
  %v169 = vpack.c.b16 %v127, %v124
  %v170 = vpack.c.b16 %v128, %v125
  %v171 = vpack.c.b16 %v129, %v126
  %v172 = vpack.c.b16 %v133, %v130
  %v173 = vpack.c.b16 %v134, %v131
  %v174 = vpack.c.b16 %v135, %v132
  %v175 = vpack.c.b16 %v139, %v136
  %v176 = vpack.c.b16 %v140, %v137
  %v177 = vpack.c.b16 %v141, %v138
  %v178 = vpack.c.b16 %v145, %v142
  %v179 = vpack.c.b16 %v146, %v143
  %v180 = vpack.c.b16 %v147, %v144
  %v181 = vpack.c.b16 %v151, %v148
  %v182 = vpack.c.b16 %v152, %v149
  %v183 = vpack.c.b16 %v153, %v150
  %v184 = vpack.c.b16 %v157, %v154
  %v185 = vpack.c.b16 %v158, %v155
  %v186 = vpack.c.b16 %v159, %v156
  %v187 = vpack.c.b16 %v163, %v160
  %v188 = vpack.c.b16 %v164, %v161
  %v189 = vpack.c.b16 %v165, %v162
  %v242 = vunpack.c.l.b16 %v50
  %v243 = vunpack.c.l.b16 %v51
  %v244 = vunpack.c.l.b16 %v52
  %v245 = vunpack.c.l.b16 %v53
  %v246 = vunpack.c.l.b16 %v54
  %v247 = vunpack.c.l.b16 %v55
  %v248 = vunpack.c.l.b16 %v56
  %v249 = vunpack.c.l.b16 %v57
  %v250 = vunpack.c.l.b16 %v58
  %v251 = vunpack.c.l.b16 %v59
  %v252 = vunpack.c.l.b16 %v60
  %v253 = vunpack.c.l.b16 %v61
  %v254 = vunpack.c.l.b16 %v62
  %v255 = vunpack.c.l.b16 %v63
  %v256 = vunpack.c.l.b16 %v64
  %v257 = vunpack.c.l.b16 %v65
  %v258 = vunpack.c.l.b16 %v66
  %v259 = vunpack.c.l.b16 %v67
  %v260 = vunpack.c.l.b16 %v68
  %v261 = vunpack.c.l.b16 %v69
  %v262 = vunpack.c.l.b16 %v70
  %v263 = vunpack.c.l.b16 %v71
  %v264 = vunpack.c.l.b16 %v72
  %v265 = vunpack.c.l.b16 %v73
  %v266 = vunpack.c.l.b16 %v74
  %v267 = vunpack.c.l.b16 %v75
  %v268 = vunpack.c.l.b16 %v76
  %v269 = vunpack.c.l.b16 %v77
  %v270 = vunpack.c.l.b16 %v78
  %v271 = vunpack.c.l.b16 %v79
  %v272 = vunpack.c.l.b16 %v80
  %v273 = vunpack.c.l.b16 %v81
  %v274 = vunpack.c.l.b16 %v82
  %v275 = vunpack.c.l.b16 %v83
  %v276 = vunpack.c.l.b16 %v84
  %v277 = vunpack.c.l.b16 %v85
  %v278 = vpack.c.b16 %v243, %v242
  %v279 = vpack.c.b16 %v245, %v244
  %v280 = vpack.c.b16 %v247, %v246
  %v281 = vpack.c.b16 %v249, %v248
  %v282 = vpack.c.b16 %v251, %v250
  %v283 = vpack.c.b16 %v253, %v252
  %v284 = vpack.c.b16 %v255, %v254
  %v285 = vpack.c.b16 %v257, %v256
  %v286 = vpack.c.b16 %v259, %v258
  %v287 = vpack.c.b16 %v261, %v260
  %v288 = vpack.c.b16 %v263, %v262
  %v289 = vpack.c.b16 %v265, %v264
  %v290 = vpack.c.b16 %v267, %v266
  %v291 = vpack.c.b16 %v269, %v268
  %v292 = vpack.c.b16 %v271, %v270
  %v293 = vpack.c.b16 %v273, %v272
  %v294 = vpack.c.b16 %v275, %v274
  %v295 = vpack.c.b16 %v277, %v276
  %vm314 = vcmask 261120
  %v316 = vsel %vm314, %v168, 0
  %v319 = vsel %vm314, %v171, 0
  %v322 = vsel %vm314, %v174, 0
  %v325 = vsel %vm314, %v177, 0
  %v328 = vsel %vm314, %v180, 0
  %v331 = vsel %vm314, %v183, 0
  %v334 = vsel %vm314, %v186, 0
  %v337 = vsel %vm314, %v189, 0
  %339 = vmatpush.bf16.msra.mxu0 %v285
  %340 = vmatpush.bf16.msra.mxu0 %v284
  %341 = vmatpush.bf16.msra.mxu0 %v283
  %342 = vmatpush.bf16.msra.mxu0 %v282
  %343 = vmatpush.bf16.msra.mxu0 %v281
  %344 = vmatpush.bf16.msra.mxu0 %v280
  %345 = vmatpush.bf16.msra.mxu0 %v279
  %346 = vmatpush.bf16.msra.mxu0 %v278
  %347 = vmatmul.bf16.gmra.mxu0 %v166
  %v348 = vpop.f32.mrf.mxu0
  %v349 = vadd.f32 0.0, %v348
  %v350 = vpop.f32.mrf.mxu0
  %v351 = vadd.f32 0.0, %v350
  %352 = vmatmul.bf16.gmra.mxu0 %v169
  %v353 = vpop.f32.mrf.mxu0
  %v354 = vadd.f32 0.0, %v353
  %v355 = vpop.f32.mrf.mxu0
  %v356 = vadd.f32 0.0, %v355
  %357 = vmatmul.bf16.gmra.mxu0 %v172
  %v358 = vpop.f32.mrf.mxu0
  %v359 = vadd.f32 0.0, %v358
  %v360 = vpop.f32.mrf.mxu0
  %v361 = vadd.f32 0.0, %v360
  %362 = vmatmul.bf16.gmra.mxu0 %v175
  %v363 = vpop.f32.mrf.mxu0
  %v364 = vadd.f32 0.0, %v363
  %v365 = vpop.f32.mrf.mxu0
  %v366 = vadd.f32 0.0, %v365
  %367 = vmatmul.bf16.gmra.mxu0 %v178
  %v368 = vpop.f32.mrf.mxu0
  %v369 = vadd.f32 0.0, %v368
  %v370 = vpop.f32.mrf.mxu0
  %v371 = vadd.f32 0.0, %v370
  %372 = vmatmul.bf16.gmra.mxu0 %v181
  %v373 = vpop.f32.mrf.mxu0
  %v374 = vadd.f32 0.0, %v373
  %v375 = vpop.f32.mrf.mxu0
  %v376 = vadd.f32 0.0, %v375
  %377 = vmatmul.bf16.gmra.mxu0 %v184
  %v378 = vpop.f32.mrf.mxu0
  %v379 = vadd.f32 0.0, %v378
  %v380 = vpop.f32.mrf.mxu0
  %v381 = vadd.f32 0.0, %v380
  %382 = vmatmul.bf16.gmra.mxu0 %v187
  %v383 = vpop.f32.mrf.mxu0
  %v384 = vadd.f32 0.0, %v383
  %v385 = vpop.f32.mrf.mxu0
  %v386 = vadd.f32 0.0, %v385
  %387 = vdwg.mxu0
  %388 = vmatpush.bf16.msra.mxu0 %v293
  %389 = vmatpush.bf16.msra.mxu0 %v292
  %390 = vmatpush.bf16.msra.mxu0 %v291
  %391 = vmatpush.bf16.msra.mxu0 %v290
  %392 = vmatpush.bf16.msra.mxu0 %v289
  %393 = vmatpush.bf16.msra.mxu0 %v288
  %394 = vmatpush.bf16.msra.mxu0 %v287
  %395 = vmatpush.bf16.msra.mxu0 %v286
  %396 = vmatmul.bf16.gmra.mxu0 %v167
  %v397 = vpop.f32.mrf.mxu0
  %v398 = vadd.f32 %v349, %v397
  %v399 = vpop.f32.mrf.mxu0
  %v400 = vadd.f32 %v351, %v399
  %401 = vmatmul.bf16.gmra.mxu0 %v170
  %v402 = vpop.f32.mrf.mxu0
  %v403 = vadd.f32 %v354, %v402
  %v404 = vpop.f32.mrf.mxu0
  %v405 = vadd.f32 %v356, %v404
  %406 = vmatmul.bf16.gmra.mxu0 %v173
  %v407 = vpop.f32.mrf.mxu0
  %v408 = vadd.f32 %v359, %v407
  %v409 = vpop.f32.mrf.mxu0
  %v410 = vadd.f32 %v361, %v409
  %411 = vmatmul.bf16.gmra.mxu0 %v176
  %v412 = vpop.f32.mrf.mxu0
  %v413 = vadd.f32 %v364, %v412
  %v414 = vpop.f32.mrf.mxu0
  %v415 = vadd.f32 %v366, %v414
  %416 = vmatmul.bf16.gmra.mxu0 %v179
  %v417 = vpop.f32.mrf.mxu0
  %v418 = vadd.f32 %v369, %v417
  %v419 = vpop.f32.mrf.mxu0
  %v420 = vadd.f32 %v371, %v419
  %421 = vmatmul.bf16.gmra.mxu0 %v182
  %v422 = vpop.f32.mrf.mxu0
  %v423 = vadd.f32 %v374, %v422
  %v424 = vpop.f32.mrf.mxu0
  %v425 = vadd.f32 %v376, %v424
  %426 = vmatmul.bf16.gmra.mxu0 %v185
  %v427 = vpop.f32.mrf.mxu0
  %v428 = vadd.f32 %v379, %v427
  %v429 = vpop.f32.mrf.mxu0
  %v430 = vadd.f32 %v381, %v429
  %431 = vmatmul.bf16.gmra.mxu0 %v188
  %v432 = vpop.f32.mrf.mxu0
  %v433 = vadd.f32 %v384, %v432
  %v434 = vpop.f32.mrf.mxu0
  %v435 = vadd.f32 %v386, %v434
  %436 = vdwg.mxu0
  %437 = vmatpush.bf16.msra.mxu0 0
  %438 = vmatpush.bf16.msra.mxu0 0
  %439 = vmatpush.bf16.msra.mxu0 0
  %440 = vmatpush.bf16.msra.mxu0 0
  %441 = vmatpush.bf16.msra.mxu0 0
  %442 = vmatpush.bf16.msra.mxu0 0
  %443 = vmatpush.bf16.msra.mxu0 %v295
  %444 = vmatpush.bf16.msra.mxu0 %v294
  %445 = vmatmul.bf16.gmra.mxu0 %v316
  %v446 = vpop.f32.mrf.mxu0
  %v447 = vadd.f32 %v398, %v446
  %v448 = vpop.f32.mrf.mxu0
  %v449 = vadd.f32 %v400, %v448
  %450 = vmatmul.bf16.gmra.mxu0 %v319
  %v451 = vpop.f32.mrf.mxu0
  %v452 = vadd.f32 %v403, %v451
  %v453 = vpop.f32.mrf.mxu0
  %v454 = vadd.f32 %v405, %v453
  %455 = vmatmul.bf16.gmra.mxu0 %v322
  %v456 = vpop.f32.mrf.mxu0
  %v457 = vadd.f32 %v408, %v456
  %v458 = vpop.f32.mrf.mxu0
  %v459 = vadd.f32 %v410, %v458
  %460 = vmatmul.bf16.gmra.mxu0 %v325
  %v461 = vpop.f32.mrf.mxu0
  %v462 = vadd.f32 %v413, %v461
  %v463 = vpop.f32.mrf.mxu0
  %v464 = vadd.f32 %v415, %v463
  %465 = vmatmul.bf16.gmra.mxu0 %v328
  %v466 = vpop.f32.mrf.mxu0
  %v467 = vadd.f32 %v418, %v466
  %v468 = vpop.f32.mrf.mxu0
  %v469 = vadd.f32 %v420, %v468
  %470 = vmatmul.bf16.gmra.mxu0 %v331
  %v471 = vpop.f32.mrf.mxu0
  %v472 = vadd.f32 %v423, %v471
  %v473 = vpop.f32.mrf.mxu0
  %v474 = vadd.f32 %v425, %v473
  %475 = vmatmul.bf16.gmra.mxu0 %v334
  %v476 = vpop.f32.mrf.mxu0
  %v477 = vadd.f32 %v428, %v476
  %v478 = vpop.f32.mrf.mxu0
  %v479 = vadd.f32 %v430, %v478
  %480 = vmatmul.bf16.gmra.mxu0 %v337
  %v481 = vpop.f32.mrf.mxu0
  %v482 = vadd.f32 %v433, %v481
  %v483 = vpop.f32.mrf.mxu0
  %v484 = vadd.f32 %v435, %v483
  %485 = vdwg.mxu0
  %v486 = vld [vmem:[%s2] sm:$0x1]
  %v488 = vperm.slane %v486, 0
  %v490 = vmul.f32 %v447, %v488
  %v491 = vmul.f32 %v449, %v488
  %v492 = vmul.f32 %v452, %v488
  %v493 = vmul.f32 %v454, %v488
  %v494 = vmul.f32 %v457, %v488
  %v495 = vmul.f32 %v459, %v488
  %v496 = vmul.f32 %v462, %v488
  %v497 = vmul.f32 %v464, %v488
  %v498 = vmul.f32 %v467, %v488
  %v499 = vmul.f32 %v469, %v488
  %v500 = vmul.f32 %v472, %v488
  %v501 = vmul.f32 %v474, %v488
  %v502 = vmul.f32 %v477, %v488
  %v503 = vmul.f32 %v479, %v488
  %v504 = vmul.f32 %v482, %v488
  %v505 = vmul.f32 %v484, %v488
  %v506 = vld [vmem:[%s3] sm:$0x1]
  %v508 = vperm.slane %v506, 0
  %v510 = vadd.f32 %v490, %v508
  %v511 = vadd.f32 %v491, %v508
  %v512 = vadd.f32 %v492, %v508
  %v513 = vadd.f32 %v493, %v508
  %v514 = vadd.f32 %v494, %v508
  %v515 = vadd.f32 %v495, %v508
  %v516 = vadd.f32 %v496, %v508
  %v517 = vadd.f32 %v497, %v508
  %v518 = vadd.f32 %v498, %v508
  %v519 = vadd.f32 %v499, %v508
  %v520 = vadd.f32 %v500, %v508
  %v521 = vadd.f32 %v501, %v508
  %v522 = vadd.f32 %v502, %v508
  %v523 = vadd.f32 %v503, %v508
  %v524 = vadd.f32 %v504, %v508
  %v525 = vadd.f32 %v505, %v508
  %v526 = vmax.f32 %v510, 0.0
  %v527 = vmax.f32 %v511, 0.0
  %v528 = vmax.f32 %v512, 0.0
  %v529 = vmax.f32 %v513, 0.0
  %v530 = vmax.f32 %v514, 0.0
  %v531 = vmax.f32 %v515, 0.0
  %v532 = vmax.f32 %v516, 0.0
  %v533 = vmax.f32 %v517, 0.0
  %v534 = vmax.f32 %v518, 0.0
  %v535 = vmax.f32 %v519, 0.0
  %v536 = vmax.f32 %v520, 0.0
  %v537 = vmax.f32 %v521, 0.0
  %v538 = vmax.f32 %v522, 0.0
  %v539 = vmax.f32 %v523, 0.0
  %v540 = vmax.f32 %v524, 0.0
  %v541 = vmax.f32 %v525, 0.0
  %vm542 = vcmask 130048
  %543 = vst.msk [vmem:[%s4] sm:$0xff] %vm542, %v526
  %544 = vst.msk [vmem:[%s4 + $0x8] sm:$0xff] %vm542, %v527
  %545 = vst.msk [vmem:[%s4 + $0x10] sm:$0xff] %vm542, %v528
  %546 = vst.msk [vmem:[%s4 + $0x18] sm:$0xff] %vm542, %v529
  %547 = vst.msk [vmem:[%s4 + $0x20] sm:$0xff] %vm542, %v530
  %548 = vst.msk [vmem:[%s4 + $0x28] sm:$0xff] %vm542, %v531
  %549 = vst.msk [vmem:[%s4 + $0x30] sm:$0xff] %vm542, %v532
  %550 = vst.msk [vmem:[%s4 + $0x38] sm:$0xff] %vm542, %v533
  %551 = vst.msk [vmem:[%s4 + $0x40] sm:$0xff] %vm542, %v534
  %552 = vst.msk [vmem:[%s4 + $0x48] sm:$0xff] %vm542, %v535
  %553 = vst.msk [vmem:[%s4 + $0x50] sm:$0xff] %vm542, %v536
  %554 = vst.msk [vmem:[%s4 + $0x58] sm:$0xff] %vm542, %v537
  %555 = vst.msk [vmem:[%s4 + $0x60] sm:$0xff] %vm542, %v538
  %556 = vst.msk [vmem:[%s4 + $0x68] sm:$0xff] %vm542, %v539
  %557 = vst.msk [vmem:[%s4 + $0x70] sm:$0xff] %vm542, %v540
  %558 = vst.msk [vmem:[%s4 + $0x78] sm:$0xff] %vm542, %v541
  // Predicated region
  $region18: #{map_branch_forward.13} parent=0 // pred_check
    _
  $region19: #{map_branch_forward.13} parent=0 // pred_check_branch
    %560 = sbr.rel (0) target = $region21
  $region20: #{map_branch_forward.13} parent=0 // pred_region
    _
  $region21: #{map_branch_forward.13} parent=0 // pred_fallthru
    _
  // Predicated region
  $region22: #{map_branch_forward.13} parent=0 // pred_check
    _
  $region23: #{map_branch_forward.13} parent=0 // pred_check_branch
    %562 = sbr.rel (0) target = $region25
  $region24: #{map_branch_forward.13} parent=0 // pred_region
    _
  $region25: #{map_branch_forward.13} parent=0 // pred_fallthru
    _

// kernel: map_branch_forward.14
$region0: #{map_branch_forward.14}
  #allocation0 [shape = 'u32[]', space=smem, size = 0x4, offset = 0x4, fixed_abs, tag = 'smem constant byte address 0x4 - core index']
  #allocation1 [shape = 'u32[72,128]{1,0:T(1,128)}', space=vmem, size = 0x9000, scoped, tag = 'internal scratch']
  %s0 = inlined_call_operand.vmem [shape: bf16[512,144], index: 0, kind: input, shape index: {}]
  %s1 = inlined_call_operand.vmem [shape: bf16[144,8], index: 1, kind: input, shape index: {}]
  %s2 = inlined_call_operand.vmem [shape: f32[1,8], index: 2, kind: input, shape index: {}]
  %s3 = inlined_call_operand.vmem [shape: f32[1,8], index: 3, kind: input, shape index: {}]
  %s4 = inlined_call_operand.vmem [shape: f32[512,8], index: 4, kind: output, shape index: {}]
  %s5 = sld [smem:[#allocation0]]
  $region49: #{map_branch_forward.14} parent=0
    _
  %s7 = ssub.s32 1, %s5
  %s8 = scalar_select 0, %s7, %s5
  loop: start=0, step=1, limit=4
  $region2: #{map_branch_forward.14} parent=0 // loop_pre_header
    _
  $region3: #{map_branch_forward.14} parent=0 // loop_header
    %s10 = sphi 0, %s14
    %p11 = scmp.ge.s32.totalorder %s10, 4
    %s20 = sphi 0, %s22
    %s23 = sphi 0, %s20
    %s24 = sphi 0, %s23
    %s40 = sphi 0, %s24
    %s44 = sphi 0, %s44
    %s46 = sphi 0, %s44
    %s47 = sphi 0, %s46
    %s61 = sphi 0, %s47
    %s65 = sphi 0, %s65
    %s67 = sphi 0, %s65
    %s68 = sphi 0, %s67
    %s82 = sphi 0, %s68
    %s86 = sphi 0, %s86
    %s88 = sphi 0, %s86
    %s89 = sphi 0, %s88
    %s103 = sphi 0, %s89
    %s109 = sphi 0, %s111
    %s112 = sphi 0, %s109
    %s113 = sphi 0, %s112
    %s129 = sphi 0, %s113
  $region4: #{map_branch_forward.14} parent=0 // loop_header_branch
    %13 = sbr.rel (%p11) target = $region8
  $region5: #{map_branch_forward.14} parent=0 // loop_body
    %s15 = ssub.s32 %s10, 1
    %s16 = ssub.s32 %s10, 2
    %s17 = sadd.s32 %s10, 1
    %s18 = ssub.s32 %s10, %s17
    %p19 = scmp.eq.s32.totalorder %s18, 0
    %s21 = sadd.s32 %s20, 1
    %s22 = scalar_select %p19, %s20, %s21
    %p25 = pneg %p19
    %p26 = scmp.eq.s32.totalorder %s10, 1
    %p27 = por %p25, %p26
    %p28 = scmp.ne.s32.totalorder %s20, %s23
    %p29 = scmp.eq.s32.totalorder %s10, 0
    %p30 = por %p28, %p29
    %p31 = scmp.ne.s32.totalorder %s20, %s23
    %p32 = scmp.eq.s32.totalorder %s15, 1
    %p33 = por %p31, %p32
    %p34 = scmp.ne.s32.totalorder %s23, %s24
    %p35 = scmp.eq.s32.totalorder %s15, 0
    %p36 = por %p34, %p35
    %p37 = scmp.ne.s32.totalorder %s23, %s24
    %p38 = scmp.eq.s32.totalorder %s16, 1
    %p39 = por %p37, %p38
    %p41 = scmp.ne.s32.totalorder %s24, %s40
    %p42 = scmp.eq.s32.totalorder %s16, 0
    %p43 = por %p41, %p42
    %s45 = sadd.s32 %s44, 1
    %p48 = scmp.eq.s32.totalorder %s10, 1
    %p49 = scmp.ne.s32.totalorder %s44, %s46
    %p50 = scmp.eq.s32.totalorder %s10, 0
    %p51 = por %p49, %p50
    %p52 = scmp.ne.s32.totalorder %s44, %s46
    %p53 = scmp.eq.s32.totalorder %s15, 1
    %p54 = por %p52, %p53
    %p55 = scmp.ne.s32.totalorder %s46, %s47
    %p56 = scmp.eq.s32.totalorder %s15, 0
    %p57 = por %p55, %p56
    %p58 = scmp.ne.s32.totalorder %s46, %s47
    %p59 = scmp.eq.s32.totalorder %s16, 1
    %p60 = por %p58, %p59
    %p62 = scmp.ne.s32.totalorder %s47, %s61
    %p63 = scmp.eq.s32.totalorder %s16, 0
    %p64 = por %p62, %p63
    %s66 = sadd.s32 %s65, 1
    %p69 = scmp.eq.s32.totalorder %s10, 1
    %p70 = scmp.ne.s32.totalorder %s65, %s67
    %p71 = scmp.eq.s32.totalorder %s10, 0
    %p72 = por %p70, %p71
    %p73 = scmp.ne.s32.totalorder %s65, %s67
    %p74 = scmp.eq.s32.totalorder %s15, 1
    %p75 = por %p73, %p74
    %p76 = scmp.ne.s32.totalorder %s67, %s68
    %p77 = scmp.eq.s32.totalorder %s15, 0
    %p78 = por %p76, %p77
    %p79 = scmp.ne.s32.totalorder %s67, %s68
    %p80 = scmp.eq.s32.totalorder %s16, 1
    %p81 = por %p79, %p80
    %p83 = scmp.ne.s32.totalorder %s68, %s82
    %p84 = scmp.eq.s32.totalorder %s16, 0
    %p85 = por %p83, %p84
    %s87 = sadd.s32 %s86, 1
    %p90 = scmp.eq.s32.totalorder %s10, 1
    %p91 = scmp.ne.s32.totalorder %s86, %s88
    %p92 = scmp.eq.s32.totalorder %s10, 0
    %p93 = por %p91, %p92
    %p94 = scmp.ne.s32.totalorder %s86, %s88
    %p95 = scmp.eq.s32.totalorder %s15, 1
    %p96 = por %p94, %p95
    %p97 = scmp.ne.s32.totalorder %s88, %s89
    %p98 = scmp.eq.s32.totalorder %s15, 0
    %p99 = por %p97, %p98
    %p100 = scmp.ne.s32.totalorder %s88, %s89
    %p101 = scmp.eq.s32.totalorder %s16, 1
    %p102 = por %p100, %p101
    %p104 = scmp.ne.s32.totalorder %s89, %s103
    %p105 = scmp.eq.s32.totalorder %s16, 0
    %p106 = por %p104, %p105
    %s107 = ssub.s32 %s10, %s17
    %p108 = scmp.eq.s32.totalorder %s107, 0
    %s110 = sadd.s32 %s109, 1
    %s111 = scalar_select %p108, %s109, %s110
    %p114 = pneg %p108
    %p115 = scmp.eq.s32.totalorder %s10, 1
    %p116 = por %p114, %p115
    %p117 = scmp.ne.s32.totalorder %s109, %s112
    %p118 = scmp.eq.s32.totalorder %s10, 0
    %p119 = por %p117, %p118
    %p120 = scmp.ne.s32.totalorder %s109, %s112
    %p121 = scmp.eq.s32.totalorder %s15, 1
    %p122 = por %p120, %p121
    %p123 = scmp.ne.s32.totalorder %s112, %s113
    %p124 = scmp.eq.s32.totalorder %s15, 0
    %p125 = por %p123, %p124
    %p126 = scmp.ne.s32.totalorder %s112, %s113
    %p127 = scmp.eq.s32.totalorder %s16, 1
    %p128 = por %p126, %p127
    %p130 = scmp.ne.s32.totalorder %s113, %s129
    %p131 = scmp.eq.s32.totalorder %s16, 0
    %p132 = por %p130, %p131
    %p133 = scmp.le.s32.totalorder 1, %s10
    %p134 = scmp.lt.s32.totalorder %s10, 3
    %p135 = pnand %p133, %p134
    %p136 = pneg %p135
    // Predicated region
    $region9: #{map_branch_forward.14} parent=5 // pred_check
      _
    $region10: #{map_branch_forward.14} parent=5 // pred_check_branch
      %138 = sbr.rel (%p135) target = $region12
    $region11: #{map_branch_forward.14} parent=5 // pred_region
      %s139 = ssub.s32 %s10, 1
      // Predicated region
      $region13: #{map_branch_forward.14} parent=11 // pred_check
        %p140 = pneg %p57
      $region14: #{map_branch_forward.14} parent=11 // pred_check_branch
        %142 = sbr.rel (%p140) target = $region16
      $region15: #{map_branch_forward.14} parent=11 // pred_region
        _
      $region16: #{map_branch_forward.14} parent=11 // pred_fallthru
        _
      // Predicated region
      $region17: #{map_branch_forward.14} parent=11 // pred_check
        %p143 = pneg %p78
      $region18: #{map_branch_forward.14} parent=11 // pred_check_branch
        %145 = sbr.rel (%p143) target = $region20
      $region19: #{map_branch_forward.14} parent=11 // pred_region
        _
      $region20: #{map_branch_forward.14} parent=11 // pred_fallthru
        _
      // Predicated region
      $region21: #{map_branch_forward.14} parent=11 // pred_check
        %p146 = pneg %p99
      $region22: #{map_branch_forward.14} parent=11 // pred_check_branch
        %148 = sbr.rel (%p146) target = $region24
      $region23: #{map_branch_forward.14} parent=11 // pred_region
        _
      $region24: #{map_branch_forward.14} parent=11 // pred_fallthru
        _
    $region12: #{map_branch_forward.14} parent=5 // pred_fallthru
      _
    %p149 = scmp.lt.s32.totalorder %s10, 2
    // Predicated region
    $region25: #{map_branch_forward.14} parent=5 // pred_check
      %p150 = pneg %p149
    $region26: #{map_branch_forward.14} parent=5 // pred_check_branch
      %152 = sbr.rel (%p150) target = $region28
    $region27: #{map_branch_forward.14} parent=5 // pred_region
      // Predicated region
      $region29: #{map_branch_forward.14} parent=27 // pred_check
        %p153 = pneg %p30
      $region30: #{map_branch_forward.14} parent=27 // pred_check_branch
        %155 = sbr.rel (%p153) target = $region32
      $region31: #{map_branch_forward.14} parent=27 // pred_region
        %s156 = smul.u32 32, %s10
        %p157 = scmp.lt.s32.totalorder %s156, 63
        %s158 = scalar_select %p157, %s156, 63
        %s159 = smul.addr %s158, 2
        %s160 = smul.addr %s159, 4
        %s161 = scalar_lea.vmem %s0, %s160
        %s162 = smul.u32 32, %s10
      $region32: #{map_branch_forward.14} parent=27 // pred_fallthru
        _
    $region28: #{map_branch_forward.14} parent=5 // pred_fallthru
      _
    %p163 = scmp.le.s32.totalorder 1, %s10
    %p164 = scmp.lt.s32.totalorder %s10, 3
    %p165 = pnand %p163, %p164
    %p166 = pneg %p165
    // Predicated region
    $region33: #{map_branch_forward.14} parent=5 // pred_check
      _
    $region34: #{map_branch_forward.14} parent=5 // pred_check_branch
      %168 = sbr.rel (%p165) target = $region36
    $region35: #{map_branch_forward.14} parent=5 // pred_region
      %s169 = ssub.s32 %s10, 1
      %s170 = smul.u32 32, %s15
      %p171 = scmp.lt.s32.totalorder %s170, 63
      %s172 = scalar_select %p171, %s170, 63
      %s173 = smul.addr %s172, 2
      %s174 = smul.addr %s173, 4
      %s175 = scalar_lea.vmem %s0, %s174
      %p176 = pneg %p36
      %p177 = pneg %p33
      %p178 = pneg %p57
      %p179 = pneg %p54
      %p180 = pneg %p78
      %p181 = pneg %p75
      %p182 = pneg %p99
      %p183 = pneg %p96
      %p184 = pneg %p125
      %p185 = pneg %p122
      %s186 = smul.u32 32, %s15
      %p187 = scmp.lt.s32.totalorder %s186, 63
      %s188 = scalar_select %p187, %s186, 63
      %s189 = smul.addr %s188, 8
      %s190 = scalar_lea.vmem %s4, %s189
      %s191 = smul.u32 32, %s15
      %p192 = scmp.lt.s32.totalorder %s191, 63
      %s193 = scalar_select %p192, %s191, 63
      %s194 = smul.addr %s193, 2
      %s195 = smul.addr %s194, 4
      %s196 = scalar_lea.vmem %s0, %s195
      %s197 = smul.u32 32, %s15
      %s198 = smul.u32 32, %s15
      %p199 = scmp.lt.s32.totalorder %s198, 63
      %s200 = scalar_select %p199, %s198, 63
      %s201 = smul.addr %s200, 8
      %s202 = scalar_lea.vmem %s4, %s201
      %s203 = smul.u32 32, %s15
      %v205 = vld [vmem:[%s196] sm:$0xff]
      %v206 = vld [vmem:[%s196 + $0x8] sm:$0xff]
      %v207 = vld [vmem:[%s196 + $0x10] sm:$0xff]
      %v208 = vld [vmem:[%s196 + $0x18] sm:$0xff]
      %v209 = vld [vmem:[%s196 + $0x20] sm:$0xff]
      %v210 = vld [vmem:[%s196 + $0x28] sm:$0xff]
      %v211 = vld [vmem:[%s196 + $0x30] sm:$0xff]
      %v212 = vld [vmem:[%s196 + $0x38] sm:$0xff]
      %v213 = vld [vmem:[%s196 + $0x40] sm:$0xff]
      %v214 = vld [vmem:[%s196 + $0x48] sm:$0xff]
      %v215 = vld [vmem:[%s196 + $0x50] sm:$0xff]
      %v216 = vld [vmem:[%s196 + $0x58] sm:$0xff]
      %v217 = vld [vmem:[%s196 + $0x60] sm:$0xff]
      %v218 = vld [vmem:[%s196 + $0x68] sm:$0xff]
      %v219 = vld [vmem:[%s196 + $0x70] sm:$0xff]
      %v220 = vld [vmem:[%s196 + $0x78] sm:$0xff]
      %v221 = vld [vmem:[%s196 + $0x80] sm:$0xff]
      %v222 = vld [vmem:[%s196 + $0x88] sm:$0xff]
      %v223 = vld [vmem:[%s196 + $0x90] sm:$0xff]
      %v224 = vld [vmem:[%s196 + $0x98] sm:$0xff]
      %v225 = vld [vmem:[%s196 + $0xa0] sm:$0xff]
      %v226 = vld [vmem:[%s196 + $0xa8] sm:$0xff]
      %v227 = vld [vmem:[%s196 + $0xb0] sm:$0xff]
      %v228 = vld [vmem:[%s196 + $0xb8] sm:$0xff]
      %v229 = vld [vmem:[%s196 + $0xc0] sm:$0xff]
      %v230 = vld [vmem:[%s196 + $0xc8] sm:$0xff]
      %v231 = vld [vmem:[%s196 + $0xd0] sm:$0xff]
      %v232 = vld [vmem:[%s196 + $0xd8] sm:$0xff]
      %v233 = vld [vmem:[%s196 + $0xe0] sm:$0xff]
      %v234 = vld [vmem:[%s196 + $0xe8] sm:$0xff]
      %v235 = vld [vmem:[%s196 + $0xf0] sm:$0xff]
      %v236 = vld [vmem:[%s196 + $0xf8] sm:$0xff]
      %v237 = vld [vmem:[%s1] sm:$0xf]
      %v238 = vld [vmem:[%s1 + $0x4] sm:$0xf]
      %v239 = vld [vmem:[%s1 + $0x8] sm:$0xf]
      %v240 = vld [vmem:[%s1 + $0xc] sm:$0xf]
      %v241 = vld [vmem:[%s1 + $0x10] sm:$0xf]
      %v242 = vld [vmem:[%s1 + $0x14] sm:$0xf]
      %v243 = vld [vmem:[%s1 + $0x18] sm:$0xf]
      %v244 = vld [vmem:[%s1 + $0x1c] sm:$0xf]
      %v245 = vld [vmem:[%s1 + $0x20] sm:$0xf]
      %v246 = vld [vmem:[%s1 + $0x24] sm:$0xf]
      %v247 = vld [vmem:[%s1 + $0x28] sm:$0xf]
      %v248 = vld [vmem:[%s1 + $0x2c] sm:$0xf]
      %v249 = vld [vmem:[%s1 + $0x30] sm:$0xf]
      %v250 = vld [vmem:[%s1 + $0x34] sm:$0xf]
      %v251 = vld [vmem:[%s1 + $0x38] sm:$0xf]
      %v252 = vld [vmem:[%s1 + $0x3c] sm:$0xf]
      %v253 = vld [vmem:[%s1 + $0x40] sm:$0xf]
      %v254 = vld [vmem:[%s1 + $0x44] sm:$0xf]
      %v287 = vunpack.c.l.b16 %v205
      %v288 = vunpack.c.h.b16 %v205
      %v289 = vunpack.c.l.b16 %v206
      %v290 = vunpack.c.h.b16 %v206
      %v291 = vunpack.c.l.b16 %v207
      %v292 = vunpack.c.h.b16 %v207
      %v293 = vunpack.c.l.b16 %v208
      %v294 = vunpack.c.h.b16 %v208
      %v295 = vunpack.c.l.b16 %v209
      %v296 = vunpack.c.h.b16 %v209
      %v297 = vunpack.c.l.b16 %v210
      %v298 = vunpack.c.h.b16 %v210
      %v299 = vunpack.c.l.b16 %v211
      %v300 = vunpack.c.h.b16 %v211
      %v301 = vunpack.c.l.b16 %v212
      %v302 = vunpack.c.h.b16 %v212
      %v303 = vunpack.c.l.b16 %v213
      %v304 = vunpack.c.h.b16 %v213
      %v305 = vunpack.c.l.b16 %v214
      %v306 = vunpack.c.h.b16 %v214
      %v307 = vunpack.c.l.b16 %v215
      %v308 = vunpack.c.h.b16 %v215
      %v309 = vunpack.c.l.b16 %v216
      %v310 = vunpack.c.h.b16 %v216
      %v311 = vunpack.c.l.b16 %v217
      %v312 = vunpack.c.h.b16 %v217
      %v313 = vunpack.c.l.b16 %v218
      %v314 = vunpack.c.h.b16 %v218
      %v315 = vunpack.c.l.b16 %v219
      %v316 = vunpack.c.h.b16 %v219
      %v317 = vunpack.c.l.b16 %v220
      %v318 = vunpack.c.h.b16 %v220
      %v319 = vunpack.c.l.b16 %v221
      %v320 = vunpack.c.h.b16 %v221
      %v321 = vunpack.c.l.b16 %v222
      %v322 = vunpack.c.h.b16 %v222
      %v323 = vunpack.c.l.b16 %v223
      %v324 = vunpack.c.h.b16 %v223
      %v325 = vunpack.c.l.b16 %v224
      %v326 = vunpack.c.h.b16 %v224
      %v327 = vunpack.c.l.b16 %v225
      %v328 = vunpack.c.h.b16 %v225
      %v329 = vunpack.c.l.b16 %v226
      %v330 = vunpack.c.h.b16 %v226
      %v331 = vunpack.c.l.b16 %v227
      %v332 = vunpack.c.h.b16 %v227
      %v333 = vunpack.c.l.b16 %v228
      %v334 = vunpack.c.h.b16 %v228
      %v335 = vunpack.c.l.b16 %v229
      %v336 = vunpack.c.h.b16 %v229
      %v337 = vunpack.c.l.b16 %v230
      %v338 = vunpack.c.h.b16 %v230
      %v339 = vunpack.c.l.b16 %v231
      %v340 = vunpack.c.h.b16 %v231
      %v341 = vunpack.c.l.b16 %v232
      %v342 = vunpack.c.h.b16 %v232
      %v343 = vunpack.c.l.b16 %v233
      %v344 = vunpack.c.h.b16 %v233
      %v345 = vunpack.c.l.b16 %v234
      %v346 = vunpack.c.h.b16 %v234
      %v347 = vunpack.c.l.b16 %v235
      %v348 = vunpack.c.h.b16 %v235
      %v349 = vunpack.c.l.b16 %v236
      %v350 = vunpack.c.h.b16 %v236
      %v351 = vpack.c.b16 %v289, %v287
      %v352 = vpack.c.b16 %v290, %v288
      %v353 = vpack.c.b16 %v293, %v291
      %v354 = vpack.c.b16 %v294, %v292
      %v355 = vpack.c.b16 %v297, %v295
      %v356 = vpack.c.b16 %v298, %v296
      %v357 = vpack.c.b16 %v301, %v299
      %v358 = vpack.c.b16 %v302, %v300
      %v359 = vpack.c.b16 %v305, %v303
      %v360 = vpack.c.b16 %v306, %v304
      %v361 = vpack.c.b16 %v309, %v307
      %v362 = vpack.c.b16 %v310, %v308
      %v363 = vpack.c.b16 %v313, %v311
      %v364 = vpack.c.b16 %v314, %v312
      %v365 = vpack.c.b16 %v317, %v315
      %v366 = vpack.c.b16 %v318, %v316
      %v367 = vpack.c.b16 %v321, %v319
      %v368 = vpack.c.b16 %v322, %v320
      %v369 = vpack.c.b16 %v325, %v323
      %v370 = vpack.c.b16 %v326, %v324
      %v371 = vpack.c.b16 %v329, %v327
      %v372 = vpack.c.b16 %v330, %v328
      %v373 = vpack.c.b16 %v333, %v331
      %v374 = vpack.c.b16 %v334, %v332
      %v375 = vpack.c.b16 %v337, %v335
      %v376 = vpack.c.b16 %v338, %v336
      %v377 = vpack.c.b16 %v341, %v339
      %v378 = vpack.c.b16 %v342, %v340
      %v379 = vpack.c.b16 %v345, %v343
      %v380 = vpack.c.b16 %v346, %v344
      %v381 = vpack.c.b16 %v349, %v347
      %v382 = vpack.c.b16 %v350, %v348
      %v417 = vunpack.c.l.b16 %v237
      %v418 = vunpack.c.l.b16 %v238
      %v419 = vunpack.c.l.b16 %v239
      %v420 = vunpack.c.l.b16 %v240
      %v421 = vunpack.c.l.b16 %v241
      %v422 = vunpack.c.l.b16 %v242
      %v423 = vunpack.c.l.b16 %v243
      %v424 = vunpack.c.l.b16 %v244
      %v425 = vunpack.c.l.b16 %v245
      %v426 = vunpack.c.l.b16 %v246
      %v427 = vunpack.c.l.b16 %v247
      %v428 = vunpack.c.l.b16 %v248
      %v429 = vunpack.c.l.b16 %v249
      %v430 = vunpack.c.l.b16 %v250
      %v431 = vunpack.c.l.b16 %v251
      %v432 = vunpack.c.l.b16 %v252
      %v433 = vunpack.c.l.b16 %v253
      %v434 = vunpack.c.l.b16 %v254
      %v435 = vpack.c.b16 %v418, %v417
      %v436 = vpack.c.b16 %v420, %v419
      %v437 = vpack.c.b16 %v422, %v421
      %v438 = vpack.c.b16 %v424, %v423
      %v439 = vpack.c.b16 %v426, %v425
      %v440 = vpack.c.b16 %v428, %v427
      %v441 = vpack.c.b16 %v430, %v429
      %v442 = vpack.c.b16 %v432, %v431
      %v443 = vpack.c.b16 %v434, %v433
      %vm453 = vcmask 130048
      %v455 = vsel %vm453, %v352, 0
      %v458 = vsel %vm453, %v354, 0
      %v461 = vsel %vm453, %v356, 0
      %v464 = vsel %vm453, %v358, 0
      %v467 = vsel %vm453, %v360, 0
      %v470 = vsel %vm453, %v362, 0
      %v473 = vsel %vm453, %v364, 0
      %v476 = vsel %vm453, %v366, 0
      %v479 = vsel %vm453, %v368, 0
      %v482 = vsel %vm453, %v370, 0
      %v485 = vsel %vm453, %v372, 0
      %v488 = vsel %vm453, %v374, 0
      %v491 = vsel %vm453, %v376, 0
      %v494 = vsel %vm453, %v378, 0
      %v497 = vsel %vm453, %v380, 0
      %v500 = vsel %vm453, %v382, 0
      %502 = vmatpush.bf16.msra.mxu0 %v442
      %503 = vmatpush.bf16.msra.mxu0 %v441
      %504 = vmatpush.bf16.msra.mxu0 %v440
      %505 = vmatpush.bf16.msra.mxu0 %v439
      %506 = vmatpush.bf16.msra.mxu0 %v438
      %507 = vmatpush.bf16.msra.mxu0 %v437
      %508 = vmatpush.bf16.msra.mxu0 %v436
      %509 = vmatpush.bf16.msra.mxu0 %v435
      %510 = vmatmul.bf16.gmra.mxu0 %v351
      %v511 = vpop.f32.mrf.mxu0
      %v512 = vadd.f32 0.0, %v511
      %v513 = vpop.f32.mrf.mxu0
      %v514 = vadd.f32 0.0, %v513
      %515 = vmatmul.bf16.gmra.mxu0 %v353
      %v516 = vpop.f32.mrf.mxu0
      %v517 = vadd.f32 0.0, %v516
      %v518 = vpop.f32.mrf.mxu0
      %v519 = vadd.f32 0.0, %v518
      %520 = vmatmul.bf16.gmra.mxu0 %v355
      %v521 = vpop.f32.mrf.mxu0
      %v522 = vadd.f32 0.0, %v521
      %v523 = vpop.f32.mrf.mxu0
      %v524 = vadd.f32 0.0, %v523
      %525 = vmatmul.bf16.gmra.mxu0 %v357
      %v526 = vpop.f32.mrf.mxu0
      %v527 = vadd.f32 0.0, %v526
      %v528 = vpop.f32.mrf.mxu0
      %v529 = vadd.f32 0.0, %v528
      %530 = vmatmul.bf16.gmra.mxu0 %v359
      %v531 = vpop.f32.mrf.mxu0
      %v532 = vadd.f32 0.0, %v531
      %v533 = vpop.f32.mrf.mxu0
      %v534 = vadd.f32 0.0, %v533
      %535 = vmatmul.bf16.gmra.mxu0 %v361
      %v536 = vpop.f32.mrf.mxu0
      %v537 = vadd.f32 0.0, %v536
      %v538 = vpop.f32.mrf.mxu0
      %v539 = vadd.f32 0.0, %v538
      %540 = vmatmul.bf16.gmra.mxu0 %v363
      %v541 = vpop.f32.mrf.mxu0
      %v542 = vadd.f32 0.0, %v541
      %v543 = vpop.f32.mrf.mxu0
      %v544 = vadd.f32 0.0, %v543
      %545 = vmatmul.bf16.gmra.mxu0 %v365
      %v546 = vpop.f32.mrf.mxu0
      %v547 = vadd.f32 0.0, %v546
      %v548 = vpop.f32.mrf.mxu0
      %v549 = vadd.f32 0.0, %v548
      %550 = vmatmul.bf16.gmra.mxu0 %v367
      %v551 = vpop.f32.mrf.mxu0
      %v552 = vadd.f32 0.0, %v551
      %v553 = vpop.f32.mrf.mxu0
      %v554 = vadd.f32 0.0, %v553
      %555 = vmatmul.bf16.gmra.mxu0 %v369
      %v556 = vpop.f32.mrf.mxu0
      %v557 = vadd.f32 0.0, %v556
      %v558 = vpop.f32.mrf.mxu0
      %v559 = vadd.f32 0.0, %v558
      %560 = vmatmul.bf16.gmra.mxu0 %v371
      %v561 = vpop.f32.mrf.mxu0
      %v562 = vadd.f32 0.0, %v561
      %v563 = vpop.f32.mrf.mxu0
      %v564 = vadd.f32 0.0, %v563
      %565 = vmatmul.bf16.gmra.mxu0 %v373
      %v566 = vpop.f32.mrf.mxu0
      %v567 = vadd.f32 0.0, %v566
      %v568 = vpop.f32.mrf.mxu0
      %v569 = vadd.f32 0.0, %v568
      %570 = vmatmul.bf16.gmra.mxu0 %v375
      %v571 = vpop.f32.mrf.mxu0
      %v572 = vadd.f32 0.0, %v571
      %v573 = vpop.f32.mrf.mxu0
      %v574 = vadd.f32 0.0, %v573
      %575 = vmatmul.bf16.gmra.mxu0 %v377
      %v576 = vpop.f32.mrf.mxu0
      %v577 = vadd.f32 0.0, %v576
      %v578 = vpop.f32.mrf.mxu0
      %v579 = vadd.f32 0.0, %v578
      %580 = vmatmul.bf16.gmra.mxu0 %v379
      %v581 = vpop.f32.mrf.mxu0
      %v582 = vadd.f32 0.0, %v581
      %v583 = vpop.f32.mrf.mxu0
      %v584 = vadd.f32 0.0, %v583
      %585 = vmatmul.bf16.gmra.mxu0 %v381
      %v586 = vpop.f32.mrf.mxu0
      %v587 = vadd.f32 0.0, %v586
      %v588 = vpop.f32.mrf.mxu0
      %v589 = vadd.f32 0.0, %v588
      %590 = vdwg.mxu0
      %591 = vmatpush.bf16.msra.mxu0 0
      %592 = vmatpush.bf16.msra.mxu0 0
      %593 = vmatpush.bf16.msra.mxu0 0
      %594 = vmatpush.bf16.msra.mxu0 0
      %595 = vmatpush.bf16.msra.mxu0 0
      %596 = vmatpush.bf16.msra.mxu0 0
      %597 = vmatpush.bf16.msra.mxu0 0
      %598 = vmatpush.bf16.msra.mxu0 %v443
      %599 = vmatmul.bf16.gmra.mxu0 %v455
      %v600 = vpop.f32.mrf.mxu0
      %v601 = vadd.f32 %v512, %v600
      %v602 = vpop.f32.mrf.mxu0
      %v603 = vadd.f32 %v514, %v602
      %604 = vmatmul.bf16.gmra.mxu0 %v458
      %v605 = vpop.f32.mrf.mxu0
      %v606 = vadd.f32 %v517, %v605
      %v607 = vpop.f32.mrf.mxu0
      %v608 = vadd.f32 %v519, %v607
      %609 = vmatmul.bf16.gmra.mxu0 %v461
      %v610 = vpop.f32.mrf.mxu0
      %v611 = vadd.f32 %v522, %v610
      %v612 = vpop.f32.mrf.mxu0
      %v613 = vadd.f32 %v524, %v612
      %614 = vmatmul.bf16.gmra.mxu0 %v464
      %v615 = vpop.f32.mrf.mxu0
      %v616 = vadd.f32 %v527, %v615
      %v617 = vpop.f32.mrf.mxu0
      %v618 = vadd.f32 %v529, %v617
      %619 = vmatmul.bf16.gmra.mxu0 %v467
      %v620 = vpop.f32.mrf.mxu0
      %v621 = vadd.f32 %v532, %v620
      %v622 = vpop.f32.mrf.mxu0
      %v623 = vadd.f32 %v534, %v622
      %624 = vmatmul.bf16.gmra.mxu0 %v470
      %v625 = vpop.f32.mrf.mxu0
      %v626 = vadd.f32 %v537, %v625
      %v627 = vpop.f32.mrf.mxu0
      %v628 = vadd.f32 %v539, %v627
      %629 = vmatmul.bf16.gmra.mxu0 %v473
      %v630 = vpop.f32.mrf.mxu0
      %v631 = vadd.f32 %v542, %v630
      %v632 = vpop.f32.mrf.mxu0
      %v633 = vadd.f32 %v544, %v632
      %634 = vmatmul.bf16.gmra.mxu0 %v476
      %v635 = vpop.f32.mrf.mxu0
      %v636 = vadd.f32 %v547, %v635
      %v637 = vpop.f32.mrf.mxu0
      %v638 = vadd.f32 %v549, %v637
      %639 = vmatmul.bf16.gmra.mxu0 %v479
      %v640 = vpop.f32.mrf.mxu0
      %v641 = vadd.f32 %v552, %v640
      %v642 = vpop.f32.mrf.mxu0
      %v643 = vadd.f32 %v554, %v642
      %644 = vmatmul.bf16.gmra.mxu0 %v482
      %v645 = vpop.f32.mrf.mxu0
      %v646 = vadd.f32 %v557, %v645
      %v647 = vpop.f32.mrf.mxu0
      %v648 = vadd.f32 %v559, %v647
      %649 = vmatmul.bf16.gmra.mxu0 %v485
      %v650 = vpop.f32.mrf.mxu0
      %v651 = vadd.f32 %v562, %v650
      %v652 = vpop.f32.mrf.mxu0
      %v653 = vadd.f32 %v564, %v652
      %654 = vmatmul.bf16.gmra.mxu0 %v488
      %v655 = vpop.f32.mrf.mxu0
      %v656 = vadd.f32 %v567, %v655
      %v657 = vpop.f32.mrf.mxu0
      %v658 = vadd.f32 %v569, %v657
      %659 = vmatmul.bf16.gmra.mxu0 %v491
      %v660 = vpop.f32.mrf.mxu0
      %v661 = vadd.f32 %v572, %v660
      %v662 = vpop.f32.mrf.mxu0
      %v663 = vadd.f32 %v574, %v662
      %664 = vmatmul.bf16.gmra.mxu0 %v494
      %v665 = vpop.f32.mrf.mxu0
      %v666 = vadd.f32 %v577, %v665
      %v667 = vpop.f32.mrf.mxu0
      %v668 = vadd.f32 %v579, %v667
      %669 = vmatmul.bf16.gmra.mxu0 %v497
      %v670 = vpop.f32.mrf.mxu0
      %v671 = vadd.f32 %v582, %v670
      %v672 = vpop.f32.mrf.mxu0
      %v673 = vadd.f32 %v584, %v672
      %674 = vmatmul.bf16.gmra.mxu0 %v500
      %v675 = vpop.f32.mrf.mxu0
      %v676 = vadd.f32 %v587, %v675
      %v677 = vpop.f32.mrf.mxu0
      %v678 = vadd.f32 %v589, %v677
      %679 = vdwg.mxu0
      %v680 = vld [vmem:[%s2] sm:$0x1]
      %v682 = vperm.slane %v680, 0
      %v684 = vmul.f32 %v601, %v682
      %v685 = vmul.f32 %v603, %v682
      %v686 = vmul.f32 %v606, %v682
      %v687 = vmul.f32 %v608, %v682
      %v688 = vmul.f32 %v611, %v682
      %v689 = vmul.f32 %v613, %v682
      %v690 = vmul.f32 %v616, %v682
      %v691 = vmul.f32 %v618, %v682
      %v692 = vmul.f32 %v621, %v682
      %v693 = vmul.f32 %v623, %v682
      %v694 = vmul.f32 %v626, %v682
      %v695 = vmul.f32 %v628, %v682
      %v696 = vmul.f32 %v631, %v682
      %v697 = vmul.f32 %v633, %v682
      %v698 = vmul.f32 %v636, %v682
      %v699 = vmul.f32 %v638, %v682
      %v700 = vmul.f32 %v641, %v682
      %v701 = vmul.f32 %v643, %v682
      %v702 = vmul.f32 %v646, %v682
      %v703 = vmul.f32 %v648, %v682
      %v704 = vmul.f32 %v651, %v682
      %v705 = vmul.f32 %v653, %v682
      %v706 = vmul.f32 %v656, %v682
      %v707 = vmul.f32 %v658, %v682
      %v708 = vmul.f32 %v661, %v682
      %v709 = vmul.f32 %v663, %v682
      %v710 = vmul.f32 %v666, %v682
      %v711 = vmul.f32 %v668, %v682
      %v712 = vmul.f32 %v671, %v682
      %v713 = vmul.f32 %v673, %v682
      %v714 = vmul.f32 %v676, %v682
      %v715 = vmul.f32 %v678, %v682
      %v716 = vld [vmem:[%s3] sm:$0x1]
      %v718 = vperm.slane %v716, 0
      %v720 = vadd.f32 %v684, %v718
      %v721 = vadd.f32 %v685, %v718
      %v722 = vadd.f32 %v686, %v718
      %v723 = vadd.f32 %v687, %v718
      %v724 = vadd.f32 %v688, %v718
      %v725 = vadd.f32 %v689, %v718
      %v726 = vadd.f32 %v690, %v718
      %v727 = vadd.f32 %v691, %v718
      %v728 = vadd.f32 %v692, %v718
      %v729 = vadd.f32 %v693, %v718
      %v730 = vadd.f32 %v694, %v718
      %v731 = vadd.f32 %v695, %v718
      %v732 = vadd.f32 %v696, %v718
      %v733 = vadd.f32 %v697, %v718
      %v734 = vadd.f32 %v698, %v718
      %v735 = vadd.f32 %v699, %v718
      %v736 = vadd.f32 %v700, %v718
      %v737 = vadd.f32 %v701, %v718
      %v738 = vadd.f32 %v702, %v718
      %v739 = vadd.f32 %v703, %v718
      %v740 = vadd.f32 %v704, %v718
      %v741 = vadd.f32 %v705, %v718
      %v742 = vadd.f32 %v706, %v718
      %v743 = vadd.f32 %v707, %v718
      %v744 = vadd.f32 %v708, %v718
      %v745 = vadd.f32 %v709, %v718
      %v746 = vadd.f32 %v710, %v718
      %v747 = vadd.f32 %v711, %v718
      %v748 = vadd.f32 %v712, %v718
      %v749 = vadd.f32 %v713, %v718
      %v750 = vadd.f32 %v714, %v718
      %v751 = vadd.f32 %v715, %v718
      %v752 = vmax.f32 %v720, 0.0
      %v753 = vmax.f32 %v721, 0.0
      %v754 = vmax.f32 %v722, 0.0
      %v755 = vmax.f32 %v723, 0.0
      %v756 = vmax.f32 %v724, 0.0
      %v757 = vmax.f32 %v725, 0.0
      %v758 = vmax.f32 %v726, 0.0
      %v759 = vmax.f32 %v727, 0.0
      %v760 = vmax.f32 %v728, 0.0
      %v761 = vmax.f32 %v729, 0.0
      %v762 = vmax.f32 %v730, 0.0
      %v763 = vmax.f32 %v731, 0.0
      %v764 = vmax.f32 %v732, 0.0
      %v765 = vmax.f32 %v733, 0.0
      %v766 = vmax.f32 %v734, 0.0
      %v767 = vmax.f32 %v735, 0.0
      %v768 = vmax.f32 %v736, 0.0
      %v769 = vmax.f32 %v737, 0.0
      %v770 = vmax.f32 %v738, 0.0
      %v771 = vmax.f32 %v739, 0.0
      %v772 = vmax.f32 %v740, 0.0
      %v773 = vmax.f32 %v741, 0.0
      %v774 = vmax.f32 %v742, 0.0
      %v775 = vmax.f32 %v743, 0.0
      %v776 = vmax.f32 %v744, 0.0
      %v777 = vmax.f32 %v745, 0.0
      %v778 = vmax.f32 %v746, 0.0
      %v779 = vmax.f32 %v747, 0.0
      %v780 = vmax.f32 %v748, 0.0
      %v781 = vmax.f32 %v749, 0.0
      %v782 = vmax.f32 %v750, 0.0
      %v783 = vmax.f32 %v751, 0.0
      %vm784 = vcmask 64512
      %785 = vst.msk [vmem:[%s202] sm:$0xff] %vm784, %v752
      %786 = vst.msk [vmem:[%s202 + $0x8] sm:$0xff] %vm784, %v753
      %787 = vst.msk [vmem:[%s202 + $0x10] sm:$0xff] %vm784, %v754
      %788 = vst.msk [vmem:[%s202 + $0x18] sm:$0xff] %vm784, %v755
      %789 = vst.msk [vmem:[%s202 + $0x20] sm:$0xff] %vm784, %v756
      %790 = vst.msk [vmem:[%s202 + $0x28] sm:$0xff] %vm784, %v757
      %791 = vst.msk [vmem:[%s202 + $0x30] sm:$0xff] %vm784, %v758
      %792 = vst.msk [vmem:[%s202 + $0x38] sm:$0xff] %vm784, %v759
      %793 = vst.msk [vmem:[%s202 + $0x40] sm:$0xff] %vm784, %v760
      %794 = vst.msk [vmem:[%s202 + $0x48] sm:$0xff] %vm784, %v761
      %795 = vst.msk [vmem:[%s202 + $0x50] sm:$0xff] %vm784, %v762
      %796 = vst.msk [vmem:[%s202 + $0x58] sm:$0xff] %vm784, %v763
      %797 = vst.msk [vmem:[%s202 + $0x60] sm:$0xff] %vm784, %v764
      %798 = vst.msk [vmem:[%s202 + $0x68] sm:$0xff] %vm784, %v765
      %799 = vst.msk [vmem:[%s202 + $0x70] sm:$0xff] %vm784, %v766
      %800 = vst.msk [vmem:[%s202 + $0x78] sm:$0xff] %vm784, %v767
      %801 = vst.msk [vmem:[%s202 + $0x80] sm:$0xff] %vm784, %v768
      %802 = vst.msk [vmem:[%s202 + $0x88] sm:$0xff] %vm784, %v769
      %803 = vst.msk [vmem:[%s202 + $0x90] sm:$0xff] %vm784, %v770
      %804 = vst.msk [vmem:[%s202 + $0x98] sm:$0xff] %vm784, %v771
      %805 = vst.msk [vmem:[%s202 + $0xa0] sm:$0xff] %vm784, %v772
      %806 = vst.msk [vmem:[%s202 + $0xa8] sm:$0xff] %vm784, %v773
      %807 = vst.msk [vmem:[%s202 + $0xb0] sm:$0xff] %vm784, %v774
      %808 = vst.msk [vmem:[%s202 + $0xb8] sm:$0xff] %vm784, %v775
      %809 = vst.msk [vmem:[%s202 + $0xc0] sm:$0xff] %vm784, %v776
      %810 = vst.msk [vmem:[%s202 + $0xc8] sm:$0xff] %vm784, %v777
      %811 = vst.msk [vmem:[%s202 + $0xd0] sm:$0xff] %vm784, %v778
      %812 = vst.msk [vmem:[%s202 + $0xd8] sm:$0xff] %vm784, %v779
      %813 = vst.msk [vmem:[%s202 + $0xe0] sm:$0xff] %vm784, %v780
      %814 = vst.msk [vmem:[%s202 + $0xe8] sm:$0xff] %vm784, %v781
      %815 = vst.msk [vmem:[%s202 + $0xf0] sm:$0xff] %vm784, %v782
      %816 = vst.msk [vmem:[%s202 + $0xf8] sm:$0xff] %vm784, %v783
      %s817 = smul.u32 32, %s15
      %p818 = scmp.lt.s32.totalorder %s817, 63
      %s819 = scalar_select %p818, %s817, 63
      %s820 = smul.addr %s819, 8
      %s821 = scalar_lea.vmem %s4, %s820
      // Predicated region
      $region37: #{map_branch_forward.14} parent=35 // pred_check
        %p822 = pneg %p122
      $region38: #{map_branch_forward.14} parent=35 // pred_check_branch
        %824 = sbr.rel (%p822) target = $region40
      $region39: #{map_branch_forward.14} parent=35 // pred_region
        %s825 = smul.u32 32, %s15
      $region40: #{map_branch_forward.14} parent=35 // pred_fallthru
        _
    $region36: #{map_branch_forward.14} parent=5 // pred_fallthru
      _
    %p826 = scmp.le.s32.totalorder 2, %s10
    // Predicated region
    $region41: #{map_branch_forward.14} parent=5 // pred_check
      %p827 = pneg %p826
    $region42: #{map_branch_forward.14} parent=5 // pred_check_branch
      %829 = sbr.rel (%p827) target = $region44
    $region43: #{map_branch_forward.14} parent=5 // pred_region
      %s830 = ssub.s32 %s10, 2
      // Predicated region
      $region45: #{map_branch_forward.14} parent=43 // pred_check
        %p831 = pneg %p128
      $region46: #{map_branch_forward.14} parent=43 // pred_check_branch
        %833 = sbr.rel (%p831) target = $region48
      $region47: #{map_branch_forward.14} parent=43 // pred_region
        %s834 = smul.u32 32, %s16
        %p835 = scmp.lt.s32.totalorder %s834, 63
        %s836 = scalar_select %p835, %s834, 63
        %s837 = smul.addr %s836, 8
        %s838 = scalar_lea.vmem %s4, %s837
      $region48: #{map_branch_forward.14} parent=43 // pred_fallthru
        _
    $region44: #{map_branch_forward.14} parent=5 // pred_fallthru
      _
  $region6: #{map_branch_forward.14} parent=0 // loop_footer
    %s14 = sadd.s32 1, %s10
  $region7: #{map_branch_forward.14} parent=0 // loop_footer_branch
    %9 = sbr.rel target = $region3
  $region8: #{map_branch_forward.14} parent=0 // loop_exit
    _

// kernel: map_branch_forward.15
$region0: #{map_branch_forward.15}
  #allocation0 [shape = 'u32[]', space=smem, size = 0x4, offset = 0x4, fixed_abs, tag = 'smem constant byte address 0x4 - core index']
  #allocation1 [shape = 'u32[72,128]{1,0:T(1,128)}', space=vmem, size = 0x9000, scoped, tag = 'internal scratch']
  %s0 = inlined_call_operand.vmem [shape: bf16[2048,72], index: 0, kind: input, shape index: {}]
  %s1 = inlined_call_operand.vmem [shape: bf16[72,4], index: 1, kind: input, shape index: {}]
  %s2 = inlined_call_operand.vmem [shape: f32[1,4], index: 2, kind: input, shape index: {}]
  %s3 = inlined_call_operand.vmem [shape: f32[1,4], index: 3, kind: input, shape index: {}]
  %s4 = inlined_call_operand.vmem [shape: f32[2048,4], index: 4, kind: output, shape index: {}]
  %s5 = sld [smem:[#allocation0]]
  $region49: #{map_branch_forward.15} parent=0
    _
  %s7 = ssub.s32 1, %s5
  %s8 = scalar_select 0, %s7, %s5
  loop: start=0, step=1, limit=10
  $region2: #{map_branch_forward.15} parent=0 // loop_pre_header
    _
  $region3: #{map_branch_forward.15} parent=0 // loop_header
    %s10 = sphi 0, %s14
    %p11 = scmp.ge.s32.totalorder %s10, 10
    %s20 = sphi 0, %s22
    %s23 = sphi 0, %s20
    %s24 = sphi 0, %s23
    %s40 = sphi 0, %s24
    %s44 = sphi 0, %s44
    %s46 = sphi 0, %s44
    %s47 = sphi 0, %s46
    %s61 = sphi 0, %s47
    %s65 = sphi 0, %s65
    %s67 = sphi 0, %s65
    %s68 = sphi 0, %s67
    %s82 = sphi 0, %s68
    %s86 = sphi 0, %s86
    %s88 = sphi 0, %s86
    %s89 = sphi 0, %s88
    %s103 = sphi 0, %s89
    %s109 = sphi 0, %s111
    %s112 = sphi 0, %s109
    %s113 = sphi 0, %s112
    %s129 = sphi 0, %s113
  $region4: #{map_branch_forward.15} parent=0 // loop_header_branch
    %13 = sbr.rel (%p11) target = $region8
  $region5: #{map_branch_forward.15} parent=0 // loop_body
    %s15 = ssub.s32 %s10, 1
    %s16 = ssub.s32 %s10, 2
    %s17 = sadd.s32 %s10, 1
    %s18 = ssub.s32 %s10, %s17
    %p19 = scmp.eq.s32.totalorder %s18, 0
    %s21 = sadd.s32 %s20, 1
    %s22 = scalar_select %p19, %s20, %s21
    %p25 = pneg %p19
    %p26 = scmp.eq.s32.totalorder %s10, 7
    %p27 = por %p25, %p26
    %p28 = scmp.ne.s32.totalorder %s20, %s23
    %p29 = scmp.eq.s32.totalorder %s10, 0
    %p30 = por %p28, %p29
    %p31 = scmp.ne.s32.totalorder %s20, %s23
    %p32 = scmp.eq.s32.totalorder %s15, 7
    %p33 = por %p31, %p32
    %p34 = scmp.ne.s32.totalorder %s23, %s24
    %p35 = scmp.eq.s32.totalorder %s15, 0
    %p36 = por %p34, %p35
    %p37 = scmp.ne.s32.totalorder %s23, %s24
    %p38 = scmp.eq.s32.totalorder %s16, 7
    %p39 = por %p37, %p38
    %p41 = scmp.ne.s32.totalorder %s24, %s40
    %p42 = scmp.eq.s32.totalorder %s16, 0
    %p43 = por %p41, %p42
    %s45 = sadd.s32 %s44, 1
    %p48 = scmp.eq.s32.totalorder %s10, 7
    %p49 = scmp.ne.s32.totalorder %s44, %s46
    %p50 = scmp.eq.s32.totalorder %s10, 0
    %p51 = por %p49, %p50
    %p52 = scmp.ne.s32.totalorder %s44, %s46
    %p53 = scmp.eq.s32.totalorder %s15, 7
    %p54 = por %p52, %p53
    %p55 = scmp.ne.s32.totalorder %s46, %s47
    %p56 = scmp.eq.s32.totalorder %s15, 0
    %p57 = por %p55, %p56
    %p58 = scmp.ne.s32.totalorder %s46, %s47
    %p59 = scmp.eq.s32.totalorder %s16, 7
    %p60 = por %p58, %p59
    %p62 = scmp.ne.s32.totalorder %s47, %s61
    %p63 = scmp.eq.s32.totalorder %s16, 0
    %p64 = por %p62, %p63
    %s66 = sadd.s32 %s65, 1
    %p69 = scmp.eq.s32.totalorder %s10, 7
    %p70 = scmp.ne.s32.totalorder %s65, %s67
    %p71 = scmp.eq.s32.totalorder %s10, 0
    %p72 = por %p70, %p71
    %p73 = scmp.ne.s32.totalorder %s65, %s67
    %p74 = scmp.eq.s32.totalorder %s15, 7
    %p75 = por %p73, %p74
    %p76 = scmp.ne.s32.totalorder %s67, %s68
    %p77 = scmp.eq.s32.totalorder %s15, 0
    %p78 = por %p76, %p77
    %p79 = scmp.ne.s32.totalorder %s67, %s68
    %p80 = scmp.eq.s32.totalorder %s16, 7
    %p81 = por %p79, %p80
    %p83 = scmp.ne.s32.totalorder %s68, %s82
    %p84 = scmp.eq.s32.totalorder %s16, 0
    %p85 = por %p83, %p84
    %s87 = sadd.s32 %s86, 1
    %p90 = scmp.eq.s32.totalorder %s10, 7
    %p91 = scmp.ne.s32.totalorder %s86, %s88
    %p92 = scmp.eq.s32.totalorder %s10, 0
    %p93 = por %p91, %p92
    %p94 = scmp.ne.s32.totalorder %s86, %s88
    %p95 = scmp.eq.s32.totalorder %s15, 7
    %p96 = por %p94, %p95
    %p97 = scmp.ne.s32.totalorder %s88, %s89
    %p98 = scmp.eq.s32.totalorder %s15, 0
    %p99 = por %p97, %p98
    %p100 = scmp.ne.s32.totalorder %s88, %s89
    %p101 = scmp.eq.s32.totalorder %s16, 7
    %p102 = por %p100, %p101
    %p104 = scmp.ne.s32.totalorder %s89, %s103
    %p105 = scmp.eq.s32.totalorder %s16, 0
    %p106 = por %p104, %p105
    %s107 = ssub.s32 %s10, %s17
    %p108 = scmp.eq.s32.totalorder %s107, 0
    %s110 = sadd.s32 %s109, 1
    %s111 = scalar_select %p108, %s109, %s110
    %p114 = pneg %p108
    %p115 = scmp.eq.s32.totalorder %s10, 7
    %p116 = por %p114, %p115
    %p117 = scmp.ne.s32.totalorder %s109, %s112
    %p118 = scmp.eq.s32.totalorder %s10, 0
    %p119 = por %p117, %p118
    %p120 = scmp.ne.s32.totalorder %s109, %s112
    %p121 = scmp.eq.s32.totalorder %s15, 7
    %p122 = por %p120, %p121
    %p123 = scmp.ne.s32.totalorder %s112, %s113
    %p124 = scmp.eq.s32.totalorder %s15, 0
    %p125 = por %p123, %p124
    %p126 = scmp.ne.s32.totalorder %s112, %s113
    %p127 = scmp.eq.s32.totalorder %s16, 7
    %p128 = por %p126, %p127
    %p130 = scmp.ne.s32.totalorder %s113, %s129
    %p131 = scmp.eq.s32.totalorder %s16, 0
    %p132 = por %p130, %p131
    %p133 = scmp.le.s32.totalorder 1, %s10
    %p134 = scmp.lt.s32.totalorder %s10, 9
    %p135 = pnand %p133, %p134
    %p136 = pneg %p135
    // Predicated region
    $region9: #{map_branch_forward.15} parent=5 // pred_check
      _
    $region10: #{map_branch_forward.15} parent=5 // pred_check_branch
      %138 = sbr.rel (%p135) target = $region12
    $region11: #{map_branch_forward.15} parent=5 // pred_region
      %s139 = ssub.s32 %s10, 1
      // Predicated region
      $region13: #{map_branch_forward.15} parent=11 // pred_check
        %p140 = pneg %p57
      $region14: #{map_branch_forward.15} parent=11 // pred_check_branch
        %142 = sbr.rel (%p140) target = $region16
      $region15: #{map_branch_forward.15} parent=11 // pred_region
        _
      $region16: #{map_branch_forward.15} parent=11 // pred_fallthru
        _
      // Predicated region
      $region17: #{map_branch_forward.15} parent=11 // pred_check
        %p143 = pneg %p78
      $region18: #{map_branch_forward.15} parent=11 // pred_check_branch
        %145 = sbr.rel (%p143) target = $region20
      $region19: #{map_branch_forward.15} parent=11 // pred_region
        _
      $region20: #{map_branch_forward.15} parent=11 // pred_fallthru
        _
      // Predicated region
      $region21: #{map_branch_forward.15} parent=11 // pred_check
        %p146 = pneg %p99
      $region22: #{map_branch_forward.15} parent=11 // pred_check_branch
        %148 = sbr.rel (%p146) target = $region24
      $region23: #{map_branch_forward.15} parent=11 // pred_region
        _
      $region24: #{map_branch_forward.15} parent=11 // pred_fallthru
        _
    $region12: #{map_branch_forward.15} parent=5 // pred_fallthru
      _
    %p149 = scmp.lt.s32.totalorder %s10, 8
    // Predicated region
    $region25: #{map_branch_forward.15} parent=5 // pred_check
      %p150 = pneg %p149
    $region26: #{map_branch_forward.15} parent=5 // pred_check_branch
      %152 = sbr.rel (%p150) target = $region28
    $region27: #{map_branch_forward.15} parent=5 // pred_region
      // Predicated region
      $region29: #{map_branch_forward.15} parent=27 // pred_check
        %p153 = pneg %p30
      $region30: #{map_branch_forward.15} parent=27 // pred_check_branch
        %155 = sbr.rel (%p153) target = $region32
      $region31: #{map_branch_forward.15} parent=27 // pred_region
        %s156 = smul.u32 32, %s10
        %p157 = scmp.lt.s32.totalorder %s156, 255
        %s158 = scalar_select %p157, %s156, 255
        %s159 = smul.addr %s158, 4
        %s160 = scalar_lea.vmem %s0, %s159
        %s161 = smul.u32 32, %s10
      $region32: #{map_branch_forward.15} parent=27 // pred_fallthru
        _
    $region28: #{map_branch_forward.15} parent=5 // pred_fallthru
      _
    %p162 = scmp.le.s32.totalorder 1, %s10
    %p163 = scmp.lt.s32.totalorder %s10, 9
    %p164 = pnand %p162, %p163
    %p165 = pneg %p164
    // Predicated region
    $region33: #{map_branch_forward.15} parent=5 // pred_check
      _
    $region34: #{map_branch_forward.15} parent=5 // pred_check_branch
      %167 = sbr.rel (%p164) target = $region36
    $region35: #{map_branch_forward.15} parent=5 // pred_region
      %s168 = ssub.s32 %s10, 1
      %s169 = smul.u32 32, %s15
      %p170 = scmp.lt.s32.totalorder %s169, 255
      %s171 = scalar_select %p170, %s169, 255
      %s172 = smul.addr %s171, 4
      %s173 = scalar_lea.vmem %s0, %s172
      %p174 = pneg %p36
      %p175 = pneg %p33
      %p176 = pneg %p57
      %p177 = pneg %p54
      %p178 = pneg %p78
      %p179 = pneg %p75
      %p180 = pneg %p99
      %p181 = pneg %p96
      %p182 = pneg %p125
      %p183 = pneg %p122
      %s184 = smul.u32 32, %s15
      %p185 = scmp.lt.s32.totalorder %s184, 255
      %s186 = scalar_select %p185, %s184, 255
      %s187 = smul.addr %s186, 8
      %s188 = scalar_lea.vmem %s4, %s187
      %s189 = smul.u32 32, %s15
      %p190 = scmp.lt.s32.totalorder %s189, 255
      %s191 = scalar_select %p190, %s189, 255
      %s192 = smul.addr %s191, 4
      %s193 = scalar_lea.vmem %s0, %s192
      %s194 = smul.u32 32, %s15
      %s195 = smul.u32 32, %s15
      %p196 = scmp.lt.s32.totalorder %s195, 255
      %s197 = scalar_select %p196, %s195, 255
      %s198 = smul.addr %s197, 8
      %s199 = scalar_lea.vmem %s4, %s198
      %s200 = smul.u32 32, %s15
      %v202 = vld [vmem:[%s193] sm:$0xf]
      %v203 = vld [vmem:[%s193 + $0x4] sm:$0xf]
      %v204 = vld [vmem:[%s193 + $0x8] sm:$0xf]
      %v205 = vld [vmem:[%s193 + $0xc] sm:$0xf]
      %v206 = vld [vmem:[%s193 + $0x10] sm:$0xf]
      %v207 = vld [vmem:[%s193 + $0x14] sm:$0xf]
      %v208 = vld [vmem:[%s193 + $0x18] sm:$0xf]
      %v209 = vld [vmem:[%s193 + $0x1c] sm:$0xf]
      %v210 = vld [vmem:[%s193 + $0x20] sm:$0xf]
      %v211 = vld [vmem:[%s193 + $0x24] sm:$0xf]
      %v212 = vld [vmem:[%s193 + $0x28] sm:$0xf]
      %v213 = vld [vmem:[%s193 + $0x2c] sm:$0xf]
      %v214 = vld [vmem:[%s193 + $0x30] sm:$0xf]
      %v215 = vld [vmem:[%s193 + $0x34] sm:$0xf]
      %v216 = vld [vmem:[%s193 + $0x38] sm:$0xf]
      %v217 = vld [vmem:[%s193 + $0x3c] sm:$0xf]
      %v218 = vld [vmem:[%s193 + $0x40] sm:$0xf]
      %v219 = vld [vmem:[%s193 + $0x44] sm:$0xf]
      %v220 = vld [vmem:[%s193 + $0x48] sm:$0xf]
      %v221 = vld [vmem:[%s193 + $0x4c] sm:$0xf]
      %v222 = vld [vmem:[%s193 + $0x50] sm:$0xf]
      %v223 = vld [vmem:[%s193 + $0x54] sm:$0xf]
      %v224 = vld [vmem:[%s193 + $0x58] sm:$0xf]
      %v225 = vld [vmem:[%s193 + $0x5c] sm:$0xf]
      %v226 = vld [vmem:[%s193 + $0x60] sm:$0xf]
      %v227 = vld [vmem:[%s193 + $0x64] sm:$0xf]
      %v228 = vld [vmem:[%s193 + $0x68] sm:$0xf]
      %v229 = vld [vmem:[%s193 + $0x6c] sm:$0xf]
      %v230 = vld [vmem:[%s193 + $0x70] sm:$0xf]
      %v231 = vld [vmem:[%s193 + $0x74] sm:$0xf]
      %v232 = vld [vmem:[%s193 + $0x78] sm:$0xf]
      %v233 = vld [vmem:[%s193 + $0x7c] sm:$0xf]
      %v234 = vld [vmem:[%s1] sm:$0xf]
      %v235 = vld [vmem:[%s1 + $0x4] sm:$0xf]
      %v236 = vld [vmem:[%s1 + $0x8] sm:$0xf]
      %v237 = vld [vmem:[%s1 + $0xc] sm:$0xf]
      %v238 = vld [vmem:[%s1 + $0x10] sm:$0xf]
      %v239 = vld [vmem:[%s1 + $0x14] sm:$0xf]
      %v240 = vld [vmem:[%s1 + $0x18] sm:$0xf]
      %v241 = vld [vmem:[%s1 + $0x1c] sm:$0xf]
      %v242 = vld [vmem:[%s1 + $0x20] sm:$0xf]
      %v275 = vunpack.c.l.b16 %v202
      %v276 = vunpack.c.l.b16 %v203
      %v277 = vunpack.c.l.b16 %v204
      %v278 = vunpack.c.l.b16 %v205
      %v279 = vunpack.c.l.b16 %v206
      %v280 = vunpack.c.l.b16 %v207
      %v281 = vunpack.c.l.b16 %v208
      %v282 = vunpack.c.l.b16 %v209
      %v283 = vunpack.c.l.b16 %v210
      %v284 = vunpack.c.l.b16 %v211
      %v285 = vunpack.c.l.b16 %v212
      %v286 = vunpack.c.l.b16 %v213
      %v287 = vunpack.c.l.b16 %v214
      %v288 = vunpack.c.l.b16 %v215
      %v289 = vunpack.c.l.b16 %v216
      %v290 = vunpack.c.l.b16 %v217
      %v291 = vunpack.c.l.b16 %v218
      %v292 = vunpack.c.l.b16 %v219
      %v293 = vunpack.c.l.b16 %v220
      %v294 = vunpack.c.l.b16 %v221
      %v295 = vunpack.c.l.b16 %v222
      %v296 = vunpack.c.l.b16 %v223
      %v297 = vunpack.c.l.b16 %v224
      %v298 = vunpack.c.l.b16 %v225
      %v299 = vunpack.c.l.b16 %v226
      %v300 = vunpack.c.l.b16 %v227
      %v301 = vunpack.c.l.b16 %v228
      %v302 = vunpack.c.l.b16 %v229
      %v303 = vunpack.c.l.b16 %v230
      %v304 = vunpack.c.l.b16 %v231
      %v305 = vunpack.c.l.b16 %v232
      %v306 = vunpack.c.l.b16 %v233
      %v307 = vpack.c.b16 %v276, %v275
      %v308 = vpack.c.b16 %v278, %v277
      %v309 = vpack.c.b16 %v280, %v279
      %v310 = vpack.c.b16 %v282, %v281
      %v311 = vpack.c.b16 %v284, %v283
      %v312 = vpack.c.b16 %v286, %v285
      %v313 = vpack.c.b16 %v288, %v287
      %v314 = vpack.c.b16 %v290, %v289
      %v315 = vpack.c.b16 %v292, %v291
      %v316 = vpack.c.b16 %v294, %v293
      %v317 = vpack.c.b16 %v296, %v295
      %v318 = vpack.c.b16 %v298, %v297
      %v319 = vpack.c.b16 %v300, %v299
      %v320 = vpack.c.b16 %v302, %v301
      %v321 = vpack.c.b16 %v304, %v303
      %v322 = vpack.c.b16 %v306, %v305
      %v332 = vunpack.c.l.b16 %v234
      %v333 = vunpack.c.l.b16 %v235
      %v334 = vunpack.c.l.b16 %v236
      %v335 = vunpack.c.l.b16 %v237
      %v336 = vunpack.c.l.b16 %v238
      %v337 = vunpack.c.l.b16 %v239
      %v338 = vunpack.c.l.b16 %v240
      %v339 = vunpack.c.l.b16 %v241
      %v340 = vunpack.c.l.b16 %v242
      %v341 = vpack.c.b16 %v333, %v332
      %v342 = vpack.c.b16 %v335, %v334
      %v343 = vpack.c.b16 %v337, %v336
      %v344 = vpack.c.b16 %v339, %v338
      %v345 = vpack.c.b16 %v340, %v340
      %vm350 = vcmask 588800
      %v352 = vsel %vm350, %v307, 0
      %v355 = vsel %vm350, %v308, 0
      %v358 = vsel %vm350, %v309, 0
      %v361 = vsel %vm350, %v310, 0
      %v364 = vsel %vm350, %v311, 0
      %v367 = vsel %vm350, %v312, 0
      %v370 = vsel %vm350, %v313, 0
      %v373 = vsel %vm350, %v314, 0
      %v376 = vsel %vm350, %v315, 0
      %v379 = vsel %vm350, %v316, 0
      %v382 = vsel %vm350, %v317, 0
      %v385 = vsel %vm350, %v318, 0
      %v388 = vsel %vm350, %v319, 0
      %v391 = vsel %vm350, %v320, 0
      %v394 = vsel %vm350, %v321, 0
      %v397 = vsel %vm350, %v322, 0
      %vm399 = vcmask 1043456
      %v401 = vsel %vm399, %v345, 0
      %403 = vmatpush.bf16.msra.mxu0 0
      %404 = vmatpush.bf16.msra.mxu0 0
      %405 = vmatpush.bf16.msra.mxu0 0
      %406 = vmatpush.bf16.msra.mxu0 %v401
      %407 = vmatpush.bf16.msra.mxu0 %v344
      %408 = vmatpush.bf16.msra.mxu0 %v343
      %409 = vmatpush.bf16.msra.mxu0 %v342
      %410 = vmatpush.bf16.msra.mxu0 %v341
      %411 = vmatmul.bf16.gmra.mxu0 %v352
      %v412 = vpop.f32.mrf.mxu0
      %v413 = vadd.f32 0.0, %v412
      %v414 = vpop.f32.mrf.mxu0
      %v415 = vadd.f32 0.0, %v414
      %416 = vmatmul.bf16.gmra.mxu0 %v355
      %v417 = vpop.f32.mrf.mxu0
      %v418 = vadd.f32 0.0, %v417
      %v419 = vpop.f32.mrf.mxu0
      %v420 = vadd.f32 0.0, %v419
      %421 = vmatmul.bf16.gmra.mxu0 %v358
      %v422 = vpop.f32.mrf.mxu0
      %v423 = vadd.f32 0.0, %v422
      %v424 = vpop.f32.mrf.mxu0
      %v425 = vadd.f32 0.0, %v424
      %426 = vmatmul.bf16.gmra.mxu0 %v361
      %v427 = vpop.f32.mrf.mxu0
      %v428 = vadd.f32 0.0, %v427
      %v429 = vpop.f32.mrf.mxu0
      %v430 = vadd.f32 0.0, %v429
      %431 = vmatmul.bf16.gmra.mxu0 %v364
      %v432 = vpop.f32.mrf.mxu0
      %v433 = vadd.f32 0.0, %v432
      %v434 = vpop.f32.mrf.mxu0
      %v435 = vadd.f32 0.0, %v434
      %436 = vmatmul.bf16.gmra.mxu0 %v367
      %v437 = vpop.f32.mrf.mxu0
      %v438 = vadd.f32 0.0, %v437
      %v439 = vpop.f32.mrf.mxu0
      %v440 = vadd.f32 0.0, %v439
      %441 = vmatmul.bf16.gmra.mxu0 %v370
      %v442 = vpop.f32.mrf.mxu0
      %v443 = vadd.f32 0.0, %v442
      %v444 = vpop.f32.mrf.mxu0
      %v445 = vadd.f32 0.0, %v444
      %446 = vmatmul.bf16.gmra.mxu0 %v373
      %v447 = vpop.f32.mrf.mxu0
      %v448 = vadd.f32 0.0, %v447
      %v449 = vpop.f32.mrf.mxu0
      %v450 = vadd.f32 0.0, %v449
      %451 = vmatmul.bf16.gmra.mxu0 %v376
      %v452 = vpop.f32.mrf.mxu0
      %v453 = vadd.f32 0.0, %v452
      %v454 = vpop.f32.mrf.mxu0
      %v455 = vadd.f32 0.0, %v454
      %456 = vmatmul.bf16.gmra.mxu0 %v379
      %v457 = vpop.f32.mrf.mxu0
      %v458 = vadd.f32 0.0, %v457
      %v459 = vpop.f32.mrf.mxu0
      %v460 = vadd.f32 0.0, %v459
      %461 = vmatmul.bf16.gmra.mxu0 %v382
      %v462 = vpop.f32.mrf.mxu0
      %v463 = vadd.f32 0.0, %v462
      %v464 = vpop.f32.mrf.mxu0
      %v465 = vadd.f32 0.0, %v464
      %466 = vmatmul.bf16.gmra.mxu0 %v385
      %v467 = vpop.f32.mrf.mxu0
      %v468 = vadd.f32 0.0, %v467
      %v469 = vpop.f32.mrf.mxu0
      %v470 = vadd.f32 0.0, %v469
      %471 = vmatmul.bf16.gmra.mxu0 %v388
      %v472 = vpop.f32.mrf.mxu0
      %v473 = vadd.f32 0.0, %v472
      %v474 = vpop.f32.mrf.mxu0
      %v475 = vadd.f32 0.0, %v474
      %476 = vmatmul.bf16.gmra.mxu0 %v391
      %v477 = vpop.f32.mrf.mxu0
      %v478 = vadd.f32 0.0, %v477
      %v479 = vpop.f32.mrf.mxu0
      %v480 = vadd.f32 0.0, %v479
      %481 = vmatmul.bf16.gmra.mxu0 %v394
      %v482 = vpop.f32.mrf.mxu0
      %v483 = vadd.f32 0.0, %v482
      %v484 = vpop.f32.mrf.mxu0
      %v485 = vadd.f32 0.0, %v484
      %486 = vmatmul.bf16.gmra.mxu0 %v397
      %v487 = vpop.f32.mrf.mxu0
      %v488 = vadd.f32 0.0, %v487
      %v489 = vpop.f32.mrf.mxu0
      %v490 = vadd.f32 0.0, %v489
      %491 = vdwg.mxu0
      %v492 = vld [vmem:[%s2] sm:$0x1]
      %v494 = vperm.slane %v492, 0
      %v496 = vmul.f32 %v413, %v494
      %v497 = vmul.f32 %v415, %v494
      %v498 = vmul.f32 %v418, %v494
      %v499 = vmul.f32 %v420, %v494
      %v500 = vmul.f32 %v423, %v494
      %v501 = vmul.f32 %v425, %v494
      %v502 = vmul.f32 %v428, %v494
      %v503 = vmul.f32 %v430, %v494
      %v504 = vmul.f32 %v433, %v494
      %v505 = vmul.f32 %v435, %v494
      %v506 = vmul.f32 %v438, %v494
      %v507 = vmul.f32 %v440, %v494
      %v508 = vmul.f32 %v443, %v494
      %v509 = vmul.f32 %v445, %v494
      %v510 = vmul.f32 %v448, %v494
      %v511 = vmul.f32 %v450, %v494
      %v512 = vmul.f32 %v453, %v494
      %v513 = vmul.f32 %v455, %v494
      %v514 = vmul.f32 %v458, %v494
      %v515 = vmul.f32 %v460, %v494
      %v516 = vmul.f32 %v463, %v494
      %v517 = vmul.f32 %v465, %v494
      %v518 = vmul.f32 %v468, %v494
      %v519 = vmul.f32 %v470, %v494
      %v520 = vmul.f32 %v473, %v494
      %v521 = vmul.f32 %v475, %v494
      %v522 = vmul.f32 %v478, %v494
      %v523 = vmul.f32 %v480, %v494
      %v524 = vmul.f32 %v483, %v494
      %v525 = vmul.f32 %v485, %v494
      %v526 = vmul.f32 %v488, %v494
      %v527 = vmul.f32 %v490, %v494
      %v528 = vld [vmem:[%s3] sm:$0x1]
      %v530 = vperm.slane %v528, 0
      %v532 = vadd.f32 %v496, %v530
      %v533 = vadd.f32 %v497, %v530
      %v534 = vadd.f32 %v498, %v530
      %v535 = vadd.f32 %v499, %v530
      %v536 = vadd.f32 %v500, %v530
      %v537 = vadd.f32 %v501, %v530
      %v538 = vadd.f32 %v502, %v530
      %v539 = vadd.f32 %v503, %v530
      %v540 = vadd.f32 %v504, %v530
      %v541 = vadd.f32 %v505, %v530
      %v542 = vadd.f32 %v506, %v530
      %v543 = vadd.f32 %v507, %v530
      %v544 = vadd.f32 %v508, %v530
      %v545 = vadd.f32 %v509, %v530
      %v546 = vadd.f32 %v510, %v530
      %v547 = vadd.f32 %v511, %v530
      %v548 = vadd.f32 %v512, %v530
      %v549 = vadd.f32 %v513, %v530
      %v550 = vadd.f32 %v514, %v530
      %v551 = vadd.f32 %v515, %v530
      %v552 = vadd.f32 %v516, %v530
      %v553 = vadd.f32 %v517, %v530
      %v554 = vadd.f32 %v518, %v530
      %v555 = vadd.f32 %v519, %v530
      %v556 = vadd.f32 %v520, %v530
      %v557 = vadd.f32 %v521, %v530
      %v558 = vadd.f32 %v522, %v530
      %v559 = vadd.f32 %v523, %v530
      %v560 = vadd.f32 %v524, %v530
      %v561 = vadd.f32 %v525, %v530
      %v562 = vadd.f32 %v526, %v530
      %v563 = vadd.f32 %v527, %v530
      %v564 = vmax.f32 %v532, 0.0
      %v565 = vmax.f32 %v533, 0.0
      %v566 = vmax.f32 %v534, 0.0
      %v567 = vmax.f32 %v535, 0.0
      %v568 = vmax.f32 %v536, 0.0
      %v569 = vmax.f32 %v537, 0.0
      %v570 = vmax.f32 %v538, 0.0
      %v571 = vmax.f32 %v539, 0.0
      %v572 = vmax.f32 %v540, 0.0
      %v573 = vmax.f32 %v541, 0.0
      %v574 = vmax.f32 %v542, 0.0
      %v575 = vmax.f32 %v543, 0.0
      %v576 = vmax.f32 %v544, 0.0
      %v577 = vmax.f32 %v545, 0.0
      %v578 = vmax.f32 %v546, 0.0
      %v579 = vmax.f32 %v547, 0.0
      %v580 = vmax.f32 %v548, 0.0
      %v581 = vmax.f32 %v549, 0.0
      %v582 = vmax.f32 %v550, 0.0
      %v583 = vmax.f32 %v551, 0.0
      %v584 = vmax.f32 %v552, 0.0
      %v585 = vmax.f32 %v553, 0.0
      %v586 = vmax.f32 %v554, 0.0
      %v587 = vmax.f32 %v555, 0.0
      %v588 = vmax.f32 %v556, 0.0
      %v589 = vmax.f32 %v557, 0.0
      %v590 = vmax.f32 %v558, 0.0
      %v591 = vmax.f32 %v559, 0.0
      %v592 = vmax.f32 %v560, 0.0
      %v593 = vmax.f32 %v561, 0.0
      %v594 = vmax.f32 %v562, 0.0
      %v595 = vmax.f32 %v563, 0.0
      %vm596 = vcmask 31744
      %597 = vst.msk [vmem:[%s199] sm:$0xff] %vm596, %v564
      %598 = vst.msk [vmem:[%s199 + $0x8] sm:$0xff] %vm596, %v565
      %599 = vst.msk [vmem:[%s199 + $0x10] sm:$0xff] %vm596, %v566
      %600 = vst.msk [vmem:[%s199 + $0x18] sm:$0xff] %vm596, %v567
      %601 = vst.msk [vmem:[%s199 + $0x20] sm:$0xff] %vm596, %v568
      %602 = vst.msk [vmem:[%s199 + $0x28] sm:$0xff] %vm596, %v569
      %603 = vst.msk [vmem:[%s199 + $0x30] sm:$0xff] %vm596, %v570
      %604 = vst.msk [vmem:[%s199 + $0x38] sm:$0xff] %vm596, %v571
      %605 = vst.msk [vmem:[%s199 + $0x40] sm:$0xff] %vm596, %v572
      %606 = vst.msk [vmem:[%s199 + $0x48] sm:$0xff] %vm596, %v573
      %607 = vst.msk [vmem:[%s199 + $0x50] sm:$0xff] %vm596, %v574
      %608 = vst.msk [vmem:[%s199 + $0x58] sm:$0xff] %vm596, %v575
      %609 = vst.msk [vmem:[%s199 + $0x60] sm:$0xff] %vm596, %v576
      %610 = vst.msk [vmem:[%s199 + $0x68] sm:$0xff] %vm596, %v577
      %611 = vst.msk [vmem:[%s199 + $0x70] sm:$0xff] %vm596, %v578
      %612 = vst.msk [vmem:[%s199 + $0x78] sm:$0xff] %vm596, %v579
      %613 = vst.msk [vmem:[%s199 + $0x80] sm:$0xff] %vm596, %v580
      %614 = vst.msk [vmem:[%s199 + $0x88] sm:$0xff] %vm596, %v581
      %615 = vst.msk [vmem:[%s199 + $0x90] sm:$0xff] %vm596, %v582
      %616 = vst.msk [vmem:[%s199 + $0x98] sm:$0xff] %vm596, %v583
      %617 = vst.msk [vmem:[%s199 + $0xa0] sm:$0xff] %vm596, %v584
      %618 = vst.msk [vmem:[%s199 + $0xa8] sm:$0xff] %vm596, %v585
      %619 = vst.msk [vmem:[%s199 + $0xb0] sm:$0xff] %vm596, %v586
      %620 = vst.msk [vmem:[%s199 + $0xb8] sm:$0xff] %vm596, %v587
      %621 = vst.msk [vmem:[%s199 + $0xc0] sm:$0xff] %vm596, %v588
      %622 = vst.msk [vmem:[%s199 + $0xc8] sm:$0xff] %vm596, %v589
      %623 = vst.msk [vmem:[%s199 + $0xd0] sm:$0xff] %vm596, %v590
      %624 = vst.msk [vmem:[%s199 + $0xd8] sm:$0xff] %vm596, %v591
      %625 = vst.msk [vmem:[%s199 + $0xe0] sm:$0xff] %vm596, %v592
      %626 = vst.msk [vmem:[%s199 + $0xe8] sm:$0xff] %vm596, %v593
      %627 = vst.msk [vmem:[%s199 + $0xf0] sm:$0xff] %vm596, %v594
      %628 = vst.msk [vmem:[%s199 + $0xf8] sm:$0xff] %vm596, %v595
      %s629 = smul.u32 32, %s15
      %p630 = scmp.lt.s32.totalorder %s629, 255
      %s631 = scalar_select %p630, %s629, 255
      %s632 = smul.addr %s631, 8
      %s633 = scalar_lea.vmem %s4, %s632
      // Predicated region
      $region37: #{map_branch_forward.15} parent=35 // pred_check
        %p634 = pneg %p122
      $region38: #{map_branch_forward.15} parent=35 // pred_check_branch
        %636 = sbr.rel (%p634) target = $region40
      $region39: #{map_branch_forward.15} parent=35 // pred_region
        %s637 = smul.u32 32, %s15
      $region40: #{map_branch_forward.15} parent=35 // pred_fallthru
        _
    $region36: #{map_branch_forward.15} parent=5 // pred_fallthru
      _
    %p638 = scmp.le.s32.totalorder 2, %s10
    // Predicated region
    $region41: #{map_branch_forward.15} parent=5 // pred_check
      %p639 = pneg %p638
    $region42: #{map_branch_forward.15} parent=5 // pred_check_branch
      %641 = sbr.rel (%p639) target = $region44
    $region43: #{map_branch_forward.15} parent=5 // pred_region
      %s642 = ssub.s32 %s10, 2
      // Predicated region
      $region45: #{map_branch_forward.15} parent=43 // pred_check
        %p643 = pneg %p128
      $region46: #{map_branch_forward.15} parent=43 // pred_check_branch
        %645 = sbr.rel (%p643) target = $region48
      $region47: #{map_branch_forward.15} parent=43 // pred_region
        %s646 = smul.u32 32, %s16
        %p647 = scmp.lt.s32.totalorder %s646, 255
        %s648 = scalar_select %p647, %s646, 255
        %s649 = smul.addr %s648, 8
        %s650 = scalar_lea.vmem %s4, %s649
      $region48: #{map_branch_forward.15} parent=43 // pred_fallthru
        _
    $region44: #{map_branch_forward.15} parent=5 // pred_fallthru
      _
  $region6: #{map_branch_forward.15} parent=0 // loop_footer
    %s14 = sadd.s32 1, %s10
  $region7: #{map_branch_forward.15} parent=0 // loop_footer_branch
    %9 = sbr.rel target = $region3
  $region8: #{map_branch_forward.15} parent=0 // loop_exit
    _

</llo_original>
